<compile_context>
chip_gen: v5e
topology: v5e:2x2
jax: 0.10.0
libtpu: 0.0.40
codegen_flags: <defaults>
</compile_context>

<pallas_src>
from functools import partial

import jax
import jax.numpy as jnp
from jax.experimental import pallas as pl
from jax.experimental.pallas import tpu as pltpu


def _gelu(x):
    # Exact-erf GELU via Abramowitz-Stegun 7.1.26 (abs err < 1.5e-7).
    # Uses only mul/add/div/exp so it lowers inside a Pallas TPU kernel on all gens.
    z = x * 0.7071067811865476
    az = jnp.abs(z)
    t = 1.0 / (1.0 + 0.3275911 * az)
    poly = t * (0.254829592 + t * (-0.284496736 + t * (1.421413741
               + t * (-1.453152027 + t * 1.061405429))))
    erf_abs = 1.0 - poly * jnp.exp(-az * az)
    erf_z = jnp.where(z < 0.0, -erf_abs, erf_abs)
    return 0.5 * x * (1.0 + erf_z)


def _shift_lanes(y, s):
    """z[:, n] = y[:, n + s], zero-filled outside [0, N).  `s` is a static int."""
    c, n = y.shape
    if s == 0:
        return y
    if s > 0:
        return jnp.concatenate([y[:, s:], jnp.zeros((c, s), y.dtype)], axis=1)
    return jnp.concatenate([jnp.zeros((c, -s), y.dtype), y[:, :n + s]], axis=1)


# ----------------------------------------------------------------------------
# Kernel A: mode-product batched matmuls + pos_emb (Conv3x3 -> GELU -> Conv3x3)
# ----------------------------------------------------------------------------
def _front_kernel(xm_ref, xh_ref, xhf_ref, smw_ref, amw_ref, shw_ref, ahw_ref,
                  w1_ref, b1_ref, w2_ref, b2_ref, mask_ref,
                  s_msi_ref, a_msi_ref, s_hsi_ref, a_hsi_ref, pos_ref):
    C, W, H = xm_ref.shape

    xm = xm_ref[...]      # (C, W, H) f32
    xh = xh_ref[...]      # (C, W, H) f32

    # --- mode products (per-channel batched matmuls, tiny FLOP fraction -> f32) ---
    s_msi_ref[...] = jnp.einsum('clw,cwh->clh', smw_ref[...], xm,
                                preferred_element_type=jnp.float32)
    a_msi_ref[...] = jnp.einsum('cwh,chl->cwl', xm, amw_ref[...],
                                preferred_element_type=jnp.float32)
    s_hsi_ref[...] = jnp.einsum('clw,cwh->clh', shw_ref[...], xh,
                                preferred_element_type=jnp.float32)
    a_hsi_ref[...] = jnp.einsum('cwh,chl->cwl', xh, ahw_ref[...],
                                preferred_element_type=jnp.float32)

    # --- pos_emb: 3x3 conv (padding=1) as 9 accumulated (C,C)@(C,N) bf16 matmuls
    #     on the flat image; zero padding realised by static lane shifts plus
    #     precomputed border masks (no pad / im2col buffers, no masked stores). ---
    def conv3x3(x_b16, w_ref, b_ref):
        acc = None
        for ky in range(3):
            for kx in range(3):
                t = ky * 3 + kx
                y = jnp.dot(w_ref[t], x_b16,
                            preferred_element_type=jnp.float32)        # (C, N) f32
                y = _shift_lanes(y, (ky - 1) * H + (kx - 1)) * mask_ref[t]
                acc = y if acc is None else acc + y
        return acc + b_ref[...]

    h1 = _gelu(conv3x3(xhf_ref[...].astype(jnp.bfloat16), w1_ref, b1_ref))
    pos_ref[...] = conv3x3(h1.astype(jnp.bfloat16), w2_ref, b2_ref)     # (C, W*H)


def mode_products_and_pos(x_msi, x_hsi, to_s_msi, to_a_msi, to_s_hsi, to_a_hsi,
                          w1_taps, b1, w2_taps, b2, masks):
    B, C, W, H = x_msi.shape
    L = to_s_hsi.shape[1]
    N = W * H
    x_hsi_flat = x_hsi.reshape(B, C, N)      # free reshape (contiguous)

    x_spec = pl.BlockSpec((None, C, W, H), lambda b: (b, 0, 0, 0))
    xf_spec = pl.BlockSpec((None, C, N), lambda b: (b, 0, 0))
    ws_spec = pl.BlockSpec((C, L, W), lambda b: (0, 0, 0))
    wa_spec = pl.BlockSpec((C, H, L), lambda b: (0, 0, 0))
    wt_spec = pl.BlockSpec((9, C, C), lambda b: (0, 0, 0))
    cb_spec = pl.BlockSpec((C, 1), lambda b: (0, 0))
    mk_spec = pl.BlockSpec((9, 1, N), lambda b: (0, 0, 0))

    out_shapes = (jax.ShapeDtypeStruct((B, C, L, H), jnp.float32),   # s_msi
                  jax.ShapeDtypeStruct((B, C, W, L), jnp.float32),   # a_msi
                  jax.ShapeDtypeStruct((B, C, L, H), jnp.float32),   # s_hsi
                  jax.ShapeDtypeStruct((B, C, W, L), jnp.float32),   # a_hsi
                  jax.ShapeDtypeStruct((B, C, N), jnp.float32))      # pos (flat, lane-dense)
    out_specs = (pl.BlockSpec((None, C, L, H), lambda b: (b, 0, 0, 0)),
                 pl.BlockSpec((None, C, W, L), lambda b: (b, 0, 0, 0)),
                 pl.BlockSpec((None, C, L, H), lambda b: (b, 0, 0, 0)),
                 pl.BlockSpec((None, C, W, L), lambda b: (b, 0, 0, 0)),
                 pl.BlockSpec((None, C, N), lambda b: (b, 0, 0)))

    return pl.pallas_call(
        _front_kernel,
        out_shape=out_shapes,
        grid=(B,),
        in_specs=[x_spec, x_spec, xf_spec, ws_spec, wa_spec, ws_spec, wa_spec,
                  wt_spec, cb_spec, wt_spec, cb_spec, mk_spec],
        out_specs=out_specs,
        compiler_params=pltpu.CompilerParams(dimension_semantics=("parallel",)),
    )(x_msi, x_hsi, x_hsi_flat, to_s_msi, to_a_msi, to_s_hsi, to_a_hsi,
      w1_taps, b1, w2_taps, b2, masks)


# ----------------------------------------------------------------------------
# Kernel B: both SpatialMSA blocks (heads batched via block-diagonal mask),
# bf16 MXU operands, GELU fused, single lane-dense (C, 2N) store.
# ----------------------------------------------------------------------------
def _msa_pair_kernel(sq_ref, skv_ref, aq_ref, akv_ref, bias_ref,
                     swq_ref, swk_ref, swv_ref, swp_ref, sbp_ref,
                     awq_ref, awk_ref, awv_ref, awp_ref, abp_ref,
                     out_ref):
    def branch(xq, xkv, wq_ref, wk_ref, wv_ref, wp_ref, bp_ref):
        xq_b = xq.astype(jnp.bfloat16)
        xkv_b = xkv.astype(jnp.bfloat16)
        # bf16 operands, f32 accumulation on the MXU
        q = jnp.dot(xq_b, wq_ref[...], preferred_element_type=jnp.float32)   # (C, inner)
        k = jnp.dot(xkv_b, wk_ref[...], preferred_element_type=jnp.float32)
        v = jnp.dot(xkv_b, wv_ref[...], preferred_element_type=jnp.float32)
        # F.normalize(p=2, dim=-1): L2 normalize over the channel axis (f32 VPU)
        qn = q * jax.lax.rsqrt(jnp.maximum(jnp.sum(q * q, axis=0, keepdims=True), 1e-24))
        kn = k * jax.lax.rsqrt(jnp.maximum(jnp.sum(k * k, axis=0, keepdims=True), 1e-24))
        # All heads at once: full (inner, inner) logits + additive block-diag mask.
        # Mask add / max-subtract / exp stay in f32.
        logits = jax.lax.dot_general(kn.astype(jnp.bfloat16), qn.astype(jnp.bfloat16),
                                     (((0,), (0,)), ((), ())),
                                     preferred_element_type=jnp.float32)
        logits = logits + bias_ref[...]                     # -1e30 off-head-block
        logits = logits - jnp.max(logits, axis=-1, keepdims=True)
        p = jnp.exp(logits)
        p = p * pl.reciprocal(jnp.sum(p, axis=-1, keepdims=True), approx=True)
        # ctx[c, i] = sum_j p[i, j] * v[c, j]
        ctx = jax.lax.dot_general(v.astype(jnp.bfloat16), p.astype(jnp.bfloat16),
                                  (((1,), (1,)), ((), ())),
                                  preferred_element_type=jnp.float32)        # (C, inner)
        return _gelu(jnp.dot(ctx.astype(jnp.bfloat16), wp_ref[...],
                             preferred_element_type=jnp.float32) + bp_ref[...])

    out_s = branch(sq_ref[...], skv_ref[...], swq_ref, swk_ref, swv_ref, swp_ref, sbp_ref)
    out_a = branch(aq_ref[...], akv_ref[...], awq_ref, awk_ref, awv_ref, awp_ref, abp_ref)
    # single lane-dense (C, 2N = 128) store instead of two masked half stores
    out_ref[...] = jnp.concatenate([out_s, out_a], axis=-1)


def msa_pair(s_q, s_kv, a_q, a_kv, params_s, params_a, attn_bias):
    B, C, N = s_q.shape
    inner = params_s[0].shape[1]
    swq, swk, swv, swp, sbp = params_s
    awq, awk, awv, awp, abp = params_a

    x_spec = pl.BlockSpec((None, C, N), lambda b: (b, 0, 0))
    bias_spec = pl.BlockSpec((inner, inner), lambda b: (0, 0))
    win = pl.BlockSpec((N, inner), lambda b: (0, 0))
    wout = pl.BlockSpec((inner, N), lambda b: (0, 0))
    bsp = pl.BlockSpec((1, N), lambda b: (0, 0))

    return pl.pallas_call(
        _msa_pair_kernel,
        out_shape=jax.ShapeDtypeStruct((B, C, 2 * N), jnp.float32),
        grid=(B,),
        in_specs=[x_spec, x_spec, x_spec, x_spec, bias_spec,
                  win, win, win, wout, bsp,
                  win, win, win, wout, bsp],
        out_specs=pl.BlockSpec((None, C, 2 * N), lambda b: (b, 0, 0)),
        compiler_params=pltpu.CompilerParams(dimension_semantics=("parallel",)),
    )(s_q, s_kv, a_q, a_kv, attn_bias,
      swq, swk, swv, swp, sbp, awq, awk, awv, awp, abp)


# ----------------------------------------------------------------------------
# Kernel C: out = a @ s + pos  (batched over channels; HBM-bound)
# ----------------------------------------------------------------------------
def _combine_kernel(a_ref, s_ref, pos_ref, out_ref):
    out_ref[...] = jnp.einsum('cwl,clh->cwh', a_ref[...], s_ref[...],
                              preferred_element_type=jnp.float32) + pos_ref[...]


def combine(a, s, pos):
    B, C, W, L = a.shape
    H = s.shape[-1]
    return pl.pallas_call(
        _combine_kernel,
        out_shape=jax.ShapeDtypeStruct((B, C, W, H), jnp.float32),
        grid=(B,),
        in_specs=[pl.BlockSpec((None, C, W, L), lambda b: (b, 0, 0, 0)),
                  pl.BlockSpec((None, C, L, H), lambda b: (b, 0, 0, 0)),
                  pl.BlockSpec((None, C, W, H), lambda b: (b, 0, 0, 0))],
        out_specs=pl.BlockSpec((None, C, W, H), lambda b: (b, 0, 0, 0)),
        compiler_params=pltpu.CompilerParams(dimension_semantics=("parallel",)),
    )(a, s, pos)


# ----------------------------------------------------------------------------
# Parameter init (deterministic synthetic) and full forward
# ----------------------------------------------------------------------------
def init_params(key, c_in, w_cin, h_in, L, head_dim, heads_number):
    dim_vector = h_in * L
    inner = head_dim * heads_number
    ks = jax.random.split(key, 18)
    nrm = lambda k, shape: 0.1 * jax.random.normal(k, shape, jnp.float32)
    # NOTE: SpatialMSA.rescale exists in the torch module but is never used in
    # its forward(), so it is omitted here.
    return {
        'to_s_hsi': nrm(ks[0], (c_in, L, w_cin)),
        'to_a_hsi': nrm(ks[1], (c_in, h_in, L)),
        'to_s_msi': nrm(ks[2], (c_in, L, w_cin)),
        'to_a_msi': nrm(ks[3], (c_in, h_in, L)),
        'conv1_w': nrm(ks[4], (c_in, c_in, 3, 3)),     # torch Conv2d layout
        'conv1_b': nrm(ks[5], (c_in,)),
        'conv2_w': nrm(ks[6], (c_in, c_in, 3, 3)),
        'conv2_b': nrm(ks[7], (c_in,)),
        # Linear weights stored transposed (in, out); bp is (1, dim_vector)
        'msa_s': (nrm(ks[8], (dim_vector, inner)), nrm(ks[9], (dim_vector, inner)),
                  nrm(ks[10], (dim_vector, inner)), nrm(ks[11], (inner, dim_vector)),
                  nrm(ks[12], (1, dim_vector))),
        'msa_a': (nrm(ks[13], (dim_vector, inner)), nrm(ks[14], (dim_vector, inner)),
                  nrm(ks[15], (dim_vector, inner)), nrm(ks[16], (inner, dim_vector)),
                  nrm(ks[17], (1, dim_vector))),
    }


def _msa_params_bf16(p):
    wq, wk, wv, wp, bp = p
    cast = lambda w: w.astype(jnp.bfloat16)
    return (cast(wq), cast(wk), cast(wv), cast(wp), bp.astype(jnp.float32))


def spatial_learn_forward(params, x_msi, x_hsi, *, heads_number, head_dim):
    B, C, W, H = x_msi.shape
    L = params['to_s_hsi'].shape[1]
    dim_vec = L * H                   # == W * L (module requires w_cin == h_in)
    inner = heads_number * head_dim

    # conv weights -> per-tap (9, C_out, C_in) bf16 (t = ky*3 + kx); biases (C,1) f32
    w1 = jnp.transpose(params['conv1_w'], (2, 3, 0, 1)).reshape(9, C, C).astype(jnp.bfloat16)
    w2 = jnp.transpose(params['conv2_w'], (2, 3, 0, 1)).reshape(9, C, C).astype(jnp.bfloat16)
    b1 = params['conv1_b'].reshape(C, 1).astype(jnp.float32)
    b2 = params['conv2_b'].reshape(C, 1).astype(jnp.float32)

    # border masks realising the conv zero padding: one (1, W*H) row per tap
    wi = jnp.arange(W)
    hi = jnp.arange(H)
    mask_rows = []
    for ky in range(3):
        for kx in range(3):
            vw = (wi + ky - 1 >= 0) & (wi + ky - 1 < W)
            vh = (hi + kx - 1 >= 0) & (hi + kx - 1 < H)
            mask_rows.append((vw[:, None] & vh[None, :]).reshape(1, W * H))
    masks = jnp.stack(mask_rows).astype(jnp.float32)            # (9, 1, W*H)

    # Kernel A: mode products + pos_emb conv chain
    s_msi, a_msi, s_hsi, a_hsi, pos_flat = mode_products_and_pos(
        x_msi, x_hsi, params['to_s_msi'], params['to_a_msi'],
        params['to_s_hsi'], params['to_a_hsi'], w1, b1, w2, b2, masks)

    # additive block-diagonal head mask (0 on-head-block, -1e30 elsewhere), f32
    hid = jnp.arange(inner) // head_dim
    attn_bias = jnp.where(hid[:, None] == hid[None, :], 0.0, -1e30).astype(jnp.float32)

    # Kernel B: both SpatialMSA blocks (flat (C, dim_vec) views; wrapper reshapes are free)
    msa_cat = msa_pair(s_msi.reshape(B, C, dim_vec), s_hsi.reshape(B, C, dim_vec),
                       a_msi.reshape(B, C, dim_vec), a_hsi.reshape(B, C, dim_vec),
                       _msa_params_bf16(params['msa_s']),
                       _msa_params_bf16(params['msa_a']), attn_bias)
    s3 = msa_cat[:, :, :dim_vec].reshape(B, C, L, H)
    a3 = msa_cat[:, :, dim_vec:].reshape(B, C, W, L)
    pos3 = pos_flat.reshape(B, C, W, H)

    # Kernel C: out = a @ s + pos
    return combine(a3, s3, pos3)


if __name__ == "__main__":
    B, C_IN = 2, 4
    # Module requires w_cin == h_in so msa_a's dim_vector (h_in*L) matches w_cin*L.
    W_CIN = H_IN = 8
    L = 8
    HEAD_DIM, HEADS = 8, 4

    key = jax.random.PRNGKey(0)
    kp, kx1, kx2 = jax.random.split(key, 3)
    params = init_params(kp, C_IN, W_CIN, H_IN, L, HEAD_DIM, HEADS)
    x_msi = jax.random.normal(kx1, (B, C_IN, W_CIN, H_IN), jnp.float32)
    x_hsi = jax.random.normal(kx2, (B, C_IN, W_CIN, H_IN), jnp.float32)

    fwd = jax.jit(partial(spatial_learn_forward, heads_number=HEADS, head_dim=HEAD_DIM))
    out = fwd(params, x_msi, x_hsi)
    jax.block_until_ready(out)
    assert out.shape == (B, C_IN, W_CIN, H_IN) and out.dtype == jnp.float32
    print("KERNEL_OK")
</pallas_src>

<mosaic_0001>
module attributes {stable_mosaic.version = 11 : i64} {
  func.func @_front_kernel(%arg0: i32, %arg1: memref<1x4x8x8xf32, #tpu.memory_space<vmem>>, %arg2: memref<1x4x8x8xf32, #tpu.memory_space<vmem>>, %arg3: memref<1x4x64xf32, #tpu.memory_space<vmem>>, %arg4: memref<4x8x8xf32, #tpu.memory_space<vmem>>, %arg5: memref<4x8x8xf32, #tpu.memory_space<vmem>>, %arg6: memref<4x8x8xf32, #tpu.memory_space<vmem>>, %arg7: memref<4x8x8xf32, #tpu.memory_space<vmem>>, %arg8: memref<9x4x4xbf16, #tpu.memory_space<vmem>>, %arg9: memref<4x1xf32, #tpu.memory_space<vmem>>, %arg10: memref<9x4x4xbf16, #tpu.memory_space<vmem>>, %arg11: memref<4x1xf32, #tpu.memory_space<vmem>>, %arg12: memref<9x1x64xf32, #tpu.memory_space<vmem>>, %arg13: memref<1x4x8x8xf32, #tpu.memory_space<vmem>>, %arg14: memref<1x4x8x8xf32, #tpu.memory_space<vmem>>, %arg15: memref<1x4x8x8xf32, #tpu.memory_space<vmem>>, %arg16: memref<1x4x8x8xf32, #tpu.memory_space<vmem>>, %arg17: memref<1x4x64xf32, #tpu.memory_space<vmem>>) attributes {dimension_semantics = [#tpu.dimension_semantics<parallel>], iteration_bounds = array<i64: 2>, scalar_prefetch = 0 : i64, scratch_operands = 0 : i64, tpu.core_type = #tpu.core_type<tc>, window_params = [{transform_indices = @transform_0, window_bounds = array<i64: 1, 4, 8, 8>}, {transform_indices = @transform_1, window_bounds = array<i64: 1, 4, 8, 8>}, {transform_indices = @transform_2, window_bounds = array<i64: 1, 4, 64>}, {pipeline_mode = #tpu.pipeline_mode<synchronous>, transform_indices = @transform_3, window_bounds = array<i64: 4, 8, 8>}, {pipeline_mode = #tpu.pipeline_mode<synchronous>, transform_indices = @transform_4, window_bounds = array<i64: 4, 8, 8>}, {pipeline_mode = #tpu.pipeline_mode<synchronous>, transform_indices = @transform_5, window_bounds = array<i64: 4, 8, 8>}, {pipeline_mode = #tpu.pipeline_mode<synchronous>, transform_indices = @transform_6, window_bounds = array<i64: 4, 8, 8>}, {pipeline_mode = #tpu.pipeline_mode<synchronous>, transform_indices = @transform_7, window_bounds = array<i64: 9, 4, 4>}, {pipeline_mode = #tpu.pipeline_mode<synchronous>, transform_indices = @transform_8, window_bounds = array<i64: 4, 1>}, {pipeline_mode = #tpu.pipeline_mode<synchronous>, transform_indices = @transform_9, window_bounds = array<i64: 9, 4, 4>}, {pipeline_mode = #tpu.pipeline_mode<synchronous>, transform_indices = @transform_10, window_bounds = array<i64: 4, 1>}, {pipeline_mode = #tpu.pipeline_mode<synchronous>, transform_indices = @transform_11, window_bounds = array<i64: 9, 1, 64>}, {transform_indices = @transform_12, window_bounds = array<i64: 1, 4, 8, 8>}, {transform_indices = @transform_13, window_bounds = array<i64: 1, 4, 8, 8>}, {transform_indices = @transform_14, window_bounds = array<i64: 1, 4, 8, 8>}, {transform_indices = @transform_15, window_bounds = array<i64: 1, 4, 8, 8>}, {transform_indices = @transform_16, window_bounds = array<i64: 1, 4, 64>}]} {
    %c0 = arith.constant 0 : index
    %c0_0 = arith.constant 0 : index
    %c0_1 = arith.constant 0 : index
    %c0_2 = arith.constant 0 : index
    %0 = vector.load %arg1[%c0, %c0_0, %c0_1, %c0_2] : memref<1x4x8x8xf32, #tpu.memory_space<vmem>>, vector<1x4x8x8xf32>
    %1 = vector.shape_cast %0 : vector<1x4x8x8xf32> to vector<4x8x8xf32>
    %c0_3 = arith.constant 0 : index
    %c0_4 = arith.constant 0 : index
    %c0_5 = arith.constant 0 : index
    %c0_6 = arith.constant 0 : index
    %2 = vector.load %arg2[%c0_3, %c0_4, %c0_5, %c0_6] : memref<1x4x8x8xf32, #tpu.memory_space<vmem>>, vector<1x4x8x8xf32>
    %3 = vector.shape_cast %2 : vector<1x4x8x8xf32> to vector<4x8x8xf32>
    %c0_7 = arith.constant 0 : index
    %c0_8 = arith.constant 0 : index
    %c0_9 = arith.constant 0 : index
    %4 = vector.load %arg4[%c0_7, %c0_8, %c0_9] : memref<4x8x8xf32, #tpu.memory_space<vmem>>, vector<4x8x8xf32>
    "tpu.trace_start"() <{level = 10 : i32, message = "clw,cwh->clh"}> : () -> ()
    %cst = arith.constant dense<0.000000e+00> : vector<4x8x8xf32>
    %5 = tpu.matmul %4, %1, %cst {dimension_numbers = #tpu.dot_dimension_numbers<[2], [1], [1], [2], [0, 0, 0, 1, 1, 2], [0], [0]>} : vector<4x8x8xf32>, vector<4x8x8xf32>, vector<4x8x8xf32> -> vector<4x8x8xf32>
    "tpu.trace_stop"() : () -> ()
    %c0_10 = arith.constant 0 : index
    %c0_11 = arith.constant 0 : index
    %c0_12 = arith.constant 0 : index
    %c0_13 = arith.constant 0 : index
    %6 = vector.load %arg13[%c0_10, %c0_11, %c0_12, %c0_13] : memref<1x4x8x8xf32, #tpu.memory_space<vmem>>, vector<1x4x8x8xf32>
    %7 = vector.shape_cast %6 : vector<1x4x8x8xf32> to vector<4x8x8xf32>
    %8 = vector.shape_cast %5 : vector<4x8x8xf32> to vector<1x4x8x8xf32>
    tpu.vector_store %arg13[%c0_10, %c0_11, %c0_12, %c0_13], %8 {strides = array<i32>} : memref<1x4x8x8xf32, #tpu.memory_space<vmem>>, vector<1x4x8x8xf32>,
    %c0_14 = arith.constant 0 : index
    %c0_15 = arith.constant 0 : index
    %c0_16 = arith.constant 0 : index
    %9 = vector.load %arg5[%c0_14, %c0_15, %c0_16] : memref<4x8x8xf32, #tpu.memory_space<vmem>>, vector<4x8x8xf32>
    "tpu.trace_start"() <{level = 10 : i32, message = "cwh,chl->cwl"}> : () -> ()
    %cst_17 = arith.constant dense<0.000000e+00> : vector<4x8x8xf32>
    %10 = tpu.matmul %1, %9, %cst_17 {dimension_numbers = #tpu.dot_dimension_numbers<[2], [1], [1], [2], [0, 0, 0, 1, 1, 2], [0], [0]>} : vector<4x8x8xf32>, vector<4x8x8xf32>, vector<4x8x8xf32> -> vector<4x8x8xf32>
    "tpu.trace_stop"() : () -> ()
    %c0_18 = arith.constant 0 : index
    %c0_19 = arith.constant 0 : index
    %c0_20 = arith.constant 0 : index
    %c0_21 = arith.constant 0 : index
    %11 = vector.load %arg14[%c0_18, %c0_19, %c0_20, %c0_21] : memref<1x4x8x8xf32, #tpu.memory_space<vmem>>, vector<1x4x8x8xf32>
    %12 = vector.shape_cast %11 : vector<1x4x8x8xf32> to vector<4x8x8xf32>
    %13 = vector.shape_cast %10 : vector<4x8x8xf32> to vector<1x4x8x8xf32>
    tpu.vector_store %arg14[%c0_18, %c0_19, %c0_20, %c0_21], %13 {strides = array<i32>} : memref<1x4x8x8xf32, #tpu.memory_space<vmem>>, vector<1x4x8x8xf32>,
    %c0_22 = arith.constant 0 : index
    %c0_23 = arith.constant 0 : index
    %c0_24 = arith.constant 0 : index
    %14 = vector.load %arg6[%c0_22, %c0_23, %c0_24] : memref<4x8x8xf32, #tpu.memory_space<vmem>>, vector<4x8x8xf32>
    "tpu.trace_start"() <{level = 10 : i32, message = "clw,cwh->clh"}> : () -> ()
    %cst_25 = arith.constant dense<0.000000e+00> : vector<4x8x8xf32>
    %15 = tpu.matmul %14, %3, %cst_25 {dimension_numbers = #tpu.dot_dimension_numbers<[2], [1], [1], [2], [0, 0, 0, 1, 1, 2], [0], [0]>} : vector<4x8x8xf32>, vector<4x8x8xf32>, vector<4x8x8xf32> -> vector<4x8x8xf32>
    "tpu.trace_stop"() : () -> ()
    %c0_26 = arith.constant 0 : index
    %c0_27 = arith.constant 0 : index
    %c0_28 = arith.constant 0 : index
    %c0_29 = arith.constant 0 : index
    %16 = vector.load %arg15[%c0_26, %c0_27, %c0_28, %c0_29] : memref<1x4x8x8xf32, #tpu.memory_space<vmem>>, vector<1x4x8x8xf32>
    %17 = vector.shape_cast %16 : vector<1x4x8x8xf32> to vector<4x8x8xf32>
    %18 = vector.shape_cast %15 : vector<4x8x8xf32> to vector<1x4x8x8xf32>
    tpu.vector_store %arg15[%c0_26, %c0_27, %c0_28, %c0_29], %18 {strides = array<i32>} : memref<1x4x8x8xf32, #tpu.memory_space<vmem>>, vector<1x4x8x8xf32>,
    %c0_30 = arith.constant 0 : index
    %c0_31 = arith.constant 0 : index
    %c0_32 = arith.constant 0 : index
    %19 = vector.load %arg7[%c0_30, %c0_31, %c0_32] : memref<4x8x8xf32, #tpu.memory_space<vmem>>, vector<4x8x8xf32>
    "tpu.trace_start"() <{level = 10 : i32, message = "cwh,chl->cwl"}> : () -> ()
    %cst_33 = arith.constant dense<0.000000e+00> : vector<4x8x8xf32>
    %20 = tpu.matmul %3, %19, %cst_33 {dimension_numbers = #tpu.dot_dimension_numbers<[2], [1], [1], [2], [0, 0, 0, 1, 1, 2], [0], [0]>} : vector<4x8x8xf32>, vector<4x8x8xf32>, vector<4x8x8xf32> -> vector<4x8x8xf32>
    "tpu.trace_stop"() : () -> ()
    %c0_34 = arith.constant 0 : index
    %c0_35 = arith.constant 0 : index
    %c0_36 = arith.constant 0 : index
    %c0_37 = arith.constant 0 : index
    %21 = vector.load %arg16[%c0_34, %c0_35, %c0_36, %c0_37] : memref<1x4x8x8xf32, #tpu.memory_space<vmem>>, vector<1x4x8x8xf32>
    %22 = vector.shape_cast %21 : vector<1x4x8x8xf32> to vector<4x8x8xf32>
    %23 = vector.shape_cast %20 : vector<4x8x8xf32> to vector<1x4x8x8xf32>
    tpu.vector_store %arg16[%c0_34, %c0_35, %c0_36, %c0_37], %23 {strides = array<i32>} : memref<1x4x8x8xf32, #tpu.memory_space<vmem>>, vector<1x4x8x8xf32>,
    %c0_38 = arith.constant 0 : index
    %c0_39 = arith.constant 0 : index
    %c0_40 = arith.constant 0 : index
    %24 = vector.load %arg3[%c0_38, %c0_39, %c0_40] : memref<1x4x64xf32, #tpu.memory_space<vmem>>, vector<1x4x64xf32>
    %25 = vector.shape_cast %24 : vector<1x4x64xf32> to vector<4x64xf32>
    %26 = arith.truncf %25 : vector<4x64xf32> to vector<4x64xbf16>
    %c0_41 = arith.constant 0 : index
    %c0_42 = arith.constant 0 : index
    %c0_43 = arith.constant 0 : index
    %27 = vector.load %arg8[%c0_41, %c0_42, %c0_43] : memref<9x4x4xbf16, #tpu.memory_space<vmem>>, vector<1x4x4xbf16>
    %28 = vector.shape_cast %27 : vector<1x4x4xbf16> to vector<4x4xbf16>
    %cst_44 = arith.constant dense<0.000000e+00> : vector<4x64xf32>
    %29 = tpu.matmul %28, %26, %cst_44 {dimension_numbers = #tpu.dot_dimension_numbers<[1], [0], [0], [1], [0, 0, 1, 1], [], []>} : vector<4x4xbf16>, vector<4x64xbf16>, vector<4x64xf32> -> vector<4x64xf32>
    %cst_45 = arith.constant 0.000000e+00 : f32
    %30 = vector.broadcast %cst_45 : f32 to vector<4x9xf32>
    %31 = vector.extract_strided_slice %29 {offsets = [0, 0], sizes = [4, 55], strides = [1, 1]} : vector<4x64xf32> to vector<4x55xf32>
    %32 = tpu.concatenate %30, %31 in 1 : vector<4x9xf32>, vector<4x55xf32> -> vector<4x64xf32>
    %c0_46 = arith.constant 0 : index
    %c0_47 = arith.constant 0 : index
    %c0_48 = arith.constant 0 : index
    %33 = vector.load %arg12[%c0_46, %c0_47, %c0_48] : memref<9x1x64xf32, #tpu.memory_space<vmem>>, vector<1x1x64xf32>
    %34 = vector.shape_cast %33 : vector<1x1x64xf32> to vector<1x64xf32>
    %35 = vector.broadcast %34 : vector<1x64xf32> to vector<4x64xf32>
    %36 = arith.mulf %32, %35 : vector<4x64xf32>
    %c1 = arith.constant 1 : index
    %c0_49 = arith.constant 0 : index
    %c0_50 = arith.constant 0 : index
    %37 = vector.load %arg8[%c1, %c0_49, %c0_50] : memref<9x4x4xbf16, #tpu.memory_space<vmem>>, vector<1x4x4xbf16>
    %38 = vector.shape_cast %37 : vector<1x4x4xbf16> to vector<4x4xbf16>
    %cst_51 = arith.constant dense<0.000000e+00> : vector<4x64xf32>
    %39 = tpu.matmul %38, %26, %cst_51 {dimension_numbers = #tpu.dot_dimension_numbers<[1], [0], [0], [1], [0, 0, 1, 1], [], []>} : vector<4x4xbf16>, vector<4x64xbf16>, vector<4x64xf32> -> vector<4x64xf32>
    %cst_52 = arith.constant 0.000000e+00 : f32
    %40 = vector.broadcast %cst_52 : f32 to vector<4x8xf32>
    %41 = vector.extract_strided_slice %39 {offsets = [0, 0], sizes = [4, 56], strides = [1, 1]} : vector<4x64xf32> to vector<4x56xf32>
    %42 = tpu.concatenate %40, %41 in 1 : vector<4x8xf32>, vector<4x56xf32> -> vector<4x64xf32>
    %c1_53 = arith.constant 1 : index
    %c0_54 = arith.constant 0 : index
    %c0_55 = arith.constant 0 : index
    %43 = vector.load %arg12[%c1_53, %c0_54, %c0_55] : memref<9x1x64xf32, #tpu.memory_space<vmem>>, vector<1x1x64xf32>
    %44 = vector.shape_cast %43 : vector<1x1x64xf32> to vector<1x64xf32>
    %45 = vector.broadcast %44 : vector<1x64xf32> to vector<4x64xf32>
    %46 = arith.mulf %42, %45 : vector<4x64xf32>
    %47 = arith.addf %36, %46 : vector<4x64xf32>
    %c2 = arith.constant 2 : index
    %c0_56 = arith.constant 0 : index
    %c0_57 = arith.constant 0 : index
    %48 = vector.load %arg8[%c2, %c0_56, %c0_57] : memref<9x4x4xbf16, #tpu.memory_space<vmem>>, vector<1x4x4xbf16>
    %49 = vector.shape_cast %48 : vector<1x4x4xbf16> to vector<4x4xbf16>
    %cst_58 = arith.constant dense<0.000000e+00> : vector<4x64xf32>
    %50 = tpu.matmul %49, %26, %cst_58 {dimension_numbers = #tpu.dot_dimension_numbers<[1], [0], [0], [1], [0, 0, 1, 1], [], []>} : vector<4x4xbf16>, vector<4x64xbf16>, vector<4x64xf32> -> vector<4x64xf32>
    %cst_59 = arith.constant 0.000000e+00 : f32
    %51 = vector.broadcast %cst_59 : f32 to vector<4x7xf32>
    %52 = vector.extract_strided_slice %50 {offsets = [0, 0], sizes = [4, 57], strides = [1, 1]} : vector<4x64xf32> to vector<4x57xf32>
    %53 = tpu.concatenate %51, %52 in 1 : vector<4x7xf32>, vector<4x57xf32> -> vector<4x64xf32>
    %c2_60 = arith.constant 2 : index
    %c0_61 = arith.constant 0 : index
    %c0_62 = arith.constant 0 : index
    %54 = vector.load %arg12[%c2_60, %c0_61, %c0_62] : memref<9x1x64xf32, #tpu.memory_space<vmem>>, vector<1x1x64xf32>
    %55 = vector.shape_cast %54 : vector<1x1x64xf32> to vector<1x64xf32>
    %56 = vector.broadcast %55 : vector<1x64xf32> to vector<4x64xf32>
    %57 = arith.mulf %53, %56 : vector<4x64xf32>
    %58 = arith.addf %47, %57 : vector<4x64xf32>
    %c3 = arith.constant 3 : index
    %c0_63 = arith.constant 0 : index
    %c0_64 = arith.constant 0 : index
    %59 = vector.load %arg8[%c3, %c0_63, %c0_64] : memref<9x4x4xbf16, #tpu.memory_space<vmem>>, vector<1x4x4xbf16>
    %60 = vector.shape_cast %59 : vector<1x4x4xbf16> to vector<4x4xbf16>
    %cst_65 = arith.constant dense<0.000000e+00> : vector<4x64xf32>
    %61 = tpu.matmul %60, %26, %cst_65 {dimension_numbers = #tpu.dot_dimension_numbers<[1], [0], [0], [1], [0, 0, 1, 1], [], []>} : vector<4x4xbf16>, vector<4x64xbf16>, vector<4x64xf32> -> vector<4x64xf32>
    %cst_66 = arith.constant 0.000000e+00 : f32
    %62 = vector.broadcast %cst_66 : f32 to vector<4x1xf32>
    %63 = vector.extract_strided_slice %61 {offsets = [0, 0], sizes = [4, 63], strides = [1, 1]} : vector<4x64xf32> to vector<4x63xf32>
    %64 = tpu.concatenate %62, %63 in 1 : vector<4x1xf32>, vector<4x63xf32> -> vector<4x64xf32>
    %c3_67 = arith.constant 3 : index
    %c0_68 = arith.constant 0 : index
    %c0_69 = arith.constant 0 : index
    %65 = vector.load %arg12[%c3_67, %c0_68, %c0_69] : memref<9x1x64xf32, #tpu.memory_space<vmem>>, vector<1x1x64xf32>
    %66 = vector.shape_cast %65 : vector<1x1x64xf32> to vector<1x64xf32>
    %67 = vector.broadcast %66 : vector<1x64xf32> to vector<4x64xf32>
    %68 = arith.mulf %64, %67 : vector<4x64xf32>
    %69 = arith.addf %58, %68 : vector<4x64xf32>
    %c4 = arith.constant 4 : index
    %c0_70 = arith.constant 0 : index
    %c0_71 = arith.constant 0 : index
    %70 = vector.load %arg8[%c4, %c0_70, %c0_71] : memref<9x4x4xbf16, #tpu.memory_space<vmem>>, vector<1x4x4xbf16>
    %71 = vector.shape_cast %70 : vector<1x4x4xbf16> to vector<4x4xbf16>
    %cst_72 = arith.constant dense<0.000000e+00> : vector<4x64xf32>
    %72 = tpu.matmul %71, %26, %cst_72 {dimension_numbers = #tpu.dot_dimension_numbers<[1], [0], [0], [1], [0, 0, 1, 1], [], []>} : vector<4x4xbf16>, vector<4x64xbf16>, vector<4x64xf32> -> vector<4x64xf32>
    %c4_73 = arith.constant 4 : index
    %c0_74 = arith.constant 0 : index
    %c0_75 = arith.constant 0 : index
    %73 = vector.load %arg12[%c4_73, %c0_74, %c0_75] : memref<9x1x64xf32, #tpu.memory_space<vmem>>, vector<1x1x64xf32>
    %74 = vector.shape_cast %73 : vector<1x1x64xf32> to vector<1x64xf32>
    %75 = vector.broadcast %74 : vector<1x64xf32> to vector<4x64xf32>
    %76 = arith.mulf %72, %75 : vector<4x64xf32>
    %77 = arith.addf %69, %76 : vector<4x64xf32>
    %c5 = arith.constant 5 : index
    %c0_76 = arith.constant 0 : index
    %c0_77 = arith.constant 0 : index
    %78 = vector.load %arg8[%c5, %c0_76, %c0_77] : memref<9x4x4xbf16, #tpu.memory_space<vmem>>, vector<1x4x4xbf16>
    %79 = vector.shape_cast %78 : vector<1x4x4xbf16> to vector<4x4xbf16>
    %cst_78 = arith.constant dense<0.000000e+00> : vector<4x64xf32>
    %80 = tpu.matmul %79, %26, %cst_78 {dimension_numbers = #tpu.dot_dimension_numbers<[1], [0], [0], [1], [0, 0, 1, 1], [], []>} : vector<4x4xbf16>, vector<4x64xbf16>, vector<4x64xf32> -> vector<4x64xf32>
    %81 = vector.extract_strided_slice %80 {offsets = [0, 1], sizes = [4, 63], strides = [1, 1]} : vector<4x64xf32> to vector<4x63xf32>
    %cst_79 = arith.constant 0.000000e+00 : f32
    %82 = vector.broadcast %cst_79 : f32 to vector<4x1xf32>
    %83 = tpu.concatenate %81, %82 in 1 : vector<4x63xf32>, vector<4x1xf32> -> vector<4x64xf32>
    %c5_80 = arith.constant 5 : index
    %c0_81 = arith.constant 0 : index
    %c0_82 = arith.constant 0 : index
    %84 = vector.load %arg12[%c5_80, %c0_81, %c0_82] : memref<9x1x64xf32, #tpu.memory_space<vmem>>, vector<1x1x64xf32>
    %85 = vector.shape_cast %84 : vector<1x1x64xf32> to vector<1x64xf32>
    %86 = vector.broadcast %85 : vector<1x64xf32> to vector<4x64xf32>
    %87 = arith.mulf %83, %86 : vector<4x64xf32>
    %88 = arith.addf %77, %87 : vector<4x64xf32>
    %c6 = arith.constant 6 : index
    %c0_83 = arith.constant 0 : index
    %c0_84 = arith.constant 0 : index
    %89 = vector.load %arg8[%c6, %c0_83, %c0_84] : memref<9x4x4xbf16, #tpu.memory_space<vmem>>, vector<1x4x4xbf16>
    %90 = vector.shape_cast %89 : vector<1x4x4xbf16> to vector<4x4xbf16>
    %cst_85 = arith.constant dense<0.000000e+00> : vector<4x64xf32>
    %91 = tpu.matmul %90, %26, %cst_85 {dimension_numbers = #tpu.dot_dimension_numbers<[1], [0], [0], [1], [0, 0, 1, 1], [], []>} : vector<4x4xbf16>, vector<4x64xbf16>, vector<4x64xf32> -> vector<4x64xf32>
    %92 = vector.extract_strided_slice %91 {offsets = [0, 7], sizes = [4, 57], strides = [1, 1]} : vector<4x64xf32> to vector<4x57xf32>
    %cst_86 = arith.constant 0.000000e+00 : f32
    %93 = vector.broadcast %cst_86 : f32 to vector<4x7xf32>
    %94 = tpu.concatenate %92, %93 in 1 : vector<4x57xf32>, vector<4x7xf32> -> vector<4x64xf32>
    %c6_87 = arith.constant 6 : index
    %c0_88 = arith.constant 0 : index
    %c0_89 = arith.constant 0 : index
    %95 = vector.load %arg12[%c6_87, %c0_88, %c0_89] : memref<9x1x64xf32, #tpu.memory_space<vmem>>, vector<1x1x64xf32>
    %96 = vector.shape_cast %95 : vector<1x1x64xf32> to vector<1x64xf32>
    %97 = vector.broadcast %96 : vector<1x64xf32> to vector<4x64xf32>
    %98 = arith.mulf %94, %97 : vector<4x64xf32>
    %99 = arith.addf %88, %98 : vector<4x64xf32>
    %c7 = arith.constant 7 : index
    %c0_90 = arith.constant 0 : index
    %c0_91 = arith.constant 0 : index
    %100 = vector.load %arg8[%c7, %c0_90, %c0_91] : memref<9x4x4xbf16, #tpu.memory_space<vmem>>, vector<1x4x4xbf16>
    %101 = vector.shape_cast %100 : vector<1x4x4xbf16> to vector<4x4xbf16>
    %cst_92 = arith.constant dense<0.000000e+00> : vector<4x64xf32>
    %102 = tpu.matmul %101, %26, %cst_92 {dimension_numbers = #tpu.dot_dimension_numbers<[1], [0], [0], [1], [0, 0, 1, 1], [], []>} : vector<4x4xbf16>, vector<4x64xbf16>, vector<4x64xf32> -> vector<4x64xf32>
    %103 = vector.extract_strided_slice %102 {offsets = [0, 8], sizes = [4, 56], strides = [1, 1]} : vector<4x64xf32> to vector<4x56xf32>
    %cst_93 = arith.constant 0.000000e+00 : f32
    %104 = vector.broadcast %cst_93 : f32 to vector<4x8xf32>
    %105 = tpu.concatenate %103, %104 in 1 : vector<4x56xf32>, vector<4x8xf32> -> vector<4x64xf32>
    %c7_94 = arith.constant 7 : index
    %c0_95 = arith.constant 0 : index
    %c0_96 = arith.constant 0 : index
    %106 = vector.load %arg12[%c7_94, %c0_95, %c0_96] : memref<9x1x64xf32, #tpu.memory_space<vmem>>, vector<1x1x64xf32>
    %107 = vector.shape_cast %106 : vector<1x1x64xf32> to vector<1x64xf32>
    %108 = vector.broadcast %107 : vector<1x64xf32> to vector<4x64xf32>
    %109 = arith.mulf %105, %108 : vector<4x64xf32>
    %110 = arith.addf %99, %109 : vector<4x64xf32>
    %c8 = arith.constant 8 : index
    %c0_97 = arith.constant 0 : index
    %c0_98 = arith.constant 0 : index
    %111 = vector.load %arg8[%c8, %c0_97, %c0_98] : memref<9x4x4xbf16, #tpu.memory_space<vmem>>, vector<1x4x4xbf16>
    %112 = vector.shape_cast %111 : vector<1x4x4xbf16> to vector<4x4xbf16>
    %cst_99 = arith.constant dense<0.000000e+00> : vector<4x64xf32>
    %113 = tpu.matmul %112, %26, %cst_99 {dimension_numbers = #tpu.dot_dimension_numbers<[1], [0], [0], [1], [0, 0, 1, 1], [], []>} : vector<4x4xbf16>, vector<4x64xbf16>, vector<4x64xf32> -> vector<4x64xf32>
    %114 = vector.extract_strided_slice %113 {offsets = [0, 9], sizes = [4, 55], strides = [1, 1]} : vector<4x64xf32> to vector<4x55xf32>
    %cst_100 = arith.constant 0.000000e+00 : f32
    %115 = vector.broadcast %cst_100 : f32 to vector<4x9xf32>
    %116 = tpu.concatenate %114, %115 in 1 : vector<4x55xf32>, vector<4x9xf32> -> vector<4x64xf32>
    %c8_101 = arith.constant 8 : index
    %c0_102 = arith.constant 0 : index
    %c0_103 = arith.constant 0 : index
    %117 = vector.load %arg12[%c8_101, %c0_102, %c0_103] : memref<9x1x64xf32, #tpu.memory_space<vmem>>, vector<1x1x64xf32>
    %118 = vector.shape_cast %117 : vector<1x1x64xf32> to vector<1x64xf32>
    %119 = vector.broadcast %118 : vector<1x64xf32> to vector<4x64xf32>
    %120 = arith.mulf %116, %119 : vector<4x64xf32>
    %121 = arith.addf %110, %120 : vector<4x64xf32>
    %c0_104 = arith.constant 0 : index
    %c0_105 = arith.constant 0 : index
    %122 = vector.load %arg9[%c0_104, %c0_105] : memref<4x1xf32, #tpu.memory_space<vmem>>, vector<4x1xf32>
    %123 = vector.broadcast %122 : vector<4x1xf32> to vector<4x64xf32>
    %124 = arith.addf %121, %123 : vector<4x64xf32>
    %cst_106 = arith.constant 0.707106769 : f32
    %125 = vector.broadcast %cst_106 : f32 to vector<4x64xf32>
    %126 = arith.mulf %124, %125 : vector<4x64xf32>
    %127 = math.absf %126 : vector<4x64xf32>
    %cst_107 = arith.constant 0.327591091 : f32
    %128 = vector.broadcast %cst_107 : f32 to vector<4x64xf32>
    %129 = arith.mulf %128, %127 : vector<4x64xf32>
    %cst_108 = arith.constant 1.000000e+00 : f32
    %130 = vector.broadcast %cst_108 : f32 to vector<4x64xf32>
    %131 = arith.addf %130, %129 : vector<4x64xf32>
    %cst_109 = arith.constant 1.000000e+00 : f32
    %132 = vector.broadcast %cst_109 : f32 to vector<4x64xf32>
    %133 = arith.divf %132, %131 : vector<4x64xf32>
    %cst_110 = arith.constant 1.06140542 : f32
    %134 = vector.broadcast %cst_110 : f32 to vector<4x64xf32>
    %135 = arith.mulf %133, %134 : vector<4x64xf32>
    %cst_111 = arith.constant -1.45315206 : f32
    %136 = vector.broadcast %cst_111 : f32 to vector<4x64xf32>
    %137 = arith.addf %136, %135 : vector<4x64xf32>
    %138 = arith.mulf %133, %137 : vector<4x64xf32>
    %cst_112 = arith.constant 1.42141378 : f32
    %139 = vector.broadcast %cst_112 : f32 to vector<4x64xf32>
    %140 = arith.addf %139, %138 : vector<4x64xf32>
    %141 = arith.mulf %133, %140 : vector<4x64xf32>
    %cst_113 = arith.constant -0.284496725 : f32
    %142 = vector.broadcast %cst_113 : f32 to vector<4x64xf32>
    %143 = arith.addf %142, %141 : vector<4x64xf32>
    %144 = arith.mulf %133, %143 : vector<4x64xf32>
    %cst_114 = arith.constant 0.254829586 : f32
    %145 = vector.broadcast %cst_114 : f32 to vector<4x64xf32>
    %146 = arith.addf %145, %144 : vector<4x64xf32>
    %147 = arith.mulf %133, %146 : vector<4x64xf32>
    %cst_115 = arith.constant 0.000000e+00 : f32
    %148 = vector.broadcast %cst_115 : f32 to vector<4x64xf32>
    %149 = arith.subf %148, %127 : vector<4x64xf32>
    %150 = arith.mulf %149, %127 : vector<4x64xf32>
    %151 = math.exp %150 : vector<4x64xf32>
    %152 = arith.mulf %147, %151 : vector<4x64xf32>
    %cst_116 = arith.constant 1.000000e+00 : f32
    %153 = vector.broadcast %cst_116 : f32 to vector<4x64xf32>
    %154 = arith.subf %153, %152 : vector<4x64xf32>
    %cst_117 = arith.constant 0.000000e+00 : f32
    %155 = vector.broadcast %cst_117 : f32 to vector<4x64xf32>
    %156 = arith.cmpf olt, %126, %155 : vector<4x64xf32>
    %cst_118 = arith.constant 0.000000e+00 : f32
    %157 = vector.broadcast %cst_118 : f32 to vector<4x64xf32>
    %158 = arith.subf %157, %154 : vector<4x64xf32>
    %159 = arith.select %156, %158, %154 : vector<4x64xi1>, vector<4x64xf32>
    %cst_119 = arith.constant 5.000000e-01 : f32
    %160 = vector.broadcast %cst_119 : f32 to vector<4x64xf32>
    %161 = arith.mulf %160, %124 : vector<4x64xf32>
    %cst_120 = arith.constant 1.000000e+00 : f32
    %162 = vector.broadcast %cst_120 : f32 to vector<4x64xf32>
    %163 = arith.addf %162, %159 : vector<4x64xf32>
    %164 = arith.mulf %161, %163 : vector<4x64xf32>
    %165 = arith.truncf %164 : vector<4x64xf32> to vector<4x64xbf16>
    %c0_121 = arith.constant 0 : index
    %c0_122 = arith.constant 0 : index
    %c0_123 = arith.constant 0 : index
    %166 = vector.load %arg10[%c0_121, %c0_122, %c0_123] : memref<9x4x4xbf16, #tpu.memory_space<vmem>>, vector<1x4x4xbf16>
    %167 = vector.shape_cast %166 : vector<1x4x4xbf16> to vector<4x4xbf16>
    %cst_124 = arith.constant dense<0.000000e+00> : vector<4x64xf32>
    %168 = tpu.matmul %167, %165, %cst_124 {dimension_numbers = #tpu.dot_dimension_numbers<[1], [0], [0], [1], [0, 0, 1, 1], [], []>} : vector<4x4xbf16>, vector<4x64xbf16>, vector<4x64xf32> -> vector<4x64xf32>
    %cst_125 = arith.constant 0.000000e+00 : f32
    %169 = vector.broadcast %cst_125 : f32 to vector<4x9xf32>
    %170 = vector.extract_strided_slice %168 {offsets = [0, 0], sizes = [4, 55], strides = [1, 1]} : vector<4x64xf32> to vector<4x55xf32>
    %171 = tpu.concatenate %169, %170 in 1 : vector<4x9xf32>, vector<4x55xf32> -> vector<4x64xf32>
    %c0_126 = arith.constant 0 : index
    %c0_127 = arith.constant 0 : index
    %c0_128 = arith.constant 0 : index
    %172 = vector.load %arg12[%c0_126, %c0_127, %c0_128] : memref<9x1x64xf32, #tpu.memory_space<vmem>>, vector<1x1x64xf32>
    %173 = vector.shape_cast %172 : vector<1x1x64xf32> to vector<1x64xf32>
    %174 = vector.broadcast %173 : vector<1x64xf32> to vector<4x64xf32>
    %175 = arith.mulf %171, %174 : vector<4x64xf32>
    %c1_129 = arith.constant 1 : index
    %c0_130 = arith.constant 0 : index
    %c0_131 = arith.constant 0 : index
    %176 = vector.load %arg10[%c1_129, %c0_130, %c0_131] : memref<9x4x4xbf16, #tpu.memory_space<vmem>>, vector<1x4x4xbf16>
    %177 = vector.shape_cast %176 : vector<1x4x4xbf16> to vector<4x4xbf16>
    %cst_132 = arith.constant dense<0.000000e+00> : vector<4x64xf32>
    %178 = tpu.matmul %177, %165, %cst_132 {dimension_numbers = #tpu.dot_dimension_numbers<[1], [0], [0], [1], [0, 0, 1, 1], [], []>} : vector<4x4xbf16>, vector<4x64xbf16>, vector<4x64xf32> -> vector<4x64xf32>
    %cst_133 = arith.constant 0.000000e+00 : f32
    %179 = vector.broadcast %cst_133 : f32 to vector<4x8xf32>
    %180 = vector.extract_strided_slice %178 {offsets = [0, 0], sizes = [4, 56], strides = [1, 1]} : vector<4x64xf32> to vector<4x56xf32>
    %181 = tpu.concatenate %179, %180 in 1 : vector<4x8xf32>, vector<4x56xf32> -> vector<4x64xf32>
    %c1_134 = arith.constant 1 : index
    %c0_135 = arith.constant 0 : index
    %c0_136 = arith.constant 0 : index
    %182 = vector.load %arg12[%c1_134, %c0_135, %c0_136] : memref<9x1x64xf32, #tpu.memory_space<vmem>>, vector<1x1x64xf32>
    %183 = vector.shape_cast %182 : vector<1x1x64xf32> to vector<1x64xf32>
    %184 = vector.broadcast %183 : vector<1x64xf32> to vector<4x64xf32>
    %185 = arith.mulf %181, %184 : vector<4x64xf32>
    %186 = arith.addf %175, %185 : vector<4x64xf32>
    %c2_137 = arith.constant 2 : index
    %c0_138 = arith.constant 0 : index
    %c0_139 = arith.constant 0 : index
    %187 = vector.load %arg10[%c2_137, %c0_138, %c0_139] : memref<9x4x4xbf16, #tpu.memory_space<vmem>>, vector<1x4x4xbf16>
    %188 = vector.shape_cast %187 : vector<1x4x4xbf16> to vector<4x4xbf16>
    %cst_140 = arith.constant dense<0.000000e+00> : vector<4x64xf32>
    %189 = tpu.matmul %188, %165, %cst_140 {dimension_numbers = #tpu.dot_dimension_numbers<[1], [0], [0], [1], [0, 0, 1, 1], [], []>} : vector<4x4xbf16>, vector<4x64xbf16>, vector<4x64xf32> -> vector<4x64xf32>
    %cst_141 = arith.constant 0.000000e+00 : f32
    %190 = vector.broadcast %cst_141 : f32 to vector<4x7xf32>
    %191 = vector.extract_strided_slice %189 {offsets = [0, 0], sizes = [4, 57], strides = [1, 1]} : vector<4x64xf32> to vector<4x57xf32>
    %192 = tpu.concatenate %190, %191 in 1 : vector<4x7xf32>, vector<4x57xf32> -> vector<4x64xf32>
    %c2_142 = arith.constant 2 : index
    %c0_143 = arith.constant 0 : index
    %c0_144 = arith.constant 0 : index
    %193 = vector.load %arg12[%c2_142, %c0_143, %c0_144] : memref<9x1x64xf32, #tpu.memory_space<vmem>>, vector<1x1x64xf32>
    %194 = vector.shape_cast %193 : vector<1x1x64xf32> to vector<1x64xf32>
    %195 = vector.broadcast %194 : vector<1x64xf32> to vector<4x64xf32>
    %196 = arith.mulf %192, %195 : vector<4x64xf32>
    %197 = arith.addf %186, %196 : vector<4x64xf32>
    %c3_145 = arith.constant 3 : index
    %c0_146 = arith.constant 0 : index
    %c0_147 = arith.constant 0 : index
    %198 = vector.load %arg10[%c3_145, %c0_146, %c0_147] : memref<9x4x4xbf16, #tpu.memory_space<vmem>>, vector<1x4x4xbf16>
    %199 = vector.shape_cast %198 : vector<1x4x4xbf16> to vector<4x4xbf16>
    %cst_148 = arith.constant dense<0.000000e+00> : vector<4x64xf32>
    %200 = tpu.matmul %199, %165, %cst_148 {dimension_numbers = #tpu.dot_dimension_numbers<[1], [0], [0], [1], [0, 0, 1, 1], [], []>} : vector<4x4xbf16>, vector<4x64xbf16>, vector<4x64xf32> -> vector<4x64xf32>
    %cst_149 = arith.constant 0.000000e+00 : f32
    %201 = vector.broadcast %cst_149 : f32 to vector<4x1xf32>
    %202 = vector.extract_strided_slice %200 {offsets = [0, 0], sizes = [4, 63], strides = [1, 1]} : vector<4x64xf32> to vector<4x63xf32>
    %203 = tpu.concatenate %201, %202 in 1 : vector<4x1xf32>, vector<4x63xf32> -> vector<4x64xf32>
    %c3_150 = arith.constant 3 : index
    %c0_151 = arith.constant 0 : index
    %c0_152 = arith.constant 0 : index
    %204 = vector.load %arg12[%c3_150, %c0_151, %c0_152] : memref<9x1x64xf32, #tpu.memory_space<vmem>>, vector<1x1x64xf32>
    %205 = vector.shape_cast %204 : vector<1x1x64xf32> to vector<1x64xf32>
    %206 = vector.broadcast %205 : vector<1x64xf32> to vector<4x64xf32>
    %207 = arith.mulf %203, %206 : vector<4x64xf32>
    %208 = arith.addf %197, %207 : vector<4x64xf32>
    %c4_153 = arith.constant 4 : index
    %c0_154 = arith.constant 0 : index
    %c0_155 = arith.constant 0 : index
    %209 = vector.load %arg10[%c4_153, %c0_154, %c0_155] : memref<9x4x4xbf16, #tpu.memory_space<vmem>>, vector<1x4x4xbf16>
    %210 = vector.shape_cast %209 : vector<1x4x4xbf16> to vector<4x4xbf16>
    %cst_156 = arith.constant dense<0.000000e+00> : vector<4x64xf32>
    %211 = tpu.matmul %210, %165, %cst_156 {dimension_numbers = #tpu.dot_dimension_numbers<[1], [0], [0], [1], [0, 0, 1, 1], [], []>} : vector<4x4xbf16>, vector<4x64xbf16>, vector<4x64xf32> -> vector<4x64xf32>
    %c4_157 = arith.constant 4 : index
    %c0_158 = arith.constant 0 : index
    %c0_159 = arith.constant 0 : index
    %212 = vector.load %arg12[%c4_157, %c0_158, %c0_159] : memref<9x1x64xf32, #tpu.memory_space<vmem>>, vector<1x1x64xf32>
    %213 = vector.shape_cast %212 : vector<1x1x64xf32> to vector<1x64xf32>
    %214 = vector.broadcast %213 : vector<1x64xf32> to vector<4x64xf32>
    %215 = arith.mulf %211, %214 : vector<4x64xf32>
    %216 = arith.addf %208, %215 : vector<4x64xf32>
    %c5_160 = arith.constant 5 : index
    %c0_161 = arith.constant 0 : index
    %c0_162 = arith.constant 0 : index
    %217 = vector.load %arg10[%c5_160, %c0_161, %c0_162] : memref<9x4x4xbf16, #tpu.memory_space<vmem>>, vector<1x4x4xbf16>
    %218 = vector.shape_cast %217 : vector<1x4x4xbf16> to vector<4x4xbf16>
    %cst_163 = arith.constant dense<0.000000e+00> : vector<4x64xf32>
    %219 = tpu.matmul %218, %165, %cst_163 {dimension_numbers = #tpu.dot_dimension_numbers<[1], [0], [0], [1], [0, 0, 1, 1], [], []>} : vector<4x4xbf16>, vector<4x64xbf16>, vector<4x64xf32> -> vector<4x64xf32>
    %220 = vector.extract_strided_slice %219 {offsets = [0, 1], sizes = [4, 63], strides = [1, 1]} : vector<4x64xf32> to vector<4x63xf32>
    %cst_164 = arith.constant 0.000000e+00 : f32
    %221 = vector.broadcast %cst_164 : f32 to vector<4x1xf32>
    %222 = tpu.concatenate %220, %221 in 1 : vector<4x63xf32>, vector<4x1xf32> -> vector<4x64xf32>
    %c5_165 = arith.constant 5 : index
    %c0_166 = arith.constant 0 : index
    %c0_167 = arith.constant 0 : index
    %223 = vector.load %arg12[%c5_165, %c0_166, %c0_167] : memref<9x1x64xf32, #tpu.memory_space<vmem>>, vector<1x1x64xf32>
    %224 = vector.shape_cast %223 : vector<1x1x64xf32> to vector<1x64xf32>
    %225 = vector.broadcast %224 : vector<1x64xf32> to vector<4x64xf32>
    %226 = arith.mulf %222, %225 : vector<4x64xf32>
    %227 = arith.addf %216, %226 : vector<4x64xf32>
    %c6_168 = arith.constant 6 : index
    %c0_169 = arith.constant 0 : index
    %c0_170 = arith.constant 0 : index
    %228 = vector.load %arg10[%c6_168, %c0_169, %c0_170] : memref<9x4x4xbf16, #tpu.memory_space<vmem>>, vector<1x4x4xbf16>
    %229 = vector.shape_cast %228 : vector<1x4x4xbf16> to vector<4x4xbf16>
    %cst_171 = arith.constant dense<0.000000e+00> : vector<4x64xf32>
    %230 = tpu.matmul %229, %165, %cst_171 {dimension_numbers = #tpu.dot_dimension_numbers<[1], [0], [0], [1], [0, 0, 1, 1], [], []>} : vector<4x4xbf16>, vector<4x64xbf16>, vector<4x64xf32> -> vector<4x64xf32>
    %231 = vector.extract_strided_slice %230 {offsets = [0, 7], sizes = [4, 57], strides = [1, 1]} : vector<4x64xf32> to vector<4x57xf32>
    %cst_172 = arith.constant 0.000000e+00 : f32
    %232 = vector.broadcast %cst_172 : f32 to vector<4x7xf32>
    %233 = tpu.concatenate %231, %232 in 1 : vector<4x57xf32>, vector<4x7xf32> -> vector<4x64xf32>
    %c6_173 = arith.constant 6 : index
    %c0_174 = arith.constant 0 : index
    %c0_175 = arith.constant 0 : index
    %234 = vector.load %arg12[%c6_173, %c0_174, %c0_175] : memref<9x1x64xf32, #tpu.memory_space<vmem>>, vector<1x1x64xf32>
    %235 = vector.shape_cast %234 : vector<1x1x64xf32> to vector<1x64xf32>
    %236 = vector.broadcast %235 : vector<1x64xf32> to vector<4x64xf32>
    %237 = arith.mulf %233, %236 : vector<4x64xf32>
    %238 = arith.addf %227, %237 : vector<4x64xf32>
    %c7_176 = arith.constant 7 : index
    %c0_177 = arith.constant 0 : index
    %c0_178 = arith.constant 0 : index
    %239 = vector.load %arg10[%c7_176, %c0_177, %c0_178] : memref<9x4x4xbf16, #tpu.memory_space<vmem>>, vector<1x4x4xbf16>
    %240 = vector.shape_cast %239 : vector<1x4x4xbf16> to vector<4x4xbf16>
    %cst_179 = arith.constant dense<0.000000e+00> : vector<4x64xf32>
    %241 = tpu.matmul %240, %165, %cst_179 {dimension_numbers = #tpu.dot_dimension_numbers<[1], [0], [0], [1], [0, 0, 1, 1], [], []>} : vector<4x4xbf16>, vector<4x64xbf16>, vector<4x64xf32> -> vector<4x64xf32>
    %242 = vector.extract_strided_slice %241 {offsets = [0, 8], sizes = [4, 56], strides = [1, 1]} : vector<4x64xf32> to vector<4x56xf32>
    %cst_180 = arith.constant 0.000000e+00 : f32
    %243 = vector.broadcast %cst_180 : f32 to vector<4x8xf32>
    %244 = tpu.concatenate %242, %243 in 1 : vector<4x56xf32>, vector<4x8xf32> -> vector<4x64xf32>
    %c7_181 = arith.constant 7 : index
    %c0_182 = arith.constant 0 : index
    %c0_183 = arith.constant 0 : index
    %245 = vector.load %arg12[%c7_181, %c0_182, %c0_183] : memref<9x1x64xf32, #tpu.memory_space<vmem>>, vector<1x1x64xf32>
    %246 = vector.shape_cast %245 : vector<1x1x64xf32> to vector<1x64xf32>
    %247 = vector.broadcast %246 : vector<1x64xf32> to vector<4x64xf32>
    %248 = arith.mulf %244, %247 : vector<4x64xf32>
    %249 = arith.addf %238, %248 : vector<4x64xf32>
    %c8_184 = arith.constant 8 : index
    %c0_185 = arith.constant 0 : index
    %c0_186 = arith.constant 0 : index
    %250 = vector.load %arg10[%c8_184, %c0_185, %c0_186] : memref<9x4x4xbf16, #tpu.memory_space<vmem>>, vector<1x4x4xbf16>
    %251 = vector.shape_cast %250 : vector<1x4x4xbf16> to vector<4x4xbf16>
    %cst_187 = arith.constant dense<0.000000e+00> : vector<4x64xf32>
    %252 = tpu.matmul %251, %165, %cst_187 {dimension_numbers = #tpu.dot_dimension_numbers<[1], [0], [0], [1], [0, 0, 1, 1], [], []>} : vector<4x4xbf16>, vector<4x64xbf16>, vector<4x64xf32> -> vector<4x64xf32>
    %253 = vector.extract_strided_slice %252 {offsets = [0, 9], sizes = [4, 55], strides = [1, 1]} : vector<4x64xf32> to vector<4x55xf32>
    %cst_188 = arith.constant 0.000000e+00 : f32
    %254 = vector.broadcast %cst_188 : f32 to vector<4x9xf32>
    %255 = tpu.concatenate %253, %254 in 1 : vector<4x55xf32>, vector<4x9xf32> -> vector<4x64xf32>
    %c8_189 = arith.constant 8 : index
    %c0_190 = arith.constant 0 : index
    %c0_191 = arith.constant 0 : index
    %256 = vector.load %arg12[%c8_189, %c0_190, %c0_191] : memref<9x1x64xf32, #tpu.memory_space<vmem>>, vector<1x1x64xf32>
    %257 = vector.shape_cast %256 : vector<1x1x64xf32> to vector<1x64xf32>
    %258 = vector.broadcast %257 : vector<1x64xf32> to vector<4x64xf32>
    %259 = arith.mulf %255, %258 : vector<4x64xf32>
    %260 = arith.addf %249, %259 : vector<4x64xf32>
    %c0_192 = arith.constant 0 : index
    %c0_193 = arith.constant 0 : index
    %261 = vector.load %arg11[%c0_192, %c0_193] : memref<4x1xf32, #tpu.memory_space<vmem>>, vector<4x1xf32>
    %262 = vector.broadcast %261 : vector<4x1xf32> to vector<4x64xf32>
    %263 = arith.addf %260, %262 : vector<4x64xf32>
    %c0_194 = arith.constant 0 : index
    %c0_195 = arith.constant 0 : index
    %c0_196 = arith.constant 0 : index
    %264 = vector.load %arg17[%c0_194, %c0_195, %c0_196] : memref<1x4x64xf32, #tpu.memory_space<vmem>>, vector<1x4x64xf32>
    %265 = vector.shape_cast %264 : vector<1x4x64xf32> to vector<4x64xf32>
    %266 = vector.shape_cast %263 : vector<4x64xf32> to vector<1x4x64xf32>
    tpu.vector_store %arg17[%c0_194, %c0_195, %c0_196], %266 {strides = array<i32>} : memref<1x4x64xf32, #tpu.memory_space<vmem>>, vector<1x4x64xf32>,
    return
  }
  func.func @transform_0(%arg0: i32) -> (i32, i32, i32, i32) {
    %c0_i32 = arith.constant 0 : i32
    %c0_i32_0 = arith.constant 0 : i32
    %c0_i32_1 = arith.constant 0 : i32
    %c0_i32_2 = arith.constant 0 : i32
    return %arg0, %c0_i32, %c0_i32_0, %c0_i32_1 : i32, i32, i32, i32
  }
  func.func @transform_1(%arg0: i32) -> (i32, i32, i32, i32) {
    %c0_i32 = arith.constant 0 : i32
    %c0_i32_0 = arith.constant 0 : i32
    %c0_i32_1 = arith.constant 0 : i32
    %c0_i32_2 = arith.constant 0 : i32
    return %arg0, %c0_i32, %c0_i32_0, %c0_i32_1 : i32, i32, i32, i32
  }
  func.func @transform_2(%arg0: i32) -> (i32, i32, i32) {
    %c0_i32 = arith.constant 0 : i32
    %c0_i32_0 = arith.constant 0 : i32
    %c0_i32_1 = arith.constant 0 : i32
    return %arg0, %c0_i32, %c0_i32_0 : i32, i32, i32
  }
  func.func @transform_3(%arg0: i32) -> (i32, i32, i32) {
    %c0_i32 = arith.constant 0 : i32
    %c0_i32_0 = arith.constant 0 : i32
    %c0_i32_1 = arith.constant 0 : i32
    %c0_i32_2 = arith.constant 0 : i32
    return %c0_i32, %c0_i32_0, %c0_i32_1 : i32, i32, i32
  }
  func.func @transform_4(%arg0: i32) -> (i32, i32, i32) {
    %c0_i32 = arith.constant 0 : i32
    %c0_i32_0 = arith.constant 0 : i32
    %c0_i32_1 = arith.constant 0 : i32
    %c0_i32_2 = arith.constant 0 : i32
    return %c0_i32, %c0_i32_0, %c0_i32_1 : i32, i32, i32
  }
  func.func @transform_5(%arg0: i32) -> (i32, i32, i32) {
    %c0_i32 = arith.constant 0 : i32
    %c0_i32_0 = arith.constant 0 : i32
    %c0_i32_1 = arith.constant 0 : i32
    %c0_i32_2 = arith.constant 0 : i32
    return %c0_i32, %c0_i32_0, %c0_i32_1 : i32, i32, i32
  }
  func.func @transform_6(%arg0: i32) -> (i32, i32, i32) {
    %c0_i32 = arith.constant 0 : i32
    %c0_i32_0 = arith.constant 0 : i32
    %c0_i32_1 = arith.constant 0 : i32
    %c0_i32_2 = arith.constant 0 : i32
    return %c0_i32, %c0_i32_0, %c0_i32_1 : i32, i32, i32
  }
  func.func @transform_7(%arg0: i32) -> (i32, i32, i32) {
    %c0_i32 = arith.constant 0 : i32
    %c0_i32_0 = arith.constant 0 : i32
    %c0_i32_1 = arith.constant 0 : i32
    %c0_i32_2 = arith.constant 0 : i32
    return %c0_i32, %c0_i32_0, %c0_i32_1 : i32, i32, i32
  }
  func.func @transform_8(%arg0: i32) -> (i32, i32) {
    %c0_i32 = arith.constant 0 : i32
    %c0_i32_0 = arith.constant 0 : i32
    %c0_i32_1 = arith.constant 0 : i32
    return %c0_i32, %c0_i32_0 : i32, i32
  }
  func.func @transform_9(%arg0: i32) -> (i32, i32, i32) {
    %c0_i32 = arith.constant 0 : i32
    %c0_i32_0 = arith.constant 0 : i32
    %c0_i32_1 = arith.constant 0 : i32
    %c0_i32_2 = arith.constant 0 : i32
    return %c0_i32, %c0_i32_0, %c0_i32_1 : i32, i32, i32
  }
  func.func @transform_10(%arg0: i32) -> (i32, i32) {
    %c0_i32 = arith.constant 0 : i32
    %c0_i32_0 = arith.constant 0 : i32
    %c0_i32_1 = arith.constant 0 : i32
    return %c0_i32, %c0_i32_0 : i32, i32
  }
  func.func @transform_11(%arg0: i32) -> (i32, i32, i32) {
    %c0_i32 = arith.constant 0 : i32
    %c0_i32_0 = arith.constant 0 : i32
    %c0_i32_1 = arith.constant 0 : i32
    %c0_i32_2 = arith.constant 0 : i32
    return %c0_i32, %c0_i32_0, %c0_i32_1 : i32, i32, i32
  }
  func.func @transform_12(%arg0: i32) -> (i32, i32, i32, i32) {
    %c0_i32 = arith.constant 0 : i32
    %c0_i32_0 = arith.constant 0 : i32
    %c0_i32_1 = arith.constant 0 : i32
    %c0_i32_2 = arith.constant 0 : i32
    return %arg0, %c0_i32, %c0_i32_0, %c0_i32_1 : i32, i32, i32, i32
  }
  func.func @transform_13(%arg0: i32) -> (i32, i32, i32, i32) {
    %c0_i32 = arith.constant 0 : i32
    %c0_i32_0 = arith.constant 0 : i32
    %c0_i32_1 = arith.constant 0 : i32
    %c0_i32_2 = arith.constant 0 : i32
    return %arg0, %c0_i32, %c0_i32_0, %c0_i32_1 : i32, i32, i32, i32
  }
  func.func @transform_14(%arg0: i32) -> (i32, i32, i32, i32) {
    %c0_i32 = arith.constant 0 : i32
    %c0_i32_0 = arith.constant 0 : i32
    %c0_i32_1 = arith.constant 0 : i32
    %c0_i32_2 = arith.constant 0 : i32
    return %arg0, %c0_i32, %c0_i32_0, %c0_i32_1 : i32, i32, i32, i32
  }
  func.func @transform_15(%arg0: i32) -> (i32, i32, i32, i32) {
    %c0_i32 = arith.constant 0 : i32
    %c0_i32_0 = arith.constant 0 : i32
    %c0_i32_1 = arith.constant 0 : i32
    %c0_i32_2 = arith.constant 0 : i32
    return %arg0, %c0_i32, %c0_i32_0, %c0_i32_1 : i32, i32, i32, i32
  }
  func.func @transform_16(%arg0: i32) -> (i32, i32, i32) {
    %c0_i32 = arith.constant 0 : i32
    %c0_i32_0 = arith.constant 0 : i32
    %c0_i32_1 = arith.constant 0 : i32
    return %arg0, %c0_i32, %c0_i32_0 : i32, i32, i32
  }
}

module attributes {stable_mosaic.version = 11 : i64} {
  func.func @_msa_pair_kernel(%arg0: i32, %arg1: memref<1x4x64xf32, #tpu.memory_space<vmem>>, %arg2: memref<1x4x64xf32, #tpu.memory_space<vmem>>, %arg3: memref<1x4x64xf32, #tpu.memory_space<vmem>>, %arg4: memref<1x4x64xf32, #tpu.memory_space<vmem>>, %arg5: memref<32x32xf32, #tpu.memory_space<vmem>>, %arg6: memref<64x32xbf16, #tpu.memory_space<vmem>>, %arg7: memref<64x32xbf16, #tpu.memory_space<vmem>>, %arg8: memref<64x32xbf16, #tpu.memory_space<vmem>>, %arg9: memref<32x64xbf16, #tpu.memory_space<vmem>>, %arg10: memref<1x64xf32, #tpu.memory_space<vmem>>, %arg11: memref<64x32xbf16, #tpu.memory_space<vmem>>, %arg12: memref<64x32xbf16, #tpu.memory_space<vmem>>, %arg13: memref<64x32xbf16, #tpu.memory_space<vmem>>, %arg14: memref<32x64xbf16, #tpu.memory_space<vmem>>, %arg15: memref<1x64xf32, #tpu.memory_space<vmem>>, %arg16: memref<1x4x128xf32, #tpu.memory_space<vmem>>) attributes {dimension_semantics = [#tpu.dimension_semantics<parallel>], iteration_bounds = array<i64: 2>, scalar_prefetch = 0 : i64, scratch_operands = 0 : i64, tpu.core_type = #tpu.core_type<tc>, window_params = [{transform_indices = @transform_0, window_bounds = array<i64: 1, 4, 64>}, {transform_indices = @transform_1, window_bounds = array<i64: 1, 4, 64>}, {transform_indices = @transform_2, window_bounds = array<i64: 1, 4, 64>}, {transform_indices = @transform_3, window_bounds = array<i64: 1, 4, 64>}, {pipeline_mode = #tpu.pipeline_mode<synchronous>, transform_indices = @transform_4, window_bounds = array<i64: 32, 32>}, {pipeline_mode = #tpu.pipeline_mode<synchronous>, transform_indices = @transform_5, window_bounds = array<i64: 64, 32>}, {pipeline_mode = #tpu.pipeline_mode<synchronous>, transform_indices = @transform_6, window_bounds = array<i64: 64, 32>}, {pipeline_mode = #tpu.pipeline_mode<synchronous>, transform_indices = @transform_7, window_bounds = array<i64: 64, 32>}, {pipeline_mode = #tpu.pipeline_mode<synchronous>, transform_indices = @transform_8, window_bounds = array<i64: 32, 64>}, {pipeline_mode = #tpu.pipeline_mode<synchronous>, transform_indices = @transform_9, window_bounds = array<i64: 1, 64>}, {pipeline_mode = #tpu.pipeline_mode<synchronous>, transform_indices = @transform_10, window_bounds = array<i64: 64, 32>}, {pipeline_mode = #tpu.pipeline_mode<synchronous>, transform_indices = @transform_11, window_bounds = array<i64: 64, 32>}, {pipeline_mode = #tpu.pipeline_mode<synchronous>, transform_indices = @transform_12, window_bounds = array<i64: 64, 32>}, {pipeline_mode = #tpu.pipeline_mode<synchronous>, transform_indices = @transform_13, window_bounds = array<i64: 32, 64>}, {pipeline_mode = #tpu.pipeline_mode<synchronous>, transform_indices = @transform_14, window_bounds = array<i64: 1, 64>}, {transform_indices = @transform_15, window_bounds = array<i64: 1, 4, 128>}]} {
    %c0 = arith.constant 0 : index
    %c0_0 = arith.constant 0 : index
    %c0_1 = arith.constant 0 : index
    %0 = vector.load %arg1[%c0, %c0_0, %c0_1] : memref<1x4x64xf32, #tpu.memory_space<vmem>>, vector<1x4x64xf32>
    %1 = vector.shape_cast %0 : vector<1x4x64xf32> to vector<4x64xf32>
    %c0_2 = arith.constant 0 : index
    %c0_3 = arith.constant 0 : index
    %c0_4 = arith.constant 0 : index
    %2 = vector.load %arg2[%c0_2, %c0_3, %c0_4] : memref<1x4x64xf32, #tpu.memory_space<vmem>>, vector<1x4x64xf32>
    %3 = vector.shape_cast %2 : vector<1x4x64xf32> to vector<4x64xf32>
    %4 = arith.truncf %1 : vector<4x64xf32> to vector<4x64xbf16>
    %5 = arith.truncf %3 : vector<4x64xf32> to vector<4x64xbf16>
    %c0_5 = arith.constant 0 : index
    %c0_6 = arith.constant 0 : index
    %6 = vector.load %arg6[%c0_5, %c0_6] : memref<64x32xbf16, #tpu.memory_space<vmem>>, vector<64x32xbf16>
    %cst = arith.constant dense<0.000000e+00> : vector<4x32xf32>
    %7 = tpu.matmul %4, %6, %cst {dimension_numbers = #tpu.dot_dimension_numbers<[1], [0], [0], [1], [0, 0, 1, 1], [], []>} : vector<4x64xbf16>, vector<64x32xbf16>, vector<4x32xf32> -> vector<4x32xf32>
    %c0_7 = arith.constant 0 : index
    %c0_8 = arith.constant 0 : index
    %8 = vector.load %arg7[%c0_7, %c0_8] : memref<64x32xbf16, #tpu.memory_space<vmem>>, vector<64x32xbf16>
    %cst_9 = arith.constant dense<0.000000e+00> : vector<4x32xf32>
    %9 = tpu.matmul %5, %8, %cst_9 {dimension_numbers = #tpu.dot_dimension_numbers<[1], [0], [0], [1], [0, 0, 1, 1], [], []>} : vector<4x64xbf16>, vector<64x32xbf16>, vector<4x32xf32> -> vector<4x32xf32>
    %c0_10 = arith.constant 0 : index
    %c0_11 = arith.constant 0 : index
    %10 = vector.load %arg8[%c0_10, %c0_11] : memref<64x32xbf16, #tpu.memory_space<vmem>>, vector<64x32xbf16>
    %cst_12 = arith.constant dense<0.000000e+00> : vector<4x32xf32>
    %11 = tpu.matmul %5, %10, %cst_12 {dimension_numbers = #tpu.dot_dimension_numbers<[1], [0], [0], [1], [0, 0, 1, 1], [], []>} : vector<4x64xbf16>, vector<64x32xbf16>, vector<4x32xf32> -> vector<4x32xf32>
    %12 = arith.mulf %7, %7 : vector<4x32xf32>
    %cst_13 = arith.constant dense<0.000000e+00> : vector<32xf32>
    %13 = vector.multi_reduction <add>, %12, %cst_13 [0] : vector<4x32xf32> to vector<32xf32>
    %14 = vector.shape_cast %13 : vector<32xf32> to vector<1x32xf32>
    %cst_14 = arith.constant 1.000000e-24 : f32
    %15 = vector.broadcast %cst_14 : f32 to vector<1x32xf32>
    %16 = arith.maximumf %14, %15 : vector<1x32xf32>
    %17 = math.rsqrt %16 : vector<1x32xf32>
    %18 = vector.broadcast %17 : vector<1x32xf32> to vector<4x32xf32>
    %19 = arith.mulf %7, %18 : vector<4x32xf32>
    %20 = arith.mulf %9, %9 : vector<4x32xf32>
    %cst_15 = arith.constant dense<0.000000e+00> : vector<32xf32>
    %21 = vector.multi_reduction <add>, %20, %cst_15 [0] : vector<4x32xf32> to vector<32xf32>
    %22 = vector.shape_cast %21 : vector<32xf32> to vector<1x32xf32>
    %cst_16 = arith.constant 1.000000e-24 : f32
    %23 = vector.broadcast %cst_16 : f32 to vector<1x32xf32>
    %24 = arith.maximumf %22, %23 : vector<1x32xf32>
    %25 = math.rsqrt %24 : vector<1x32xf32>
    %26 = vector.broadcast %25 : vector<1x32xf32> to vector<4x32xf32>
    %27 = arith.mulf %9, %26 : vector<4x32xf32>
    %28 = arith.truncf %27 : vector<4x32xf32> to vector<4x32xbf16>
    %29 = arith.truncf %19 : vector<4x32xf32> to vector<4x32xbf16>
    %cst_17 = arith.constant dense<0.000000e+00> : vector<32x32xf32>
    %30 = tpu.matmul %28, %29, %cst_17 {dimension_numbers = #tpu.dot_dimension_numbers<[0], [0], [1], [1], [0, 1, 1, 1], [], []>} : vector<4x32xbf16>, vector<4x32xbf16>, vector<32x32xf32> -> vector<32x32xf32>
    %c0_18 = arith.constant 0 : index
    %c0_19 = arith.constant 0 : index
    %31 = vector.load %arg5[%c0_18, %c0_19] : memref<32x32xf32, #tpu.memory_space<vmem>>, vector<32x32xf32>
    %32 = arith.addf %30, %31 : vector<32x32xf32>
    %cst_20 = arith.constant dense<0xFF800000> : vector<32xf32>
    %33 = vector.multi_reduction <maximumf>, %32, %cst_20 [1] : vector<32x32xf32> to vector<32xf32>
    %34 = vector.shape_cast %33 : vector<32xf32> to vector<32x1xf32>
    %35 = vector.broadcast %34 : vector<32x1xf32> to vector<32x32xf32>
    %36 = arith.subf %32, %35 : vector<32x32xf32>
    %37 = math.exp %36 : vector<32x32xf32>
    %cst_21 = arith.constant dense<0.000000e+00> : vector<32xf32>
    %38 = vector.multi_reduction <add>, %37, %cst_21 [1] : vector<32x32xf32> to vector<32xf32>
    %39 = vector.shape_cast %38 : vector<32xf32> to vector<32x1xf32>
    %40 = tpu.reciprocal %39 {approx = true} : vector<32x1xf32> -> vector<32x1xf32>
    %41 = vector.broadcast %40 : vector<32x1xf32> to vector<32x32xf32>
    %42 = arith.mulf %37, %41 : vector<32x32xf32>
    %43 = arith.truncf %11 : vector<4x32xf32> to vector<4x32xbf16>
    %44 = arith.truncf %42 : vector<32x32xf32> to vector<32x32xbf16>
    %cst_22 = arith.constant dense<0.000000e+00> : vector<4x32xf32>
    %45 = tpu.matmul %43, %44, %cst_22 {dimension_numbers = #tpu.dot_dimension_numbers<[1], [1], [0], [0], [0, 0, 1, 0], [], []>} : vector<4x32xbf16>, vector<32x32xbf16>, vector<4x32xf32> -> vector<4x32xf32>
    %46 = arith.truncf %45 : vector<4x32xf32> to vector<4x32xbf16>
    %c0_23 = arith.constant 0 : index
    %c0_24 = arith.constant 0 : index
    %47 = vector.load %arg9[%c0_23, %c0_24] : memref<32x64xbf16, #tpu.memory_space<vmem>>, vector<32x64xbf16>
    %cst_25 = arith.constant dense<0.000000e+00> : vector<4x64xf32>
    %48 = tpu.matmul %46, %47, %cst_25 {dimension_numbers = #tpu.dot_dimension_numbers<[1], [0], [0], [1], [0, 0, 1, 1], [], []>} : vector<4x32xbf16>, vector<32x64xbf16>, vector<4x64xf32> -> vector<4x64xf32>
    %c0_26 = arith.constant 0 : index
    %c0_27 = arith.constant 0 : index
    %49 = vector.load %arg10[%c0_26, %c0_27] : memref<1x64xf32, #tpu.memory_space<vmem>>, vector<1x64xf32>
    %50 = vector.broadcast %49 : vector<1x64xf32> to vector<4x64xf32>
    %51 = arith.addf %48, %50 : vector<4x64xf32>
    %cst_28 = arith.constant 0.707106769 : f32
    %52 = vector.broadcast %cst_28 : f32 to vector<4x64xf32>
    %53 = arith.mulf %51, %52 : vector<4x64xf32>
    %54 = math.absf %53 : vector<4x64xf32>
    %cst_29 = arith.constant 0.327591091 : f32
    %55 = vector.broadcast %cst_29 : f32 to vector<4x64xf32>
    %56 = arith.mulf %55, %54 : vector<4x64xf32>
    %cst_30 = arith.constant 1.000000e+00 : f32
    %57 = vector.broadcast %cst_30 : f32 to vector<4x64xf32>
    %58 = arith.addf %57, %56 : vector<4x64xf32>
    %cst_31 = arith.constant 1.000000e+00 : f32
    %59 = vector.broadcast %cst_31 : f32 to vector<4x64xf32>
    %60 = arith.divf %59, %58 : vector<4x64xf32>
    %cst_32 = arith.constant 1.06140542 : f32
    %61 = vector.broadcast %cst_32 : f32 to vector<4x64xf32>
    %62 = arith.mulf %60, %61 : vector<4x64xf32>
    %cst_33 = arith.constant -1.45315206 : f32
    %63 = vector.broadcast %cst_33 : f32 to vector<4x64xf32>
    %64 = arith.addf %63, %62 : vector<4x64xf32>
    %65 = arith.mulf %60, %64 : vector<4x64xf32>
    %cst_34 = arith.constant 1.42141378 : f32
    %66 = vector.broadcast %cst_34 : f32 to vector<4x64xf32>
    %67 = arith.addf %66, %65 : vector<4x64xf32>
    %68 = arith.mulf %60, %67 : vector<4x64xf32>
    %cst_35 = arith.constant -0.284496725 : f32
    %69 = vector.broadcast %cst_35 : f32 to vector<4x64xf32>
    %70 = arith.addf %69, %68 : vector<4x64xf32>
    %71 = arith.mulf %60, %70 : vector<4x64xf32>
    %cst_36 = arith.constant 0.254829586 : f32
    %72 = vector.broadcast %cst_36 : f32 to vector<4x64xf32>
    %73 = arith.addf %72, %71 : vector<4x64xf32>
    %74 = arith.mulf %60, %73 : vector<4x64xf32>
    %cst_37 = arith.constant 0.000000e+00 : f32
    %75 = vector.broadcast %cst_37 : f32 to vector<4x64xf32>
    %76 = arith.subf %75, %54 : vector<4x64xf32>
    %77 = arith.mulf %76, %54 : vector<4x64xf32>
    %78 = math.exp %77 : vector<4x64xf32>
    %79 = arith.mulf %74, %78 : vector<4x64xf32>
    %cst_38 = arith.constant 1.000000e+00 : f32
    %80 = vector.broadcast %cst_38 : f32 to vector<4x64xf32>
    %81 = arith.subf %80, %79 : vector<4x64xf32>
    %cst_39 = arith.constant 0.000000e+00 : f32
    %82 = vector.broadcast %cst_39 : f32 to vector<4x64xf32>
    %83 = arith.cmpf olt, %53, %82 : vector<4x64xf32>
    %cst_40 = arith.constant 0.000000e+00 : f32
    %84 = vector.broadcast %cst_40 : f32 to vector<4x64xf32>
    %85 = arith.subf %84, %81 : vector<4x64xf32>
    %86 = arith.select %83, %85, %81 : vector<4x64xi1>, vector<4x64xf32>
    %cst_41 = arith.constant 5.000000e-01 : f32
    %87 = vector.broadcast %cst_41 : f32 to vector<4x64xf32>
    %88 = arith.mulf %87, %51 : vector<4x64xf32>
    %cst_42 = arith.constant 1.000000e+00 : f32
    %89 = vector.broadcast %cst_42 : f32 to vector<4x64xf32>
    %90 = arith.addf %89, %86 : vector<4x64xf32>
    %91 = arith.mulf %88, %90 : vector<4x64xf32>
    %c0_43 = arith.constant 0 : index
    %c0_44 = arith.constant 0 : index
    %c0_45 = arith.constant 0 : index
    %92 = vector.load %arg3[%c0_43, %c0_44, %c0_45] : memref<1x4x64xf32, #tpu.memory_space<vmem>>, vector<1x4x64xf32>
    %93 = vector.shape_cast %92 : vector<1x4x64xf32> to vector<4x64xf32>
    %c0_46 = arith.constant 0 : index
    %c0_47 = arith.constant 0 : index
    %c0_48 = arith.constant 0 : index
    %94 = vector.load %arg4[%c0_46, %c0_47, %c0_48] : memref<1x4x64xf32, #tpu.memory_space<vmem>>, vector<1x4x64xf32>
    %95 = vector.shape_cast %94 : vector<1x4x64xf32> to vector<4x64xf32>
    %96 = arith.truncf %93 : vector<4x64xf32> to vector<4x64xbf16>
    %97 = arith.truncf %95 : vector<4x64xf32> to vector<4x64xbf16>
    %c0_49 = arith.constant 0 : index
    %c0_50 = arith.constant 0 : index
    %98 = vector.load %arg11[%c0_49, %c0_50] : memref<64x32xbf16, #tpu.memory_space<vmem>>, vector<64x32xbf16>
    %cst_51 = arith.constant dense<0.000000e+00> : vector<4x32xf32>
    %99 = tpu.matmul %96, %98, %cst_51 {dimension_numbers = #tpu.dot_dimension_numbers<[1], [0], [0], [1], [0, 0, 1, 1], [], []>} : vector<4x64xbf16>, vector<64x32xbf16>, vector<4x32xf32> -> vector<4x32xf32>
    %c0_52 = arith.constant 0 : index
    %c0_53 = arith.constant 0 : index
    %100 = vector.load %arg12[%c0_52, %c0_53] : memref<64x32xbf16, #tpu.memory_space<vmem>>, vector<64x32xbf16>
    %cst_54 = arith.constant dense<0.000000e+00> : vector<4x32xf32>
    %101 = tpu.matmul %97, %100, %cst_54 {dimension_numbers = #tpu.dot_dimension_numbers<[1], [0], [0], [1], [0, 0, 1, 1], [], []>} : vector<4x64xbf16>, vector<64x32xbf16>, vector<4x32xf32> -> vector<4x32xf32>
    %c0_55 = arith.constant 0 : index
    %c0_56 = arith.constant 0 : index
    %102 = vector.load %arg13[%c0_55, %c0_56] : memref<64x32xbf16, #tpu.memory_space<vmem>>, vector<64x32xbf16>
    %cst_57 = arith.constant dense<0.000000e+00> : vector<4x32xf32>
    %103 = tpu.matmul %97, %102, %cst_57 {dimension_numbers = #tpu.dot_dimension_numbers<[1], [0], [0], [1], [0, 0, 1, 1], [], []>} : vector<4x64xbf16>, vector<64x32xbf16>, vector<4x32xf32> -> vector<4x32xf32>
    %104 = arith.mulf %99, %99 : vector<4x32xf32>
    %cst_58 = arith.constant dense<0.000000e+00> : vector<32xf32>
    %105 = vector.multi_reduction <add>, %104, %cst_58 [0] : vector<4x32xf32> to vector<32xf32>
    %106 = vector.shape_cast %105 : vector<32xf32> to vector<1x32xf32>
    %cst_59 = arith.constant 1.000000e-24 : f32
    %107 = vector.broadcast %cst_59 : f32 to vector<1x32xf32>
    %108 = arith.maximumf %106, %107 : vector<1x32xf32>
    %109 = math.rsqrt %108 : vector<1x32xf32>
    %110 = vector.broadcast %109 : vector<1x32xf32> to vector<4x32xf32>
    %111 = arith.mulf %99, %110 : vector<4x32xf32>
    %112 = arith.mulf %101, %101 : vector<4x32xf32>
    %cst_60 = arith.constant dense<0.000000e+00> : vector<32xf32>
    %113 = vector.multi_reduction <add>, %112, %cst_60 [0] : vector<4x32xf32> to vector<32xf32>
    %114 = vector.shape_cast %113 : vector<32xf32> to vector<1x32xf32>
    %cst_61 = arith.constant 1.000000e-24 : f32
    %115 = vector.broadcast %cst_61 : f32 to vector<1x32xf32>
    %116 = arith.maximumf %114, %115 : vector<1x32xf32>
    %117 = math.rsqrt %116 : vector<1x32xf32>
    %118 = vector.broadcast %117 : vector<1x32xf32> to vector<4x32xf32>
    %119 = arith.mulf %101, %118 : vector<4x32xf32>
    %120 = arith.truncf %119 : vector<4x32xf32> to vector<4x32xbf16>
    %121 = arith.truncf %111 : vector<4x32xf32> to vector<4x32xbf16>
    %cst_62 = arith.constant dense<0.000000e+00> : vector<32x32xf32>
    %122 = tpu.matmul %120, %121, %cst_62 {dimension_numbers = #tpu.dot_dimension_numbers<[0], [0], [1], [1], [0, 1, 1, 1], [], []>} : vector<4x32xbf16>, vector<4x32xbf16>, vector<32x32xf32> -> vector<32x32xf32>
    %c0_63 = arith.constant 0 : index
    %c0_64 = arith.constant 0 : index
    %123 = vector.load %arg5[%c0_63, %c0_64] : memref<32x32xf32, #tpu.memory_space<vmem>>, vector<32x32xf32>
    %124 = arith.addf %122, %123 : vector<32x32xf32>
    %cst_65 = arith.constant dense<0xFF800000> : vector<32xf32>
    %125 = vector.multi_reduction <maximumf>, %124, %cst_65 [1] : vector<32x32xf32> to vector<32xf32>
    %126 = vector.shape_cast %125 : vector<32xf32> to vector<32x1xf32>
    %127 = vector.broadcast %126 : vector<32x1xf32> to vector<32x32xf32>
    %128 = arith.subf %124, %127 : vector<32x32xf32>
    %129 = math.exp %128 : vector<32x32xf32>
    %cst_66 = arith.constant dense<0.000000e+00> : vector<32xf32>
    %130 = vector.multi_reduction <add>, %129, %cst_66 [1] : vector<32x32xf32> to vector<32xf32>
    %131 = vector.shape_cast %130 : vector<32xf32> to vector<32x1xf32>
    %132 = tpu.reciprocal %131 {approx = true} : vector<32x1xf32> -> vector<32x1xf32>
    %133 = vector.broadcast %132 : vector<32x1xf32> to vector<32x32xf32>
    %134 = arith.mulf %129, %133 : vector<32x32xf32>
    %135 = arith.truncf %103 : vector<4x32xf32> to vector<4x32xbf16>
    %136 = arith.truncf %134 : vector<32x32xf32> to vector<32x32xbf16>
    %cst_67 = arith.constant dense<0.000000e+00> : vector<4x32xf32>
    %137 = tpu.matmul %135, %136, %cst_67 {dimension_numbers = #tpu.dot_dimension_numbers<[1], [1], [0], [0], [0, 0, 1, 0], [], []>} : vector<4x32xbf16>, vector<32x32xbf16>, vector<4x32xf32> -> vector<4x32xf32>
    %138 = arith.truncf %137 : vector<4x32xf32> to vector<4x32xbf16>
    %c0_68 = arith.constant 0 : index
    %c0_69 = arith.constant 0 : index
    %139 = vector.load %arg14[%c0_68, %c0_69] : memref<32x64xbf16, #tpu.memory_space<vmem>>, vector<32x64xbf16>
    %cst_70 = arith.constant dense<0.000000e+00> : vector<4x64xf32>
    %140 = tpu.matmul %138, %139, %cst_70 {dimension_numbers = #tpu.dot_dimension_numbers<[1], [0], [0], [1], [0, 0, 1, 1], [], []>} : vector<4x32xbf16>, vector<32x64xbf16>, vector<4x64xf32> -> vector<4x64xf32>
    %c0_71 = arith.constant 0 : index
    %c0_72 = arith.constant 0 : index
    %141 = vector.load %arg15[%c0_71, %c0_72] : memref<1x64xf32, #tpu.memory_space<vmem>>, vector<1x64xf32>
    %142 = vector.broadcast %141 : vector<1x64xf32> to vector<4x64xf32>
    %143 = arith.addf %140, %142 : vector<4x64xf32>
    %cst_73 = arith.constant 0.707106769 : f32
    %144 = vector.broadcast %cst_73 : f32 to vector<4x64xf32>
    %145 = arith.mulf %143, %144 : vector<4x64xf32>
    %146 = math.absf %145 : vector<4x64xf32>
    %cst_74 = arith.constant 0.327591091 : f32
    %147 = vector.broadcast %cst_74 : f32 to vector<4x64xf32>
    %148 = arith.mulf %147, %146 : vector<4x64xf32>
    %cst_75 = arith.constant 1.000000e+00 : f32
    %149 = vector.broadcast %cst_75 : f32 to vector<4x64xf32>
    %150 = arith.addf %149, %148 : vector<4x64xf32>
    %cst_76 = arith.constant 1.000000e+00 : f32
    %151 = vector.broadcast %cst_76 : f32 to vector<4x64xf32>
    %152 = arith.divf %151, %150 : vector<4x64xf32>
    %cst_77 = arith.constant 1.06140542 : f32
    %153 = vector.broadcast %cst_77 : f32 to vector<4x64xf32>
    %154 = arith.mulf %152, %153 : vector<4x64xf32>
    %cst_78 = arith.constant -1.45315206 : f32
    %155 = vector.broadcast %cst_78 : f32 to vector<4x64xf32>
    %156 = arith.addf %155, %154 : vector<4x64xf32>
    %157 = arith.mulf %152, %156 : vector<4x64xf32>
    %cst_79 = arith.constant 1.42141378 : f32
    %158 = vector.broadcast %cst_79 : f32 to vector<4x64xf32>
    %159 = arith.addf %158, %157 : vector<4x64xf32>
    %160 = arith.mulf %152, %159 : vector<4x64xf32>
    %cst_80 = arith.constant -0.284496725 : f32
    %161 = vector.broadcast %cst_80 : f32 to vector<4x64xf32>
    %162 = arith.addf %161, %160 : vector<4x64xf32>
    %163 = arith.mulf %152, %162 : vector<4x64xf32>
    %cst_81 = arith.constant 0.254829586 : f32
    %164 = vector.broadcast %cst_81 : f32 to vector<4x64xf32>
    %165 = arith.addf %164, %163 : vector<4x64xf32>
    %166 = arith.mulf %152, %165 : vector<4x64xf32>
    %cst_82 = arith.constant 0.000000e+00 : f32
    %167 = vector.broadcast %cst_82 : f32 to vector<4x64xf32>
    %168 = arith.subf %167, %146 : vector<4x64xf32>
    %169 = arith.mulf %168, %146 : vector<4x64xf32>
    %170 = math.exp %169 : vector<4x64xf32>
    %171 = arith.mulf %166, %170 : vector<4x64xf32>
    %cst_83 = arith.constant 1.000000e+00 : f32
    %172 = vector.broadcast %cst_83 : f32 to vector<4x64xf32>
    %173 = arith.subf %172, %171 : vector<4x64xf32>
    %cst_84 = arith.constant 0.000000e+00 : f32
    %174 = vector.broadcast %cst_84 : f32 to vector<4x64xf32>
    %175 = arith.cmpf olt, %145, %174 : vector<4x64xf32>
    %cst_85 = arith.constant 0.000000e+00 : f32
    %176 = vector.broadcast %cst_85 : f32 to vector<4x64xf32>
    %177 = arith.subf %176, %173 : vector<4x64xf32>
    %178 = arith.select %175, %177, %173 : vector<4x64xi1>, vector<4x64xf32>
    %cst_86 = arith.constant 5.000000e-01 : f32
    %179 = vector.broadcast %cst_86 : f32 to vector<4x64xf32>
    %180 = arith.mulf %179, %143 : vector<4x64xf32>
    %cst_87 = arith.constant 1.000000e+00 : f32
    %181 = vector.broadcast %cst_87 : f32 to vector<4x64xf32>
    %182 = arith.addf %181, %178 : vector<4x64xf32>
    %183 = arith.mulf %180, %182 : vector<4x64xf32>
    %184 = tpu.concatenate %91, %183 in 1 : vector<4x64xf32>, vector<4x64xf32> -> vector<4x128xf32>
    %c0_88 = arith.constant 0 : index
    %c0_89 = arith.constant 0 : index
    %c0_90 = arith.constant 0 : index
    %185 = vector.load %arg16[%c0_88, %c0_89, %c0_90] : memref<1x4x128xf32, #tpu.memory_space<vmem>>, vector<1x4x128xf32>
    %186 = vector.shape_cast %185 : vector<1x4x128xf32> to vector<4x128xf32>
    %187 = vector.shape_cast %184 : vector<4x128xf32> to vector<1x4x128xf32>
    tpu.vector_store %arg16[%c0_88, %c0_89, %c0_90], %187 {strides = array<i32>} : memref<1x4x128xf32, #tpu.memory_space<vmem>>, vector<1x4x128xf32>,
    return
  }
  func.func @transform_0(%arg0: i32) -> (i32, i32, i32) {
    %c0_i32 = arith.constant 0 : i32
    %c0_i32_0 = arith.constant 0 : i32
    %c0_i32_1 = arith.constant 0 : i32
    return %arg0, %c0_i32, %c0_i32_0 : i32, i32, i32
  }
  func.func @transform_1(%arg0: i32) -> (i32, i32, i32) {
    %c0_i32 = arith.constant 0 : i32
    %c0_i32_0 = arith.constant 0 : i32
    %c0_i32_1 = arith.constant 0 : i32
    return %arg0, %c0_i32, %c0_i32_0 : i32, i32, i32
  }
  func.func @transform_2(%arg0: i32) -> (i32, i32, i32) {
    %c0_i32 = arith.constant 0 : i32
    %c0_i32_0 = arith.constant 0 : i32
    %c0_i32_1 = arith.constant 0 : i32
    return %arg0, %c0_i32, %c0_i32_0 : i32, i32, i32
  }
  func.func @transform_3(%arg0: i32) -> (i32, i32, i32) {
    %c0_i32 = arith.constant 0 : i32
    %c0_i32_0 = arith.constant 0 : i32
    %c0_i32_1 = arith.constant 0 : i32
    return %arg0, %c0_i32, %c0_i32_0 : i32, i32, i32
  }
  func.func @transform_4(%arg0: i32) -> (i32, i32) {
    %c0_i32 = arith.constant 0 : i32
    %c0_i32_0 = arith.constant 0 : i32
    %c0_i32_1 = arith.constant 0 : i32
    return %c0_i32, %c0_i32_0 : i32, i32
  }
  func.func @transform_5(%arg0: i32) -> (i32, i32) {
    %c0_i32 = arith.constant 0 : i32
    %c0_i32_0 = arith.constant 0 : i32
    %c0_i32_1 = arith.constant 0 : i32
    return %c0_i32, %c0_i32_0 : i32, i32
  }
  func.func @transform_6(%arg0: i32) -> (i32, i32) {
    %c0_i32 = arith.constant 0 : i32
    %c0_i32_0 = arith.constant 0 : i32
    %c0_i32_1 = arith.constant 0 : i32
    return %c0_i32, %c0_i32_0 : i32, i32
  }
  func.func @transform_7(%arg0: i32) -> (i32, i32) {
    %c0_i32 = arith.constant 0 : i32
    %c0_i32_0 = arith.constant 0 : i32
    %c0_i32_1 = arith.constant 0 : i32
    return %c0_i32, %c0_i32_0 : i32, i32
  }
  func.func @transform_8(%arg0: i32) -> (i32, i32) {
    %c0_i32 = arith.constant 0 : i32
    %c0_i32_0 = arith.constant 0 : i32
    %c0_i32_1 = arith.constant 0 : i32
    return %c0_i32, %c0_i32_0 : i32, i32
  }
  func.func @transform_9(%arg0: i32) -> (i32, i32) {
    %c0_i32 = arith.constant 0 : i32
    %c0_i32_0 = arith.constant 0 : i32
    %c0_i32_1 = arith.constant 0 : i32
    return %c0_i32, %c0_i32_0 : i32, i32
  }
  func.func @transform_10(%arg0: i32) -> (i32, i32) {
    %c0_i32 = arith.constant 0 : i32
    %c0_i32_0 = arith.constant 0 : i32
    %c0_i32_1 = arith.constant 0 : i32
    return %c0_i32, %c0_i32_0 : i32, i32
  }
  func.func @transform_11(%arg0: i32) -> (i32, i32) {
    %c0_i32 = arith.constant 0 : i32
    %c0_i32_0 = arith.constant 0 : i32
    %c0_i32_1 = arith.constant 0 : i32
    return %c0_i32, %c0_i32_0 : i32, i32
  }
  func.func @transform_12(%arg0: i32) -> (i32, i32) {
    %c0_i32 = arith.constant 0 : i32
    %c0_i32_0 = arith.constant 0 : i32
    %c0_i32_1 = arith.constant 0 : i32
    return %c0_i32, %c0_i32_0 : i32, i32
  }
  func.func @transform_13(%arg0: i32) -> (i32, i32) {
    %c0_i32 = arith.constant 0 : i32
    %c0_i32_0 = arith.constant 0 : i32
    %c0_i32_1 = arith.constant 0 : i32
    return %c0_i32, %c0_i32_0 : i32, i32
  }
  func.func @transform_14(%arg0: i32) -> (i32, i32) {
    %c0_i32 = arith.constant 0 : i32
    %c0_i32_0 = arith.constant 0 : i32
    %c0_i32_1 = arith.constant 0 : i32
    return %c0_i32, %c0_i32_0 : i32, i32
  }
  func.func @transform_15(%arg0: i32) -> (i32, i32, i32) {
    %c0_i32 = arith.constant 0 : i32
    %c0_i32_0 = arith.constant 0 : i32
    %c0_i32_1 = arith.constant 0 : i32
    return %arg0, %c0_i32, %c0_i32_0 : i32, i32, i32
  }
}

module attributes {stable_mosaic.version = 11 : i64} {
  func.func @_combine_kernel(%arg0: i32, %arg1: memref<1x4x8x8xf32, #tpu.memory_space<vmem>>, %arg2: memref<1x4x8x8xf32, #tpu.memory_space<vmem>>, %arg3: memref<1x4x8x8xf32, #tpu.memory_space<vmem>>, %arg4: memref<1x4x8x8xf32, #tpu.memory_space<vmem>>) attributes {dimension_semantics = [#tpu.dimension_semantics<parallel>], iteration_bounds = array<i64: 2>, scalar_prefetch = 0 : i64, scratch_operands = 0 : i64, tpu.core_type = #tpu.core_type<tc>, window_params = [{transform_indices = @transform_0, window_bounds = array<i64: 1, 4, 8, 8>}, {transform_indices = @transform_1, window_bounds = array<i64: 1, 4, 8, 8>}, {transform_indices = @transform_2, window_bounds = array<i64: 1, 4, 8, 8>}, {transform_indices = @transform_3, window_bounds = array<i64: 1, 4, 8, 8>}]} {
    %c0 = arith.constant 0 : index
    %c0_0 = arith.constant 0 : index
    %c0_1 = arith.constant 0 : index
    %c0_2 = arith.constant 0 : index
    %0 = vector.load %arg1[%c0, %c0_0, %c0_1, %c0_2] : memref<1x4x8x8xf32, #tpu.memory_space<vmem>>, vector<1x4x8x8xf32>
    %1 = vector.shape_cast %0 : vector<1x4x8x8xf32> to vector<4x8x8xf32>
    %c0_3 = arith.constant 0 : index
    %c0_4 = arith.constant 0 : index
    %c0_5 = arith.constant 0 : index
    %c0_6 = arith.constant 0 : index
    %2 = vector.load %arg2[%c0_3, %c0_4, %c0_5, %c0_6] : memref<1x4x8x8xf32, #tpu.memory_space<vmem>>, vector<1x4x8x8xf32>
    %3 = vector.shape_cast %2 : vector<1x4x8x8xf32> to vector<4x8x8xf32>
    "tpu.trace_start"() <{level = 10 : i32, message = "cwl,clh->cwh"}> : () -> ()
    %cst = arith.constant dense<0.000000e+00> : vector<4x8x8xf32>
    %4 = tpu.matmul %1, %3, %cst {dimension_numbers = #tpu.dot_dimension_numbers<[2], [1], [1], [2], [0, 0, 0, 1, 1, 2], [0], [0]>} : vector<4x8x8xf32>, vector<4x8x8xf32>, vector<4x8x8xf32> -> vector<4x8x8xf32>
    "tpu.trace_stop"() : () -> ()
    %c0_7 = arith.constant 0 : index
    %c0_8 = arith.constant 0 : index
    %c0_9 = arith.constant 0 : index
    %c0_10 = arith.constant 0 : index
    %5 = vector.load %arg3[%c0_7, %c0_8, %c0_9, %c0_10] : memref<1x4x8x8xf32, #tpu.memory_space<vmem>>, vector<1x4x8x8xf32>
    %6 = vector.shape_cast %5 : vector<1x4x8x8xf32> to vector<4x8x8xf32>
    %7 = arith.addf %4, %6 : vector<4x8x8xf32>
    %c0_11 = arith.constant 0 : index
    %c0_12 = arith.constant 0 : index
    %c0_13 = arith.constant 0 : index
    %c0_14 = arith.constant 0 : index
    %8 = vector.load %arg4[%c0_11, %c0_12, %c0_13, %c0_14] : memref<1x4x8x8xf32, #tpu.memory_space<vmem>>, vector<1x4x8x8xf32>
    %9 = vector.shape_cast %8 : vector<1x4x8x8xf32> to vector<4x8x8xf32>
    %10 = vector.shape_cast %7 : vector<4x8x8xf32> to vector<1x4x8x8xf32>
    tpu.vector_store %arg4[%c0_11, %c0_12, %c0_13, %c0_14], %10 {strides = array<i32>} : memref<1x4x8x8xf32, #tpu.memory_space<vmem>>, vector<1x4x8x8xf32>,
    return
  }
  func.func @transform_0(%arg0: i32) -> (i32, i32, i32, i32) {
    %c0_i32 = arith.constant 0 : i32
    %c0_i32_0 = arith.constant 0 : i32
    %c0_i32_1 = arith.constant 0 : i32
    %c0_i32_2 = arith.constant 0 : i32
    return %arg0, %c0_i32, %c0_i32_0, %c0_i32_1 : i32, i32, i32, i32
  }
  func.func @transform_1(%arg0: i32) -> (i32, i32, i32, i32) {
    %c0_i32 = arith.constant 0 : i32
    %c0_i32_0 = arith.constant 0 : i32
    %c0_i32_1 = arith.constant 0 : i32
    %c0_i32_2 = arith.constant 0 : i32
    return %arg0, %c0_i32, %c0_i32_0, %c0_i32_1 : i32, i32, i32, i32
  }
  func.func @transform_2(%arg0: i32) -> (i32, i32, i32, i32) {
    %c0_i32 = arith.constant 0 : i32
    %c0_i32_0 = arith.constant 0 : i32
    %c0_i32_1 = arith.constant 0 : i32
    %c0_i32_2 = arith.constant 0 : i32
    return %arg0, %c0_i32, %c0_i32_0, %c0_i32_1 : i32, i32, i32, i32
  }
  func.func @transform_3(%arg0: i32) -> (i32, i32, i32, i32) {
    %c0_i32 = arith.constant 0 : i32
    %c0_i32_0 = arith.constant 0 : i32
    %c0_i32_1 = arith.constant 0 : i32
    %c0_i32_2 = arith.constant 0 : i32
    return %arg0, %c0_i32, %c0_i32_0, %c0_i32_1 : i32, i32, i32, i32
  }
}

</mosaic_0001>

<llo_original>
// kernel: spatial_learn_forward.5
$region0: #{spatial_learn_forward.5}
  #allocation0 [shape = 'u32[]', space=smem, size = 0x4, offset = 0x4, fixed_abs, tag = 'smem constant byte address 0x4 - core index']
  #allocation1 [shape = 'u32[72,128]{1,0:T(1,128)}', space=vmem, size = 0x9000, scoped, tag = 'internal scratch']
  %s0 = inlined_call_operand.vmem [shape: f32[2,4,8,8], index: 0, kind: input, shape index: {}]
  %s1 = inlined_call_operand.vmem [shape: f32[2,4,8,8], index: 1, kind: input, shape index: {}]
  %s2 = inlined_call_operand.vmem [shape: f32[2,4,8,8], index: 2, kind: input, shape index: {}]
  %s3 = inlined_call_operand.hbm [shape: f32[2,4,8,8], index: 3, kind: output, shape index: {}]
  %s4 = sld [smem:[#allocation0]]
  $region45: #{spatial_learn_forward.5} parent=0
    _
  %s6 = ssub.s32 1, %s4
  %s7 = scalar_select 0, %s6, %s4
  $region1: #{spatial_learn_forward.5} parent=0
    #allocation2 [shape = 'u8[32768]{0}', space=vmem, size = 0x8000, scoped, tag = 'output window, operand 0']
    #allocation3 [shape = 's32[2]{0}', space=sflag, size = 0x8, scoped, tag = 'scoped memory for spatial_learn_forward.5']
    %8 = vsyncpa [#allocation3], 0
    %s9 = scalar_lea.sflag [#allocation3], 1
    %10 = vsyncpa %s9, 0
    loop: start=0, step=1, limit=4
    $region2: #{spatial_learn_forward.5} parent=1 // loop_pre_header
      _
    $region3: #{spatial_learn_forward.5} parent=1 // loop_header
      %s12 = sphi 0, %s16
      %p13 = scmp.ge.s32.totalorder %s12, 4
      %s22 = sphi 0, %s24
      %s25 = sphi 0, %s22
      %s26 = sphi 0, %s25
      %s42 = sphi 0, %s26
      %s48 = sphi 0, %s50
      %s51 = sphi 0, %s48
      %s52 = sphi 0, %s51
      %s68 = sphi 0, %s52
      %s74 = sphi 0, %s76
      %s77 = sphi 0, %s74
      %s78 = sphi 0, %s77
      %s94 = sphi 0, %s78
      %s100 = sphi 0, %s102
      %s103 = sphi 0, %s100
      %s104 = sphi 0, %s103
      %s120 = sphi 0, %s104
    $region4: #{spatial_learn_forward.5} parent=1 // loop_header_branch
      %15 = sbr.rel (%p13) target = $region8
    $region5: #{spatial_learn_forward.5} parent=1 // loop_body
      %s17 = ssub.s32 %s12, 1
      %s18 = ssub.s32 %s12, 2
      %s19 = sadd.s32 %s12, 1
      %s20 = ssub.s32 %s12, %s19
      %p21 = scmp.eq.s32.totalorder %s20, 0
      %s23 = sadd.s32 %s22, 1
      %s24 = scalar_select %p21, %s22, %s23
      %p27 = pneg %p21
      %p28 = scmp.eq.s32.totalorder %s12, 1
      %p29 = por %p27, %p28
      %p30 = scmp.ne.s32.totalorder %s22, %s25
      %p31 = scmp.eq.s32.totalorder %s12, 0
      %p32 = por %p30, %p31
      %p33 = scmp.ne.s32.totalorder %s22, %s25
      %p34 = scmp.eq.s32.totalorder %s17, 1
      %p35 = por %p33, %p34
      %p36 = scmp.ne.s32.totalorder %s25, %s26
      %p37 = scmp.eq.s32.totalorder %s17, 0
      %p38 = por %p36, %p37
      %p39 = scmp.ne.s32.totalorder %s25, %s26
      %p40 = scmp.eq.s32.totalorder %s18, 1
      %p41 = por %p39, %p40
      %p43 = scmp.ne.s32.totalorder %s26, %s42
      %p44 = scmp.eq.s32.totalorder %s18, 0
      %p45 = por %p43, %p44
      %s46 = ssub.s32 %s12, %s19
      %p47 = scmp.eq.s32.totalorder %s46, 0
      %s49 = sadd.s32 %s48, 1
      %s50 = scalar_select %p47, %s48, %s49
      %p53 = pneg %p47
      %p54 = scmp.eq.s32.totalorder %s12, 1
      %p55 = por %p53, %p54
      %p56 = scmp.ne.s32.totalorder %s48, %s51
      %p57 = scmp.eq.s32.totalorder %s12, 0
      %p58 = por %p56, %p57
      %p59 = scmp.ne.s32.totalorder %s48, %s51
      %p60 = scmp.eq.s32.totalorder %s17, 1
      %p61 = por %p59, %p60
      %p62 = scmp.ne.s32.totalorder %s51, %s52
      %p63 = scmp.eq.s32.totalorder %s17, 0
      %p64 = por %p62, %p63
      %p65 = scmp.ne.s32.totalorder %s51, %s52
      %p66 = scmp.eq.s32.totalorder %s18, 1
      %p67 = por %p65, %p66
      %p69 = scmp.ne.s32.totalorder %s52, %s68
      %p70 = scmp.eq.s32.totalorder %s18, 0
      %p71 = por %p69, %p70
      %s72 = ssub.s32 %s12, %s19
      %p73 = scmp.eq.s32.totalorder %s72, 0
      %s75 = sadd.s32 %s74, 1
      %s76 = scalar_select %p73, %s74, %s75
      %p79 = pneg %p73
      %p80 = scmp.eq.s32.totalorder %s12, 1
      %p81 = por %p79, %p80
      %p82 = scmp.ne.s32.totalorder %s74, %s77
      %p83 = scmp.eq.s32.totalorder %s12, 0
      %p84 = por %p82, %p83
      %p85 = scmp.ne.s32.totalorder %s74, %s77
      %p86 = scmp.eq.s32.totalorder %s17, 1
      %p87 = por %p85, %p86
      %p88 = scmp.ne.s32.totalorder %s77, %s78
      %p89 = scmp.eq.s32.totalorder %s17, 0
      %p90 = por %p88, %p89
      %p91 = scmp.ne.s32.totalorder %s77, %s78
      %p92 = scmp.eq.s32.totalorder %s18, 1
      %p93 = por %p91, %p92
      %p95 = scmp.ne.s32.totalorder %s78, %s94
      %p96 = scmp.eq.s32.totalorder %s18, 0
      %p97 = por %p95, %p96
      %s98 = ssub.s32 %s12, %s19
      %p99 = scmp.eq.s32.totalorder %s98, 0
      %s101 = sadd.s32 %s100, 1
      %s102 = scalar_select %p99, %s100, %s101
      %p105 = pneg %p99
      %p106 = scmp.eq.s32.totalorder %s12, 1
      %p107 = por %p105, %p106
      %p108 = scmp.ne.s32.totalorder %s100, %s103
      %p109 = scmp.eq.s32.totalorder %s12, 0
      %p110 = por %p108, %p109
      %p111 = scmp.ne.s32.totalorder %s100, %s103
      %p112 = scmp.eq.s32.totalorder %s17, 1
      %p113 = por %p111, %p112
      %p114 = scmp.ne.s32.totalorder %s103, %s104
      %p115 = scmp.eq.s32.totalorder %s17, 0
      %p116 = por %p114, %p115
      %p117 = scmp.ne.s32.totalorder %s103, %s104
      %p118 = scmp.eq.s32.totalorder %s18, 1
      %p119 = por %p117, %p118
      %p121 = scmp.ne.s32.totalorder %s104, %s120
      %p122 = scmp.eq.s32.totalorder %s18, 0
      %p123 = por %p121, %p122
      %p124 = scmp.le.s32.totalorder 1, %s12
      %p125 = scmp.lt.s32.totalorder %s12, 3
      %p126 = pnand %p124, %p125
      %p127 = pneg %p126
      // Predicated region
      $region9: #{spatial_learn_forward.5} parent=5 // pred_check
        _
      $region10: #{spatial_learn_forward.5} parent=5 // pred_check_branch
        %129 = sbr.rel (%p126) target = $region12
      $region11: #{spatial_learn_forward.5} parent=5 // pred_region
        %s130 = ssub.s32 %s12, 1
      $region12: #{spatial_learn_forward.5} parent=5 // pred_fallthru
        _
      %p131 = scmp.lt.s32.totalorder %s12, 2
      // Predicated region
      $region13: #{spatial_learn_forward.5} parent=5 // pred_check
        %p132 = pneg %p131
      $region14: #{spatial_learn_forward.5} parent=5 // pred_check_branch
        %134 = sbr.rel (%p132) target = $region16
      $region15: #{spatial_learn_forward.5} parent=5 // pred_region
        // Predicated region
        $region17: #{spatial_learn_forward.5} parent=15 // pred_check
          %p135 = pneg %p32
        $region18: #{spatial_learn_forward.5} parent=15 // pred_check_branch
          %137 = sbr.rel (%p135) target = $region20
        $region19: #{spatial_learn_forward.5} parent=15 // pred_region
          %p138 = scmp.lt.s32.totalorder %s12, 1
          %s139 = scalar_select %p138, %s12, 1
          %s140 = smul.addr %s139, 4
          %s141 = smul.addr %s140, 8
          %s142 = scalar_lea.vmem %s0, %s141
        $region20: #{spatial_learn_forward.5} parent=15 // pred_fallthru
          _
        // Predicated region
        $region21: #{spatial_learn_forward.5} parent=15 // pred_check
          %p143 = pneg %p58
        $region22: #{spatial_learn_forward.5} parent=15 // pred_check_branch
          %145 = sbr.rel (%p143) target = $region24
        $region23: #{spatial_learn_forward.5} parent=15 // pred_region
          %p146 = scmp.lt.s32.totalorder %s12, 1
          %s147 = scalar_select %p146, %s12, 1
          %s148 = smul.addr %s147, 4
          %s149 = smul.addr %s148, 8
          %s150 = scalar_lea.vmem %s1, %s149
        $region24: #{spatial_learn_forward.5} parent=15 // pred_fallthru
          _
        // Predicated region
        $region25: #{spatial_learn_forward.5} parent=15 // pred_check
          %p151 = pneg %p84
        $region26: #{spatial_learn_forward.5} parent=15 // pred_check_branch
          %153 = sbr.rel (%p151) target = $region28
        $region27: #{spatial_learn_forward.5} parent=15 // pred_region
          %p154 = scmp.lt.s32.totalorder %s12, 1
          %s155 = scalar_select %p154, %s12, 1
          %s156 = smul.addr %s155, 4
          %s157 = smul.addr %s156, 8
          %s158 = scalar_lea.vmem %s2, %s157
        $region28: #{spatial_learn_forward.5} parent=15 // pred_fallthru
          _
      $region16: #{spatial_learn_forward.5} parent=5 // pred_fallthru
        _
      %p159 = scmp.le.s32.totalorder 1, %s12
      %p160 = scmp.lt.s32.totalorder %s12, 3
      %p161 = pnand %p159, %p160
      %p162 = pneg %p161
      // Predicated region
      $region29: #{spatial_learn_forward.5} parent=5 // pred_check
        _
      $region30: #{spatial_learn_forward.5} parent=5 // pred_check_branch
        %164 = sbr.rel (%p161) target = $region32
      $region31: #{spatial_learn_forward.5} parent=5 // pred_region
        %s165 = ssub.s32 %s12, 1
        %p166 = scmp.lt.s32.totalorder %s17, 1
        %s167 = scalar_select %p166, %s17, 1
        %s168 = smul.addr %s167, 4
        %s169 = smul.addr %s168, 8
        %s170 = scalar_lea.vmem %s0, %s169
        %p171 = pneg %p38
        %p172 = pneg %p35
        %p173 = scmp.lt.s32.totalorder %s17, 1
        %s174 = scalar_select %p173, %s17, 1
        %s175 = smul.addr %s174, 4
        %s176 = smul.addr %s175, 8
        %s177 = scalar_lea.vmem %s1, %s176
        %p178 = pneg %p64
        %p179 = pneg %p61
        %p180 = scmp.lt.s32.totalorder %s17, 1
        %s181 = scalar_select %p180, %s17, 1
        %s182 = smul.addr %s181, 4
        %s183 = smul.addr %s182, 8
        %s184 = scalar_lea.vmem %s2, %s183
        %p185 = pneg %p90
        %p186 = pneg %p87
        %p187 = pneg %p116
        %p188 = pneg %p113
        %s189 = sand.u32 %s103, 1
        %s190 = scalar_lea.sflag [#allocation3], %s189
        %s191 = sand.u32 %s103, 1
        %s192 = smul.addr %s191, 32
        %s193 = scalar_lea.vmem [#allocation2], %s192
        %p194 = scmp.lt.s32.totalorder %s17, 1
        %s195 = scalar_select %p194, %s17, 1
        %s196 = smul.addr %s195, 4
        %s197 = smul.addr %s196, 8
        %s198 = scalar_lea.vmem %s0, %s197
        %p199 = scmp.lt.s32.totalorder %s17, 1
        %s200 = scalar_select %p199, %s17, 1
        %s201 = smul.addr %s200, 4
        %s202 = smul.addr %s201, 8
        %s203 = scalar_lea.vmem %s1, %s202
        %p204 = scmp.lt.s32.totalorder %s17, 1
        %s205 = scalar_select %p204, %s17, 1
        %s206 = smul.addr %s205, 4
        %s207 = smul.addr %s206, 8
        %s208 = scalar_lea.vmem %s2, %s207
        %v209 = vld [vmem:[%s198] sm:$0xff]
        %v210 = vld [vmem:[%s198 + $0x8] sm:$0xff]
        %v211 = vld [vmem:[%s198 + $0x10] sm:$0xff]
        %v212 = vld [vmem:[%s198 + $0x18] sm:$0xff]
        %v213 = vld [vmem:[%s203] sm:$0xff]
        %v214 = vld [vmem:[%s203 + $0x8] sm:$0xff]
        %v215 = vld [vmem:[%s203 + $0x10] sm:$0xff]
        %v216 = vld [vmem:[%s203 + $0x18] sm:$0xff]
        %v217 = vld [vmem:[%s208] sm:$0xff]
        %v218 = vld [vmem:[%s208 + $0x8] sm:$0xff]
        %v219 = vld [vmem:[%s208 + $0x10] sm:$0xff]
        %v220 = vld [vmem:[%s208 + $0x18] sm:$0xff]
        %vm221 = vcmask 64512
        %v223 = vsel %vm221, %v209, 0
        %225 = vmatpush.msra.mxu0 0.0
        %226 = vmatpush.msra.mxu0 0.0
        %227 = vmatpush.msra.mxu0 0.0
        %228 = vmatpush.msra.mxu0 0.0
        %229 = vmatpush.msra.mxu0 0.0
        %230 = vmatpush.msra.mxu0 0.0
        %231 = vmatpush.msra.mxu0 0.0
        %232 = vmatpush.msra.mxu0 0.0
        %233 = vmatpush.msra.mxu0 0.0
        %234 = vmatpush.msra.mxu0 0.0
        %235 = vmatpush.msra.mxu0 0.0
        %236 = vmatpush.msra.mxu0 0.0
        %237 = vmatpush.msra.mxu0 0.0
        %238 = vmatpush.msra.mxu0 0.0
        %239 = vmatpush.msra.mxu0 0.0
        %240 = vmatpush.msra.mxu0 %v213
        %241 = vmatmul.f32.gmra.mxu0 %v223
        %v242 = vpop.f32.mrf.mxu0
        %v243 = vadd.f32 %v217, %v242
        %244 = vdwg.mxu0
        %v246 = vsel %vm221, %v210, 0
        %248 = vmatpush.msra.mxu0 0.0
        %249 = vmatpush.msra.mxu0 0.0
        %250 = vmatpush.msra.mxu0 0.0
        %251 = vmatpush.msra.mxu0 0.0
        %252 = vmatpush.msra.mxu0 0.0
        %253 = vmatpush.msra.mxu0 0.0
        %254 = vmatpush.msra.mxu0 0.0
        %255 = vmatpush.msra.mxu0 0.0
        %256 = vmatpush.msra.mxu0 0.0
        %257 = vmatpush.msra.mxu0 0.0
        %258 = vmatpush.msra.mxu0 0.0
        %259 = vmatpush.msra.mxu0 0.0
        %260 = vmatpush.msra.mxu0 0.0
        %261 = vmatpush.msra.mxu0 0.0
        %262 = vmatpush.msra.mxu0 0.0
        %263 = vmatpush.msra.mxu0 %v214
        %264 = vmatmul.f32.gmra.mxu0 %v246
        %v265 = vpop.f32.mrf.mxu0
        %v266 = vadd.f32 %v218, %v265
        %267 = vdwg.mxu0
        %v269 = vsel %vm221, %v211, 0
        %271 = vmatpush.msra.mxu0 0.0
        %272 = vmatpush.msra.mxu0 0.0
        %273 = vmatpush.msra.mxu0 0.0
        %274 = vmatpush.msra.mxu0 0.0
        %275 = vmatpush.msra.mxu0 0.0
        %276 = vmatpush.msra.mxu0 0.0
        %277 = vmatpush.msra.mxu0 0.0
        %278 = vmatpush.msra.mxu0 0.0
        %279 = vmatpush.msra.mxu0 0.0
        %280 = vmatpush.msra.mxu0 0.0
        %281 = vmatpush.msra.mxu0 0.0
        %282 = vmatpush.msra.mxu0 0.0
        %283 = vmatpush.msra.mxu0 0.0
        %284 = vmatpush.msra.mxu0 0.0
        %285 = vmatpush.msra.mxu0 0.0
        %286 = vmatpush.msra.mxu0 %v215
        %287 = vmatmul.f32.gmra.mxu0 %v269
        %v288 = vpop.f32.mrf.mxu0
        %v289 = vadd.f32 %v219, %v288
        %290 = vdwg.mxu0
        %v292 = vsel %vm221, %v212, 0
        %294 = vmatpush.msra.mxu0 0.0
        %295 = vmatpush.msra.mxu0 0.0
        %296 = vmatpush.msra.mxu0 0.0
        %297 = vmatpush.msra.mxu0 0.0
        %298 = vmatpush.msra.mxu0 0.0
        %299 = vmatpush.msra.mxu0 0.0
        %300 = vmatpush.msra.mxu0 0.0
        %301 = vmatpush.msra.mxu0 0.0
        %302 = vmatpush.msra.mxu0 0.0
        %303 = vmatpush.msra.mxu0 0.0
        %304 = vmatpush.msra.mxu0 0.0
        %305 = vmatpush.msra.mxu0 0.0
        %306 = vmatpush.msra.mxu0 0.0
        %307 = vmatpush.msra.mxu0 0.0
        %308 = vmatpush.msra.mxu0 0.0
        %309 = vmatpush.msra.mxu0 %v216
        %310 = vmatmul.f32.gmra.mxu0 %v292
        %v311 = vpop.f32.mrf.mxu0
        %v312 = vadd.f32 %v220, %v311
        %313 = vdwg.mxu0
        %314 = vst.msk [vmem:[%s193] sm:$0xff] %vm221, %v243
        %315 = vst.msk [vmem:[%s193 + $0x8] sm:$0xff] %vm221, %v266
        %316 = vst.msk [vmem:[%s193 + $0x10] sm:$0xff] %vm221, %v289
        %317 = vst.msk [vmem:[%s193 + $0x18] sm:$0xff] %vm221, %v312
        %s318 = sand.u32 %s103, 1
        %s319 = scalar_lea.sflag [#allocation3], %s318
        %s320 = sand.u32 %s103, 1
        %s321 = smul.addr %s320, 32
        %s322 = scalar_lea.vmem [#allocation2], %s321
        // Predicated region
        $region33: #{spatial_learn_forward.5} parent=31 // pred_check
          %p323 = pneg %p113
        $region34: #{spatial_learn_forward.5} parent=31 // pred_check_branch
          %325 = sbr.rel (%p323) target = $region36
        $region35: #{spatial_learn_forward.5} parent=31 // pred_region
          %327 = vsyncadd %s319, 0
          %s328 = smul.addr %s17, 4
          %s329 = smul.addr %s328, 8
          %s330 = scalar_lea.hbm %s3, %s329
          %s331 = sshll.u32 %s322, 4
          %s332 = int_to_ptr.vmem [resolvable:$true] %s331
          %s333 = sshll.u32 %s330, 4
          %s334 = int_to_ptr.hbm [resolvable:$true] %s333
          %339 = dma.vmem_to_hbm [thread:$0]  %s332, 512, %s334, %s319, 128, 128, 8
        $region36: #{spatial_learn_forward.5} parent=31 // pred_fallthru
          _
      $region32: #{spatial_learn_forward.5} parent=5 // pred_fallthru
        _
      %p340 = scmp.le.s32.totalorder 2, %s12
      // Predicated region
      $region37: #{spatial_learn_forward.5} parent=5 // pred_check
        %p341 = pneg %p340
      $region38: #{spatial_learn_forward.5} parent=5 // pred_check_branch
        %343 = sbr.rel (%p341) target = $region40
      $region39: #{spatial_learn_forward.5} parent=5 // pred_region
        %s344 = ssub.s32 %s12, 2
        // Predicated region
        $region41: #{spatial_learn_forward.5} parent=39 // pred_check
          %p345 = pneg %p119
        $region42: #{spatial_learn_forward.5} parent=39 // pred_check_branch
          %347 = sbr.rel (%p345) target = $region44
        $region43: #{spatial_learn_forward.5} parent=39 // pred_region
          %s348 = sand.u32 %s104, 1
          %s349 = scalar_lea.sflag [#allocation3], %s348
          %s350 = sand.u32 %s104, 1
          %s351 = smul.addr %s350, 32
          %s352 = scalar_lea.vmem [#allocation2], %s351
          %354 = dma.done %s349, 512
        $region44: #{spatial_learn_forward.5} parent=39 // pred_fallthru
          _
      $region40: #{spatial_learn_forward.5} parent=5 // pred_fallthru
        _
    $region6: #{spatial_learn_forward.5} parent=1 // loop_footer
      %s16 = sadd.s32 1, %s12
    $region7: #{spatial_learn_forward.5} parent=1 // loop_footer_branch
      %11 = sbr.rel target = $region3
    $region8: #{spatial_learn_forward.5} parent=1 // loop_exit
      _
    %355 = vsyncpa [#allocation3], 1
    %s356 = scalar_lea.sflag [#allocation3], 1
    %357 = vsyncpa %s356, 1

// kernel: spatial_learn_forward.4
$region0: #{spatial_learn_forward.4}
  #allocation0 [shape = 'u32[]', space=smem, size = 0x4, offset = 0x4, fixed_abs, tag = 'smem constant byte address 0x4 - core index']
  #allocation1 [shape = 'u32[72,128]{1,0:T(1,128)}', space=vmem, size = 0x9000, scoped, tag = 'internal scratch']
  %s0 = inlined_call_operand.vmem [shape: f32[2,4,64], index: 0, kind: input, shape index: {}]
  %s1 = inlined_call_operand.vmem [shape: f32[2,4,64], index: 1, kind: input, shape index: {}]
  %s2 = inlined_call_operand.vmem [shape: f32[2,4,64], index: 2, kind: input, shape index: {}]
  %s3 = inlined_call_operand.vmem [shape: f32[2,4,64], index: 3, kind: input, shape index: {}]
  %s4 = inlined_call_operand.vmem [shape: f32[32,32], index: 4, kind: input, shape index: {}]
  %s5 = inlined_call_operand.vmem [shape: bf16[64,32], index: 5, kind: input, shape index: {}]
  %s6 = inlined_call_operand.vmem [shape: bf16[64,32], index: 6, kind: input, shape index: {}]
  %s7 = inlined_call_operand.vmem [shape: bf16[64,32], index: 7, kind: input, shape index: {}]
  %s8 = inlined_call_operand.vmem [shape: bf16[32,64], index: 8, kind: input, shape index: {}]
  %s9 = inlined_call_operand.vmem [shape: f32[1,64], index: 9, kind: input, shape index: {}]
  %s10 = inlined_call_operand.vmem [shape: bf16[64,32], index: 10, kind: input, shape index: {}]
  %s11 = inlined_call_operand.vmem [shape: bf16[64,32], index: 11, kind: input, shape index: {}]
  %s12 = inlined_call_operand.vmem [shape: bf16[64,32], index: 12, kind: input, shape index: {}]
  %s13 = inlined_call_operand.vmem [shape: bf16[32,64], index: 13, kind: input, shape index: {}]
  %s14 = inlined_call_operand.vmem [shape: f32[1,64], index: 14, kind: input, shape index: {}]
  %s15 = inlined_call_operand.vmem [shape: f32[2,4,128], index: 15, kind: output, shape index: {}]
  %s16 = sld [smem:[#allocation0]]
  $region93: #{spatial_learn_forward.4} parent=0
    _
  %s18 = ssub.s32 1, %s16
  %s19 = scalar_select 0, %s18, %s16
  loop: start=0, step=1, limit=4
  $region2: #{spatial_learn_forward.4} parent=0 // loop_pre_header
    _
  $region3: #{spatial_learn_forward.4} parent=0 // loop_header
    %s21 = sphi 0, %s25
    %p22 = scmp.ge.s32.totalorder %s21, 4
    %s31 = sphi 0, %s33
    %s34 = sphi 0, %s31
    %s35 = sphi 0, %s34
    %s51 = sphi 0, %s35
    %s57 = sphi 0, %s59
    %s60 = sphi 0, %s57
    %s61 = sphi 0, %s60
    %s77 = sphi 0, %s61
    %s83 = sphi 0, %s85
    %s86 = sphi 0, %s83
    %s87 = sphi 0, %s86
    %s103 = sphi 0, %s87
    %s109 = sphi 0, %s111
    %s112 = sphi 0, %s109
    %s113 = sphi 0, %s112
    %s129 = sphi 0, %s113
    %s133 = sphi 0, %s133
    %s135 = sphi 0, %s133
    %s136 = sphi 0, %s135
    %s150 = sphi 0, %s136
    %s154 = sphi 0, %s154
    %s156 = sphi 0, %s154
    %s157 = sphi 0, %s156
    %s171 = sphi 0, %s157
    %s175 = sphi 0, %s175
    %s177 = sphi 0, %s175
    %s178 = sphi 0, %s177
    %s192 = sphi 0, %s178
    %s196 = sphi 0, %s196
    %s198 = sphi 0, %s196
    %s199 = sphi 0, %s198
    %s213 = sphi 0, %s199
    %s217 = sphi 0, %s217
    %s219 = sphi 0, %s217
    %s220 = sphi 0, %s219
    %s234 = sphi 0, %s220
    %s238 = sphi 0, %s238
    %s240 = sphi 0, %s238
    %s241 = sphi 0, %s240
    %s255 = sphi 0, %s241
    %s259 = sphi 0, %s259
    %s261 = sphi 0, %s259
    %s262 = sphi 0, %s261
    %s276 = sphi 0, %s262
    %s280 = sphi 0, %s280
    %s282 = sphi 0, %s280
    %s283 = sphi 0, %s282
    %s297 = sphi 0, %s283
    %s301 = sphi 0, %s301
    %s303 = sphi 0, %s301
    %s304 = sphi 0, %s303
    %s318 = sphi 0, %s304
    %s322 = sphi 0, %s322
    %s324 = sphi 0, %s322
    %s325 = sphi 0, %s324
    %s339 = sphi 0, %s325
    %s343 = sphi 0, %s343
    %s345 = sphi 0, %s343
    %s346 = sphi 0, %s345
    %s360 = sphi 0, %s346
    %s366 = sphi 0, %s368
    %s369 = sphi 0, %s366
    %s370 = sphi 0, %s369
    %s386 = sphi 0, %s370
  $region4: #{spatial_learn_forward.4} parent=0 // loop_header_branch
    %24 = sbr.rel (%p22) target = $region8
  $region5: #{spatial_learn_forward.4} parent=0 // loop_body
    %s26 = ssub.s32 %s21, 1
    %s27 = ssub.s32 %s21, 2
    %s28 = sadd.s32 %s21, 1
    %s29 = ssub.s32 %s21, %s28
    %p30 = scmp.eq.s32.totalorder %s29, 0
    %s32 = sadd.s32 %s31, 1
    %s33 = scalar_select %p30, %s31, %s32
    %p36 = pneg %p30
    %p37 = scmp.eq.s32.totalorder %s21, 1
    %p38 = por %p36, %p37
    %p39 = scmp.ne.s32.totalorder %s31, %s34
    %p40 = scmp.eq.s32.totalorder %s21, 0
    %p41 = por %p39, %p40
    %p42 = scmp.ne.s32.totalorder %s31, %s34
    %p43 = scmp.eq.s32.totalorder %s26, 1
    %p44 = por %p42, %p43
    %p45 = scmp.ne.s32.totalorder %s34, %s35
    %p46 = scmp.eq.s32.totalorder %s26, 0
    %p47 = por %p45, %p46
    %p48 = scmp.ne.s32.totalorder %s34, %s35
    %p49 = scmp.eq.s32.totalorder %s27, 1
    %p50 = por %p48, %p49
    %p52 = scmp.ne.s32.totalorder %s35, %s51
    %p53 = scmp.eq.s32.totalorder %s27, 0
    %p54 = por %p52, %p53
    %s55 = ssub.s32 %s21, %s28
    %p56 = scmp.eq.s32.totalorder %s55, 0
    %s58 = sadd.s32 %s57, 1
    %s59 = scalar_select %p56, %s57, %s58
    %p62 = pneg %p56
    %p63 = scmp.eq.s32.totalorder %s21, 1
    %p64 = por %p62, %p63
    %p65 = scmp.ne.s32.totalorder %s57, %s60
    %p66 = scmp.eq.s32.totalorder %s21, 0
    %p67 = por %p65, %p66
    %p68 = scmp.ne.s32.totalorder %s57, %s60
    %p69 = scmp.eq.s32.totalorder %s26, 1
    %p70 = por %p68, %p69
    %p71 = scmp.ne.s32.totalorder %s60, %s61
    %p72 = scmp.eq.s32.totalorder %s26, 0
    %p73 = por %p71, %p72
    %p74 = scmp.ne.s32.totalorder %s60, %s61
    %p75 = scmp.eq.s32.totalorder %s27, 1
    %p76 = por %p74, %p75
    %p78 = scmp.ne.s32.totalorder %s61, %s77
    %p79 = scmp.eq.s32.totalorder %s27, 0
    %p80 = por %p78, %p79
    %s81 = ssub.s32 %s21, %s28
    %p82 = scmp.eq.s32.totalorder %s81, 0
    %s84 = sadd.s32 %s83, 1
    %s85 = scalar_select %p82, %s83, %s84
    %p88 = pneg %p82
    %p89 = scmp.eq.s32.totalorder %s21, 1
    %p90 = por %p88, %p89
    %p91 = scmp.ne.s32.totalorder %s83, %s86
    %p92 = scmp.eq.s32.totalorder %s21, 0
    %p93 = por %p91, %p92
    %p94 = scmp.ne.s32.totalorder %s83, %s86
    %p95 = scmp.eq.s32.totalorder %s26, 1
    %p96 = por %p94, %p95
    %p97 = scmp.ne.s32.totalorder %s86, %s87
    %p98 = scmp.eq.s32.totalorder %s26, 0
    %p99 = por %p97, %p98
    %p100 = scmp.ne.s32.totalorder %s86, %s87
    %p101 = scmp.eq.s32.totalorder %s27, 1
    %p102 = por %p100, %p101
    %p104 = scmp.ne.s32.totalorder %s87, %s103
    %p105 = scmp.eq.s32.totalorder %s27, 0
    %p106 = por %p104, %p105
    %s107 = ssub.s32 %s21, %s28
    %p108 = scmp.eq.s32.totalorder %s107, 0
    %s110 = sadd.s32 %s109, 1
    %s111 = scalar_select %p108, %s109, %s110
    %p114 = pneg %p108
    %p115 = scmp.eq.s32.totalorder %s21, 1
    %p116 = por %p114, %p115
    %p117 = scmp.ne.s32.totalorder %s109, %s112
    %p118 = scmp.eq.s32.totalorder %s21, 0
    %p119 = por %p117, %p118
    %p120 = scmp.ne.s32.totalorder %s109, %s112
    %p121 = scmp.eq.s32.totalorder %s26, 1
    %p122 = por %p120, %p121
    %p123 = scmp.ne.s32.totalorder %s112, %s113
    %p124 = scmp.eq.s32.totalorder %s26, 0
    %p125 = por %p123, %p124
    %p126 = scmp.ne.s32.totalorder %s112, %s113
    %p127 = scmp.eq.s32.totalorder %s27, 1
    %p128 = por %p126, %p127
    %p130 = scmp.ne.s32.totalorder %s113, %s129
    %p131 = scmp.eq.s32.totalorder %s27, 0
    %p132 = por %p130, %p131
    %s134 = sadd.s32 %s133, 1
    %p137 = scmp.eq.s32.totalorder %s21, 1
    %p138 = scmp.ne.s32.totalorder %s133, %s135
    %p139 = scmp.eq.s32.totalorder %s21, 0
    %p140 = por %p138, %p139
    %p141 = scmp.ne.s32.totalorder %s133, %s135
    %p142 = scmp.eq.s32.totalorder %s26, 1
    %p143 = por %p141, %p142
    %p144 = scmp.ne.s32.totalorder %s135, %s136
    %p145 = scmp.eq.s32.totalorder %s26, 0
    %p146 = por %p144, %p145
    %p147 = scmp.ne.s32.totalorder %s135, %s136
    %p148 = scmp.eq.s32.totalorder %s27, 1
    %p149 = por %p147, %p148
    %p151 = scmp.ne.s32.totalorder %s136, %s150
    %p152 = scmp.eq.s32.totalorder %s27, 0
    %p153 = por %p151, %p152
    %s155 = sadd.s32 %s154, 1
    %p158 = scmp.eq.s32.totalorder %s21, 1
    %p159 = scmp.ne.s32.totalorder %s154, %s156
    %p160 = scmp.eq.s32.totalorder %s21, 0
    %p161 = por %p159, %p160
    %p162 = scmp.ne.s32.totalorder %s154, %s156
    %p163 = scmp.eq.s32.totalorder %s26, 1
    %p164 = por %p162, %p163
    %p165 = scmp.ne.s32.totalorder %s156, %s157
    %p166 = scmp.eq.s32.totalorder %s26, 0
    %p167 = por %p165, %p166
    %p168 = scmp.ne.s32.totalorder %s156, %s157
    %p169 = scmp.eq.s32.totalorder %s27, 1
    %p170 = por %p168, %p169
    %p172 = scmp.ne.s32.totalorder %s157, %s171
    %p173 = scmp.eq.s32.totalorder %s27, 0
    %p174 = por %p172, %p173
    %s176 = sadd.s32 %s175, 1
    %p179 = scmp.eq.s32.totalorder %s21, 1
    %p180 = scmp.ne.s32.totalorder %s175, %s177
    %p181 = scmp.eq.s32.totalorder %s21, 0
    %p182 = por %p180, %p181
    %p183 = scmp.ne.s32.totalorder %s175, %s177
    %p184 = scmp.eq.s32.totalorder %s26, 1
    %p185 = por %p183, %p184
    %p186 = scmp.ne.s32.totalorder %s177, %s178
    %p187 = scmp.eq.s32.totalorder %s26, 0
    %p188 = por %p186, %p187
    %p189 = scmp.ne.s32.totalorder %s177, %s178
    %p190 = scmp.eq.s32.totalorder %s27, 1
    %p191 = por %p189, %p190
    %p193 = scmp.ne.s32.totalorder %s178, %s192
    %p194 = scmp.eq.s32.totalorder %s27, 0
    %p195 = por %p193, %p194
    %s197 = sadd.s32 %s196, 1
    %p200 = scmp.eq.s32.totalorder %s21, 1
    %p201 = scmp.ne.s32.totalorder %s196, %s198
    %p202 = scmp.eq.s32.totalorder %s21, 0
    %p203 = por %p201, %p202
    %p204 = scmp.ne.s32.totalorder %s196, %s198
    %p205 = scmp.eq.s32.totalorder %s26, 1
    %p206 = por %p204, %p205
    %p207 = scmp.ne.s32.totalorder %s198, %s199
    %p208 = scmp.eq.s32.totalorder %s26, 0
    %p209 = por %p207, %p208
    %p210 = scmp.ne.s32.totalorder %s198, %s199
    %p211 = scmp.eq.s32.totalorder %s27, 1
    %p212 = por %p210, %p211
    %p214 = scmp.ne.s32.totalorder %s199, %s213
    %p215 = scmp.eq.s32.totalorder %s27, 0
    %p216 = por %p214, %p215
    %s218 = sadd.s32 %s217, 1
    %p221 = scmp.eq.s32.totalorder %s21, 1
    %p222 = scmp.ne.s32.totalorder %s217, %s219
    %p223 = scmp.eq.s32.totalorder %s21, 0
    %p224 = por %p222, %p223
    %p225 = scmp.ne.s32.totalorder %s217, %s219
    %p226 = scmp.eq.s32.totalorder %s26, 1
    %p227 = por %p225, %p226
    %p228 = scmp.ne.s32.totalorder %s219, %s220
    %p229 = scmp.eq.s32.totalorder %s26, 0
    %p230 = por %p228, %p229
    %p231 = scmp.ne.s32.totalorder %s219, %s220
    %p232 = scmp.eq.s32.totalorder %s27, 1
    %p233 = por %p231, %p232
    %p235 = scmp.ne.s32.totalorder %s220, %s234
    %p236 = scmp.eq.s32.totalorder %s27, 0
    %p237 = por %p235, %p236
    %s239 = sadd.s32 %s238, 1
    %p242 = scmp.eq.s32.totalorder %s21, 1
    %p243 = scmp.ne.s32.totalorder %s238, %s240
    %p244 = scmp.eq.s32.totalorder %s21, 0
    %p245 = por %p243, %p244
    %p246 = scmp.ne.s32.totalorder %s238, %s240
    %p247 = scmp.eq.s32.totalorder %s26, 1
    %p248 = por %p246, %p247
    %p249 = scmp.ne.s32.totalorder %s240, %s241
    %p250 = scmp.eq.s32.totalorder %s26, 0
    %p251 = por %p249, %p250
    %p252 = scmp.ne.s32.totalorder %s240, %s241
    %p253 = scmp.eq.s32.totalorder %s27, 1
    %p254 = por %p252, %p253
    %p256 = scmp.ne.s32.totalorder %s241, %s255
    %p257 = scmp.eq.s32.totalorder %s27, 0
    %p258 = por %p256, %p257
    %s260 = sadd.s32 %s259, 1
    %p263 = scmp.eq.s32.totalorder %s21, 1
    %p264 = scmp.ne.s32.totalorder %s259, %s261
    %p265 = scmp.eq.s32.totalorder %s21, 0
    %p266 = por %p264, %p265
    %p267 = scmp.ne.s32.totalorder %s259, %s261
    %p268 = scmp.eq.s32.totalorder %s26, 1
    %p269 = por %p267, %p268
    %p270 = scmp.ne.s32.totalorder %s261, %s262
    %p271 = scmp.eq.s32.totalorder %s26, 0
    %p272 = por %p270, %p271
    %p273 = scmp.ne.s32.totalorder %s261, %s262
    %p274 = scmp.eq.s32.totalorder %s27, 1
    %p275 = por %p273, %p274
    %p277 = scmp.ne.s32.totalorder %s262, %s276
    %p278 = scmp.eq.s32.totalorder %s27, 0
    %p279 = por %p277, %p278
    %s281 = sadd.s32 %s280, 1
    %p284 = scmp.eq.s32.totalorder %s21, 1
    %p285 = scmp.ne.s32.totalorder %s280, %s282
    %p286 = scmp.eq.s32.totalorder %s21, 0
    %p287 = por %p285, %p286
    %p288 = scmp.ne.s32.totalorder %s280, %s282
    %p289 = scmp.eq.s32.totalorder %s26, 1
    %p290 = por %p288, %p289
    %p291 = scmp.ne.s32.totalorder %s282, %s283
    %p292 = scmp.eq.s32.totalorder %s26, 0
    %p293 = por %p291, %p292
    %p294 = scmp.ne.s32.totalorder %s282, %s283
    %p295 = scmp.eq.s32.totalorder %s27, 1
    %p296 = por %p294, %p295
    %p298 = scmp.ne.s32.totalorder %s283, %s297
    %p299 = scmp.eq.s32.totalorder %s27, 0
    %p300 = por %p298, %p299
    %s302 = sadd.s32 %s301, 1
    %p305 = scmp.eq.s32.totalorder %s21, 1
    %p306 = scmp.ne.s32.totalorder %s301, %s303
    %p307 = scmp.eq.s32.totalorder %s21, 0
    %p308 = por %p306, %p307
    %p309 = scmp.ne.s32.totalorder %s301, %s303
    %p310 = scmp.eq.s32.totalorder %s26, 1
    %p311 = por %p309, %p310
    %p312 = scmp.ne.s32.totalorder %s303, %s304
    %p313 = scmp.eq.s32.totalorder %s26, 0
    %p314 = por %p312, %p313
    %p315 = scmp.ne.s32.totalorder %s303, %s304
    %p316 = scmp.eq.s32.totalorder %s27, 1
    %p317 = por %p315, %p316
    %p319 = scmp.ne.s32.totalorder %s304, %s318
    %p320 = scmp.eq.s32.totalorder %s27, 0
    %p321 = por %p319, %p320
    %s323 = sadd.s32 %s322, 1
    %p326 = scmp.eq.s32.totalorder %s21, 1
    %p327 = scmp.ne.s32.totalorder %s322, %s324
    %p328 = scmp.eq.s32.totalorder %s21, 0
    %p329 = por %p327, %p328
    %p330 = scmp.ne.s32.totalorder %s322, %s324
    %p331 = scmp.eq.s32.totalorder %s26, 1
    %p332 = por %p330, %p331
    %p333 = scmp.ne.s32.totalorder %s324, %s325
    %p334 = scmp.eq.s32.totalorder %s26, 0
    %p335 = por %p333, %p334
    %p336 = scmp.ne.s32.totalorder %s324, %s325
    %p337 = scmp.eq.s32.totalorder %s27, 1
    %p338 = por %p336, %p337
    %p340 = scmp.ne.s32.totalorder %s325, %s339
    %p341 = scmp.eq.s32.totalorder %s27, 0
    %p342 = por %p340, %p341
    %s344 = sadd.s32 %s343, 1
    %p347 = scmp.eq.s32.totalorder %s21, 1
    %p348 = scmp.ne.s32.totalorder %s343, %s345
    %p349 = scmp.eq.s32.totalorder %s21, 0
    %p350 = por %p348, %p349
    %p351 = scmp.ne.s32.totalorder %s343, %s345
    %p352 = scmp.eq.s32.totalorder %s26, 1
    %p353 = por %p351, %p352
    %p354 = scmp.ne.s32.totalorder %s345, %s346
    %p355 = scmp.eq.s32.totalorder %s26, 0
    %p356 = por %p354, %p355
    %p357 = scmp.ne.s32.totalorder %s345, %s346
    %p358 = scmp.eq.s32.totalorder %s27, 1
    %p359 = por %p357, %p358
    %p361 = scmp.ne.s32.totalorder %s346, %s360
    %p362 = scmp.eq.s32.totalorder %s27, 0
    %p363 = por %p361, %p362
    %s364 = ssub.s32 %s21, %s28
    %p365 = scmp.eq.s32.totalorder %s364, 0
    %s367 = sadd.s32 %s366, 1
    %s368 = scalar_select %p365, %s366, %s367
    %p371 = pneg %p365
    %p372 = scmp.eq.s32.totalorder %s21, 1
    %p373 = por %p371, %p372
    %p374 = scmp.ne.s32.totalorder %s366, %s369
    %p375 = scmp.eq.s32.totalorder %s21, 0
    %p376 = por %p374, %p375
    %p377 = scmp.ne.s32.totalorder %s366, %s369
    %p378 = scmp.eq.s32.totalorder %s26, 1
    %p379 = por %p377, %p378
    %p380 = scmp.ne.s32.totalorder %s369, %s370
    %p381 = scmp.eq.s32.totalorder %s26, 0
    %p382 = por %p380, %p381
    %p383 = scmp.ne.s32.totalorder %s369, %s370
    %p384 = scmp.eq.s32.totalorder %s27, 1
    %p385 = por %p383, %p384
    %p387 = scmp.ne.s32.totalorder %s370, %s386
    %p388 = scmp.eq.s32.totalorder %s27, 0
    %p389 = por %p387, %p388
    %p390 = scmp.le.s32.totalorder 1, %s21
    %p391 = scmp.lt.s32.totalorder %s21, 3
    %p392 = pnand %p390, %p391
    %p393 = pneg %p392
    // Predicated region
    $region9: #{spatial_learn_forward.4} parent=5 // pred_check
      _
    $region10: #{spatial_learn_forward.4} parent=5 // pred_check_branch
      %395 = sbr.rel (%p392) target = $region12
    $region11: #{spatial_learn_forward.4} parent=5 // pred_region
      %s396 = ssub.s32 %s21, 1
      // Predicated region
      $region13: #{spatial_learn_forward.4} parent=11 // pred_check
        %p397 = pneg %p146
      $region14: #{spatial_learn_forward.4} parent=11 // pred_check_branch
        %399 = sbr.rel (%p397) target = $region16
      $region15: #{spatial_learn_forward.4} parent=11 // pred_region
        _
      $region16: #{spatial_learn_forward.4} parent=11 // pred_fallthru
        _
      // Predicated region
      $region17: #{spatial_learn_forward.4} parent=11 // pred_check
        %p400 = pneg %p167
      $region18: #{spatial_learn_forward.4} parent=11 // pred_check_branch
        %402 = sbr.rel (%p400) target = $region20
      $region19: #{spatial_learn_forward.4} parent=11 // pred_region
        _
      $region20: #{spatial_learn_forward.4} parent=11 // pred_fallthru
        _
      // Predicated region
      $region21: #{spatial_learn_forward.4} parent=11 // pred_check
        %p403 = pneg %p188
      $region22: #{spatial_learn_forward.4} parent=11 // pred_check_branch
        %405 = sbr.rel (%p403) target = $region24
      $region23: #{spatial_learn_forward.4} parent=11 // pred_region
        _
      $region24: #{spatial_learn_forward.4} parent=11 // pred_fallthru
        _
      // Predicated region
      $region25: #{spatial_learn_forward.4} parent=11 // pred_check
        %p406 = pneg %p209
      $region26: #{spatial_learn_forward.4} parent=11 // pred_check_branch
        %408 = sbr.rel (%p406) target = $region28
      $region27: #{spatial_learn_forward.4} parent=11 // pred_region
        _
      $region28: #{spatial_learn_forward.4} parent=11 // pred_fallthru
        _
      // Predicated region
      $region29: #{spatial_learn_forward.4} parent=11 // pred_check
        %p409 = pneg %p230
      $region30: #{spatial_learn_forward.4} parent=11 // pred_check_branch
        %411 = sbr.rel (%p409) target = $region32
      $region31: #{spatial_learn_forward.4} parent=11 // pred_region
        _
      $region32: #{spatial_learn_forward.4} parent=11 // pred_fallthru
        _
      // Predicated region
      $region33: #{spatial_learn_forward.4} parent=11 // pred_check
        %p412 = pneg %p251
      $region34: #{spatial_learn_forward.4} parent=11 // pred_check_branch
        %414 = sbr.rel (%p412) target = $region36
      $region35: #{spatial_learn_forward.4} parent=11 // pred_region
        _
      $region36: #{spatial_learn_forward.4} parent=11 // pred_fallthru
        _
      // Predicated region
      $region37: #{spatial_learn_forward.4} parent=11 // pred_check
        %p415 = pneg %p272
      $region38: #{spatial_learn_forward.4} parent=11 // pred_check_branch
        %417 = sbr.rel (%p415) target = $region40
      $region39: #{spatial_learn_forward.4} parent=11 // pred_region
        _
      $region40: #{spatial_learn_forward.4} parent=11 // pred_fallthru
        _
      // Predicated region
      $region41: #{spatial_learn_forward.4} parent=11 // pred_check
        %p418 = pneg %p293
      $region42: #{spatial_learn_forward.4} parent=11 // pred_check_branch
        %420 = sbr.rel (%p418) target = $region44
      $region43: #{spatial_learn_forward.4} parent=11 // pred_region
        _
      $region44: #{spatial_learn_forward.4} parent=11 // pred_fallthru
        _
      // Predicated region
      $region45: #{spatial_learn_forward.4} parent=11 // pred_check
        %p421 = pneg %p314
      $region46: #{spatial_learn_forward.4} parent=11 // pred_check_branch
        %423 = sbr.rel (%p421) target = $region48
      $region47: #{spatial_learn_forward.4} parent=11 // pred_region
        _
      $region48: #{spatial_learn_forward.4} parent=11 // pred_fallthru
        _
      // Predicated region
      $region49: #{spatial_learn_forward.4} parent=11 // pred_check
        %p424 = pneg %p335
      $region50: #{spatial_learn_forward.4} parent=11 // pred_check_branch
        %426 = sbr.rel (%p424) target = $region52
      $region51: #{spatial_learn_forward.4} parent=11 // pred_region
        _
      $region52: #{spatial_learn_forward.4} parent=11 // pred_fallthru
        _
      // Predicated region
      $region53: #{spatial_learn_forward.4} parent=11 // pred_check
        %p427 = pneg %p356
      $region54: #{spatial_learn_forward.4} parent=11 // pred_check_branch
        %429 = sbr.rel (%p427) target = $region56
      $region55: #{spatial_learn_forward.4} parent=11 // pred_region
        _
      $region56: #{spatial_learn_forward.4} parent=11 // pred_fallthru
        _
    $region12: #{spatial_learn_forward.4} parent=5 // pred_fallthru
      _
    %p430 = scmp.lt.s32.totalorder %s21, 2
    // Predicated region
    $region57: #{spatial_learn_forward.4} parent=5 // pred_check
      %p431 = pneg %p430
    $region58: #{spatial_learn_forward.4} parent=5 // pred_check_branch
      %433 = sbr.rel (%p431) target = $region60
    $region59: #{spatial_learn_forward.4} parent=5 // pred_region
      // Predicated region
      $region61: #{spatial_learn_forward.4} parent=59 // pred_check
        %p434 = pneg %p41
      $region62: #{spatial_learn_forward.4} parent=59 // pred_check_branch
        %436 = sbr.rel (%p434) target = $region64
      $region63: #{spatial_learn_forward.4} parent=59 // pred_region
        %p437 = scmp.lt.s32.totalorder %s21, 1
        %s438 = scalar_select %p437, %s21, 1
        %s439 = smul.addr %s438, 4
        %s440 = scalar_lea.vmem %s0, %s439
      $region64: #{spatial_learn_forward.4} parent=59 // pred_fallthru
        _
      // Predicated region
      $region65: #{spatial_learn_forward.4} parent=59 // pred_check
        %p441 = pneg %p67
      $region66: #{spatial_learn_forward.4} parent=59 // pred_check_branch
        %443 = sbr.rel (%p441) target = $region68
      $region67: #{spatial_learn_forward.4} parent=59 // pred_region
        %p444 = scmp.lt.s32.totalorder %s21, 1
        %s445 = scalar_select %p444, %s21, 1
        %s446 = smul.addr %s445, 4
        %s447 = scalar_lea.vmem %s1, %s446
      $region68: #{spatial_learn_forward.4} parent=59 // pred_fallthru
        _
      // Predicated region
      $region69: #{spatial_learn_forward.4} parent=59 // pred_check
        %p448 = pneg %p93
      $region70: #{spatial_learn_forward.4} parent=59 // pred_check_branch
        %450 = sbr.rel (%p448) target = $region72
      $region71: #{spatial_learn_forward.4} parent=59 // pred_region
        %p451 = scmp.lt.s32.totalorder %s21, 1
        %s452 = scalar_select %p451, %s21, 1
        %s453 = smul.addr %s452, 4
        %s454 = scalar_lea.vmem %s2, %s453
      $region72: #{spatial_learn_forward.4} parent=59 // pred_fallthru
        _
      // Predicated region
      $region73: #{spatial_learn_forward.4} parent=59 // pred_check
        %p455 = pneg %p119
      $region74: #{spatial_learn_forward.4} parent=59 // pred_check_branch
        %457 = sbr.rel (%p455) target = $region76
      $region75: #{spatial_learn_forward.4} parent=59 // pred_region
        %p458 = scmp.lt.s32.totalorder %s21, 1
        %s459 = scalar_select %p458, %s21, 1
        %s460 = smul.addr %s459, 4
        %s461 = scalar_lea.vmem %s3, %s460
      $region76: #{spatial_learn_forward.4} parent=59 // pred_fallthru
        _
    $region60: #{spatial_learn_forward.4} parent=5 // pred_fallthru
      _
    %p462 = scmp.le.s32.totalorder 1, %s21
    %p463 = scmp.lt.s32.totalorder %s21, 3
    %p464 = pnand %p462, %p463
    %p465 = pneg %p464
    // Predicated region
    $region77: #{spatial_learn_forward.4} parent=5 // pred_check
      _
    $region78: #{spatial_learn_forward.4} parent=5 // pred_check_branch
      %467 = sbr.rel (%p464) target = $region80
    $region79: #{spatial_learn_forward.4} parent=5 // pred_region
      %s468 = ssub.s32 %s21, 1
      %p469 = scmp.lt.s32.totalorder %s26, 1
      %s470 = scalar_select %p469, %s26, 1
      %s471 = smul.addr %s470, 4
      %s472 = scalar_lea.vmem %s0, %s471
      %p473 = pneg %p47
      %p474 = pneg %p44
      %p475 = scmp.lt.s32.totalorder %s26, 1
      %s476 = scalar_select %p475, %s26, 1
      %s477 = smul.addr %s476, 4
      %s478 = scalar_lea.vmem %s1, %s477
      %p479 = pneg %p73
      %p480 = pneg %p70
      %p481 = scmp.lt.s32.totalorder %s26, 1
      %s482 = scalar_select %p481, %s26, 1
      %s483 = smul.addr %s482, 4
      %s484 = scalar_lea.vmem %s2, %s483
      %p485 = pneg %p99
      %p486 = pneg %p96
      %p487 = scmp.lt.s32.totalorder %s26, 1
      %s488 = scalar_select %p487, %s26, 1
      %s489 = smul.addr %s488, 4
      %s490 = scalar_lea.vmem %s3, %s489
      %p491 = pneg %p125
      %p492 = pneg %p122
      %p493 = pneg %p146
      %p494 = pneg %p143
      %p495 = pneg %p167
      %p496 = pneg %p164
      %p497 = pneg %p188
      %p498 = pneg %p185
      %p499 = pneg %p209
      %p500 = pneg %p206
      %p501 = pneg %p230
      %p502 = pneg %p227
      %p503 = pneg %p251
      %p504 = pneg %p248
      %p505 = pneg %p272
      %p506 = pneg %p269
      %p507 = pneg %p293
      %p508 = pneg %p290
      %p509 = pneg %p314
      %p510 = pneg %p311
      %p511 = pneg %p335
      %p512 = pneg %p332
      %p513 = pneg %p356
      %p514 = pneg %p353
      %p515 = pneg %p382
      %p516 = pneg %p379
      %p517 = scmp.lt.s32.totalorder %s26, 1
      %s518 = scalar_select %p517, %s26, 1
      %s519 = smul.addr %s518, 4
      %s520 = scalar_lea.vmem %s15, %s519
      %p521 = scmp.lt.s32.totalorder %s26, 1
      %s522 = scalar_select %p521, %s26, 1
      %s523 = smul.addr %s522, 4
      %s524 = scalar_lea.vmem %s0, %s523
      %p525 = scmp.lt.s32.totalorder %s26, 1
      %s526 = scalar_select %p525, %s26, 1
      %s527 = smul.addr %s526, 4
      %s528 = scalar_lea.vmem %s1, %s527
      %p529 = scmp.lt.s32.totalorder %s26, 1
      %s530 = scalar_select %p529, %s26, 1
      %s531 = smul.addr %s530, 4
      %s532 = scalar_lea.vmem %s2, %s531
      %p533 = scmp.lt.s32.totalorder %s26, 1
      %s534 = scalar_select %p533, %s26, 1
      %s535 = smul.addr %s534, 4
      %s536 = scalar_lea.vmem %s3, %s535
      %p537 = scmp.lt.s32.totalorder %s26, 1
      %s538 = scalar_select %p537, %s26, 1
      %s539 = smul.addr %s538, 4
      %s540 = scalar_lea.vmem %s15, %s539
      %v542 = vld [vmem:[%s524] sm:$0xf]
      %v543 = vld [vmem:[%s528] sm:$0xf]
      %v544 = vpack.c.bf16 %v542, %v542
      %v545 = vpack.c.bf16 %v543, %v543
      %v546 = vld [vmem:[%s5] sm:$0xf]
      %v547 = vld [vmem:[%s5 + $0x4] sm:$0xf]
      %v548 = vld [vmem:[%s5 + $0x8] sm:$0xf]
      %v549 = vld [vmem:[%s5 + $0xc] sm:$0xf]
      %v550 = vld [vmem:[%s5 + $0x10] sm:$0xf]
      %v551 = vld [vmem:[%s5 + $0x14] sm:$0xf]
      %v552 = vld [vmem:[%s5 + $0x18] sm:$0xf]
      %v553 = vld [vmem:[%s5 + $0x1c] sm:$0xf]
      %v562 = vunpack.c.l.b16 %v546
      %v563 = vunpack.c.l.b16 %v547
      %v564 = vunpack.c.l.b16 %v548
      %v565 = vunpack.c.l.b16 %v549
      %v566 = vunpack.c.l.b16 %v550
      %v567 = vunpack.c.l.b16 %v551
      %v568 = vunpack.c.l.b16 %v552
      %v569 = vunpack.c.l.b16 %v553
      %v570 = vpack.c.b16 %v563, %v562
      %v571 = vpack.c.b16 %v565, %v564
      %v572 = vpack.c.b16 %v567, %v566
      %v573 = vpack.c.b16 %v569, %v568
      %vm578 = vcmask 523264
      %v580 = vsel %vm578, %v544, 0
      %582 = vmatpush.bf16.msra.mxu0 0
      %583 = vmatpush.bf16.msra.mxu0 0
      %584 = vmatpush.bf16.msra.mxu0 0
      %585 = vmatpush.bf16.msra.mxu0 0
      %586 = vmatpush.bf16.msra.mxu0 %v573
      %587 = vmatpush.bf16.msra.mxu0 %v572
      %588 = vmatpush.bf16.msra.mxu0 %v571
      %589 = vmatpush.bf16.msra.mxu0 %v570
      %590 = vmatmul.bf16.gmra.mxu0 %v580
      %v591 = vpop.f32.mrf.mxu0
      %v592 = vadd.f32 0.0, %v591
      %v593 = vpop.f32.mrf.mxu0
      %594 = vdwg.mxu0
      %v595 = vld [vmem:[%s6] sm:$0xf]
      %v596 = vld [vmem:[%s6 + $0x4] sm:$0xf]
      %v597 = vld [vmem:[%s6 + $0x8] sm:$0xf]
      %v598 = vld [vmem:[%s6 + $0xc] sm:$0xf]
      %v599 = vld [vmem:[%s6 + $0x10] sm:$0xf]
      %v600 = vld [vmem:[%s6 + $0x14] sm:$0xf]
      %v601 = vld [vmem:[%s6 + $0x18] sm:$0xf]
      %v602 = vld [vmem:[%s6 + $0x1c] sm:$0xf]
      %v611 = vunpack.c.l.b16 %v595
      %v612 = vunpack.c.l.b16 %v596
      %v613 = vunpack.c.l.b16 %v597
      %v614 = vunpack.c.l.b16 %v598
      %v615 = vunpack.c.l.b16 %v599
      %v616 = vunpack.c.l.b16 %v600
      %v617 = vunpack.c.l.b16 %v601
      %v618 = vunpack.c.l.b16 %v602
      %v619 = vpack.c.b16 %v612, %v611
      %v620 = vpack.c.b16 %v614, %v613
      %v621 = vpack.c.b16 %v616, %v615
      %v622 = vpack.c.b16 %v618, %v617
      %v628 = vsel %vm578, %v545, 0
      %630 = vmatpush.bf16.msra.mxu0 0
      %631 = vmatpush.bf16.msra.mxu0 0
      %632 = vmatpush.bf16.msra.mxu0 0
      %633 = vmatpush.bf16.msra.mxu0 0
      %634 = vmatpush.bf16.msra.mxu0 %v622
      %635 = vmatpush.bf16.msra.mxu0 %v621
      %636 = vmatpush.bf16.msra.mxu0 %v620
      %637 = vmatpush.bf16.msra.mxu0 %v619
      %638 = vmatmul.bf16.gmra.mxu0 %v628
      %v639 = vpop.f32.mrf.mxu0
      %v640 = vadd.f32 0.0, %v639
      %v641 = vpop.f32.mrf.mxu0
      %642 = vdwg.mxu0
      %v643 = vld [vmem:[%s7] sm:$0xf]
      %v644 = vld [vmem:[%s7 + $0x4] sm:$0xf]
      %v645 = vld [vmem:[%s7 + $0x8] sm:$0xf]
      %v646 = vld [vmem:[%s7 + $0xc] sm:$0xf]
      %v647 = vld [vmem:[%s7 + $0x10] sm:$0xf]
      %v648 = vld [vmem:[%s7 + $0x14] sm:$0xf]
      %v649 = vld [vmem:[%s7 + $0x18] sm:$0xf]
      %v650 = vld [vmem:[%s7 + $0x1c] sm:$0xf]
      %v659 = vunpack.c.l.b16 %v643
      %v660 = vunpack.c.l.b16 %v644
      %v661 = vunpack.c.l.b16 %v645
      %v662 = vunpack.c.l.b16 %v646
      %v663 = vunpack.c.l.b16 %v647
      %v664 = vunpack.c.l.b16 %v648
      %v665 = vunpack.c.l.b16 %v649
      %v666 = vunpack.c.l.b16 %v650
      %v667 = vpack.c.b16 %v660, %v659
      %v668 = vpack.c.b16 %v662, %v661
      %v669 = vpack.c.b16 %v664, %v663
      %v670 = vpack.c.b16 %v666, %v665
      %675 = vmatpush.bf16.msra.mxu0 0
      %676 = vmatpush.bf16.msra.mxu0 0
      %677 = vmatpush.bf16.msra.mxu0 0
      %678 = vmatpush.bf16.msra.mxu0 0
      %679 = vmatpush.bf16.msra.mxu0 %v670
      %680 = vmatpush.bf16.msra.mxu0 %v669
      %681 = vmatpush.bf16.msra.mxu0 %v668
      %682 = vmatpush.bf16.msra.mxu0 %v667
      %683 = vmatmul.bf16.gmra.mxu0 %v628
      %v684 = vpop.f32.mrf.mxu0
      %v685 = vadd.f32 0.0, %v684
      %v686 = vpop.f32.mrf.mxu0
      %687 = vdwg.mxu0
      %v688 = vmul.f32 %v592, %v592
      %vm689 = vcmask 257024
      %v690 = vsel %vm689, %v688, 0.0
      %v691 = vrot.slane %v690, 4
      %v692 = vadd.f32 %v690, %v691
      %v693 = vrot.slane %v692, 2
      %v694 = vadd.f32 %v692, %v693
      %v695 = vrot.slane %v694, 1
      %v696 = vadd.f32 %v694, %v695
      %v697 = vmax.f32 %v696, 1e-24
      %v698 = vrsqrt.pop %v697
      %v699 = vmul.f32 %v698, %v697
      %v700 = vmul.f32 %v699, %v698
      %v701 = vmul.f32 0.5, %v700
      %v702 = vsub.f32 1.5, %v701
      %v703 = vmul.f32 %v698, %v702
      %vm704 = vweird.f32 %v697
      %vm705 = vweird.f32 %v698
      %vm706 = vmor %vm704, %vm705
      %v707 = vsel %vm706, %v698, %v703
      %v708 = vmul.f32 %v592, %v707
      %v709 = vmul.f32 %v640, %v640
      %v710 = vsel %vm689, %v709, 0.0
      %v711 = vrot.slane %v710, 4
      %v712 = vadd.f32 %v710, %v711
      %v713 = vrot.slane %v712, 2
      %v714 = vadd.f32 %v712, %v713
      %v715 = vrot.slane %v714, 1
      %v716 = vadd.f32 %v714, %v715
      %v717 = vmax.f32 %v716, 1e-24
      %v718 = vrsqrt.pop %v717
      %v719 = vmul.f32 %v718, %v717
      %v720 = vmul.f32 %v719, %v718
      %v721 = vmul.f32 0.5, %v720
      %v722 = vsub.f32 1.5, %v721
      %v723 = vmul.f32 %v718, %v722
      %vm724 = vweird.f32 %v717
      %vm725 = vweird.f32 %v718
      %vm726 = vmor %vm724, %vm725
      %v727 = vsel %vm726, %v718, %v723
      %v728 = vmul.f32 %v640, %v727
      %v729 = vpack.c.bf16 %v728, %v728
      %v730 = vpack.c.bf16 %v708, %v708
      %v731 = vld [vmem:[%s4] sm:$0xff]
      %v732 = vld [vmem:[%s4 + $0x8] sm:$0xff]
      %v733 = vld [vmem:[%s4 + $0x10] sm:$0xff]
      %v734 = vld [vmem:[%s4 + $0x18] sm:$0xff]
      %735 = vxpose.xlu0.c.b16.start [1/8] %v729, 128
      %736 = vxpose.xlu0.c.b16.cont [2/8] 0, 128
      %737 = vxpose.xlu0.c.b16.cont [3/8] 0, 128
      %738 = vxpose.xlu0.c.b16.cont [4/8] 0, 128
      %739 = vxpose.xlu0.c.b16.cont [5/8] 0, 128
      %740 = vxpose.xlu0.c.b16.cont [6/8] 0, 128
      %741 = vxpose.xlu0.c.b16.cont [7/8] 0, 128
      %742 = vxpose.xlu0.c.b16.end [8/8] 0, 128
      %v743 = vpop.trf.xlu0
      %v744 = vpop.trf.xlu0
      %v745 = vpop.trf.xlu0
      %v746 = vpop.trf.xlu0
      %v747 = vpop.trf.xlu0
      %v748 = vpop.trf.xlu0
      %v749 = vpop.trf.xlu0
      %v750 = vpop.trf.xlu0
      %vm751 = vcmask 31744
      %v753 = vsel %vm751, %v743, 0
      %v756 = vsel %vm751, %v744, 0
      %vm758 = vcmask 1041408
      %v760 = vsel %vm758, %v730, 0
      %762 = vmatpush.bf16.msra.mxu0 0
      %763 = vmatpush.bf16.msra.mxu0 0
      %764 = vmatpush.bf16.msra.mxu0 0
      %765 = vmatpush.bf16.msra.mxu0 0
      %766 = vmatpush.bf16.msra.mxu0 0
      %767 = vmatpush.bf16.msra.mxu0 0
      %768 = vmatpush.bf16.msra.mxu0 0
      %769 = vmatpush.bf16.msra.mxu0 %v760
      %770 = vmatmul.bf16.gmra.mxu0 %v753
      %v771 = vpop.f32.mrf.mxu0
      %v772 = vadd.f32 %v731, %v771
      %v773 = vpop.f32.mrf.mxu0
      %v774 = vadd.f32 %v732, %v773
      %775 = vmatmul.bf16.gmra.mxu0 %v756
      %v776 = vpop.f32.mrf.mxu0
      %v777 = vadd.f32 %v733, %v776
      %v778 = vpop.f32.mrf.mxu0
      %v779 = vadd.f32 %v734, %v778
      %780 = vdwg.mxu0
      %vm781 = vcmask 261120
      %v782 = vsel %vm781, %v772, -inf
      %783 = vmax.xlane.f32.xlu0 %v782
      %v784 = vpop.xlane.xlu0 %783
      %v785 = vsel %vm781, %v774, -inf
      %786 = vmax.xlane.f32.xlu0 %v785
      %v787 = vpop.xlane.xlu0 %786
      %v788 = vsel %vm781, %v777, -inf
      %789 = vmax.xlane.f32.xlu0 %v788
      %v790 = vpop.xlane.xlu0 %789
      %v791 = vsel %vm781, %v779, -inf
      %792 = vmax.xlane.f32.xlu0 %v791
      %v793 = vpop.xlane.xlu0 %792
      %v794 = vsub.f32 %v772, %v784
      %v795 = vsub.f32 %v774, %v787
      %v796 = vsub.f32 %v777, %v790
      %v797 = vsub.f32 %v779, %v793
      %v798 = vmul.f32 %v794, 1.442695
      %v799 = vpow.pop %v798
      %v800 = vmul.f32 %v795, 1.442695
      %v801 = vpow.pop %v800
      %v802 = vmul.f32 %v796, 1.442695
      %v803 = vpow.pop %v802
      %v804 = vmul.f32 %v797, 1.442695
      %v805 = vpow.pop %v804
      %v806 = vsel %vm781, %v799, 0.0
      %807 = vadd.xlane.f32.xlu0 %v806
      %v808 = vpop.xlane.xlu0 %807
      %v809 = vsel %vm781, %v801, 0.0
      %810 = vadd.xlane.f32.xlu0 %v809
      %v811 = vpop.xlane.xlu0 %810
      %v812 = vsel %vm781, %v803, 0.0
      %813 = vadd.xlane.f32.xlu0 %v812
      %v814 = vpop.xlane.xlu0 %813
      %v815 = vsel %vm781, %v805, 0.0
      %816 = vadd.xlane.f32.xlu0 %v815
      %v817 = vpop.xlane.xlu0 %816
      %v818 = vrcp.pop %v808
      %v819 = vrcp.pop %v811
      %v820 = vrcp.pop %v814
      %v821 = vrcp.pop %v817
      %v822 = vmul.f32 %v799, %v818
      %v823 = vmul.f32 %v801, %v819
      %v824 = vmul.f32 %v803, %v820
      %v825 = vmul.f32 %v805, %v821
      %v826 = vpack.c.bf16 %v685, %v685
      %v827 = vpack.c.bf16 %v823, %v822
      %v828 = vpack.c.bf16 %v825, %v824
      %v830 = vsel %vm781, %v826, 0
      %v833 = vsel %vm781, %v827, 0
      %v836 = vsel %vm781, %v828, 0
      %838 = vmatpush.bf16.xpose.msra.mxu0 0
      %839 = vmatpush.bf16.xpose.msra.mxu0 0
      %840 = vmatpush.bf16.xpose.msra.mxu0 0
      %841 = vmatpush.bf16.xpose.msra.mxu0 0
      %842 = vmatpush.bf16.xpose.msra.mxu0 0
      %843 = vmatpush.bf16.xpose.msra.mxu0 0
      %844 = vmatpush.bf16.xpose.msra.mxu0 %v836
      %845 = vmatpush.bf16.xpose.msra.mxu0 %v833
      %846 = vmatmul.bf16.gmra.mxu0 %v830
      %v847 = vpop.f32.mrf.mxu0
      %v848 = vadd.f32 0.0, %v847
      %v849 = vpop.f32.mrf.mxu0
      %850 = vdwg.mxu0
      %v851 = vpack.c.bf16 %v848, %v848
      %v852 = vld [vmem:[%s8] sm:$0xf]
      %v853 = vld [vmem:[%s8 + $0x4] sm:$0xf]
      %v854 = vld [vmem:[%s8 + $0x8] sm:$0xf]
      %v855 = vld [vmem:[%s8 + $0xc] sm:$0xf]
      %v856 = vld [vmem:[%s9] sm:$0x1]
      %v858 = vperm.slane %v856, 0
      %v864 = vunpack.c.l.b16 %v852
      %v865 = vunpack.c.l.b16 %v853
      %v866 = vunpack.c.l.b16 %v854
      %v867 = vunpack.c.l.b16 %v855
      %v868 = vpack.c.b16 %v865, %v864
      %v869 = vpack.c.b16 %v867, %v866
      %v873 = vsel %vm781, %v851, 0
      %875 = vmatpush.bf16.msra.mxu0 0
      %876 = vmatpush.bf16.msra.mxu0 0
      %877 = vmatpush.bf16.msra.mxu0 0
      %878 = vmatpush.bf16.msra.mxu0 0
      %879 = vmatpush.bf16.msra.mxu0 0
      %880 = vmatpush.bf16.msra.mxu0 0
      %881 = vmatpush.bf16.msra.mxu0 %v869
      %882 = vmatpush.bf16.msra.mxu0 %v868
      %883 = vmatmul.bf16.gmra.mxu0 %v873
      %v884 = vpop.f32.mrf.mxu0
      %v885 = vadd.f32 %v858, %v884
      %v886 = vpop.f32.mrf.mxu0
      %887 = vdwg.mxu0
      %v888 = vmul.f32 %v885, 0.70710677
      %v889 = vand.u32 2147483647, %v888
      %v890 = vmul.f32 %v889, 0.3275911
      %v891 = vadd.f32 %v890, 1.0
      %v892 = vrcp.pop %v891
      %v893 = vmul.f32 %v891, %v892
      %v894 = vsub.f32 1.0, %v893
      %v895 = vmul.f32 %v892, %v894
      %v896 = vadd.f32 %v892, %v895
      %vm897 = vweird.f32 %v891
      %vm898 = vweird.f32 %v892
      %vm899 = vmor %vm897, %vm898
      %v900 = vsel %vm899, %v892, %v896
      %v901 = vand.u32 2147483647, %v891
      %vm902 = vcmp.eq.f32.partialorder %v901, 8.507059e+37
      %v903 = vand.u32 %v891, 2147483648
      %v904 = vor.u32 1.1754944e-38, %v903
      %v905 = vsel %vm902, %v904, %v900
      %v906 = vmul.f32 1.0, %v905
      %v907 = vmul.f32 %v906, 1.0614054
      %v908 = vadd.f32 %v907, -1.4531521
      %v909 = vmul.f32 %v906, %v908
      %v910 = vadd.f32 %v909, 1.4214138
      %v911 = vmul.f32 %v906, %v910
      %v912 = vadd.f32 %v911, -0.28449672
      %v913 = vmul.f32 %v906, %v912
      %v914 = vadd.f32 %v913, 0.2548296
      %v915 = vmul.f32 %v906, %v914
      %v916 = vsub.f32 0.0, %v889
      %v917 = vmul.f32 %v916, %v889
      %v918 = vmul.f32 %v917, 1.442695
      %v919 = vpow.pop %v918
      %v920 = vmul.f32 %v915, %v919
      %v921 = vsub.f32 1.0, %v920
      %vm922 = vcmp.lt.f32.partialorder %v888, 0.0
      %v923 = vsub.f32 0.0, %v921
      %v924 = vsel %vm922, %v923, %v921
      %v925 = vmul.f32 %v885, 0.5
      %v926 = vadd.f32 %v924, 1.0
      %v927 = vmul.f32 %v925, %v926
      %v928 = vld [vmem:[%s532] sm:$0xf]
      %v929 = vld [vmem:[%s536] sm:$0xf]
      %v930 = vpack.c.bf16 %v928, %v928
      %v931 = vpack.c.bf16 %v929, %v929
      %v932 = vld [vmem:[%s10] sm:$0xf]
      %v933 = vld [vmem:[%s10 + $0x4] sm:$0xf]
      %v934 = vld [vmem:[%s10 + $0x8] sm:$0xf]
      %v935 = vld [vmem:[%s10 + $0xc] sm:$0xf]
      %v936 = vld [vmem:[%s10 + $0x10] sm:$0xf]
      %v937 = vld [vmem:[%s10 + $0x14] sm:$0xf]
      %v938 = vld [vmem:[%s10 + $0x18] sm:$0xf]
      %v939 = vld [vmem:[%s10 + $0x1c] sm:$0xf]
      %v948 = vunpack.c.l.b16 %v932
      %v949 = vunpack.c.l.b16 %v933
      %v950 = vunpack.c.l.b16 %v934
      %v951 = vunpack.c.l.b16 %v935
      %v952 = vunpack.c.l.b16 %v936
      %v953 = vunpack.c.l.b16 %v937
      %v954 = vunpack.c.l.b16 %v938
      %v955 = vunpack.c.l.b16 %v939
      %v956 = vpack.c.b16 %v949, %v948
      %v957 = vpack.c.b16 %v951, %v950
      %v958 = vpack.c.b16 %v953, %v952
      %v959 = vpack.c.b16 %v955, %v954
      %v965 = vsel %vm578, %v930, 0
      %967 = vmatpush.bf16.msra.mxu0 0
      %968 = vmatpush.bf16.msra.mxu0 0
      %969 = vmatpush.bf16.msra.mxu0 0
      %970 = vmatpush.bf16.msra.mxu0 0
      %971 = vmatpush.bf16.msra.mxu0 %v959
      %972 = vmatpush.bf16.msra.mxu0 %v958
      %973 = vmatpush.bf16.msra.mxu0 %v957
      %974 = vmatpush.bf16.msra.mxu0 %v956
      %975 = vmatmul.bf16.gmra.mxu0 %v965
      %v976 = vpop.f32.mrf.mxu0
      %v977 = vadd.f32 0.0, %v976
      %v978 = vpop.f32.mrf.mxu0
      %979 = vdwg.mxu0
      %v980 = vld [vmem:[%s11] sm:$0xf]
      %v981 = vld [vmem:[%s11 + $0x4] sm:$0xf]
      %v982 = vld [vmem:[%s11 + $0x8] sm:$0xf]
      %v983 = vld [vmem:[%s11 + $0xc] sm:$0xf]
      %v984 = vld [vmem:[%s11 + $0x10] sm:$0xf]
      %v985 = vld [vmem:[%s11 + $0x14] sm:$0xf]
      %v986 = vld [vmem:[%s11 + $0x18] sm:$0xf]
      %v987 = vld [vmem:[%s11 + $0x1c] sm:$0xf]
      %v996 = vunpack.c.l.b16 %v980
      %v997 = vunpack.c.l.b16 %v981
      %v998 = vunpack.c.l.b16 %v982
      %v999 = vunpack.c.l.b16 %v983
      %v1000 = vunpack.c.l.b16 %v984
      %v1001 = vunpack.c.l.b16 %v985
      %v1002 = vunpack.c.l.b16 %v986
      %v1003 = vunpack.c.l.b16 %v987
      %v1004 = vpack.c.b16 %v997, %v996
      %v1005 = vpack.c.b16 %v999, %v998
      %v1006 = vpack.c.b16 %v1001, %v1000
      %v1007 = vpack.c.b16 %v1003, %v1002
      %v1013 = vsel %vm578, %v931, 0
      %1015 = vmatpush.bf16.msra.mxu0 0
      %1016 = vmatpush.bf16.msra.mxu0 0
      %1017 = vmatpush.bf16.msra.mxu0 0
      %1018 = vmatpush.bf16.msra.mxu0 0
      %1019 = vmatpush.bf16.msra.mxu0 %v1007
      %1020 = vmatpush.bf16.msra.mxu0 %v1006
      %1021 = vmatpush.bf16.msra.mxu0 %v1005
      %1022 = vmatpush.bf16.msra.mxu0 %v1004
      %1023 = vmatmul.bf16.gmra.mxu0 %v1013
      %v1024 = vpop.f32.mrf.mxu0
      %v1025 = vadd.f32 0.0, %v1024
      %v1026 = vpop.f32.mrf.mxu0
      %1027 = vdwg.mxu0
      %v1028 = vld [vmem:[%s12] sm:$0xf]
      %v1029 = vld [vmem:[%s12 + $0x4] sm:$0xf]
      %v1030 = vld [vmem:[%s12 + $0x8] sm:$0xf]
      %v1031 = vld [vmem:[%s12 + $0xc] sm:$0xf]
      %v1032 = vld [vmem:[%s12 + $0x10] sm:$0xf]
      %v1033 = vld [vmem:[%s12 + $0x14] sm:$0xf]
      %v1034 = vld [vmem:[%s12 + $0x18] sm:$0xf]
      %v1035 = vld [vmem:[%s12 + $0x1c] sm:$0xf]
      %v1044 = vunpack.c.l.b16 %v1028
      %v1045 = vunpack.c.l.b16 %v1029
      %v1046 = vunpack.c.l.b16 %v1030
      %v1047 = vunpack.c.l.b16 %v1031
      %v1048 = vunpack.c.l.b16 %v1032
      %v1049 = vunpack.c.l.b16 %v1033
      %v1050 = vunpack.c.l.b16 %v1034
      %v1051 = vunpack.c.l.b16 %v1035
      %v1052 = vpack.c.b16 %v1045, %v1044
      %v1053 = vpack.c.b16 %v1047, %v1046
      %v1054 = vpack.c.b16 %v1049, %v1048
      %v1055 = vpack.c.b16 %v1051, %v1050
      %1060 = vmatpush.bf16.msra.mxu0 0
      %1061 = vmatpush.bf16.msra.mxu0 0
      %1062 = vmatpush.bf16.msra.mxu0 0
      %1063 = vmatpush.bf16.msra.mxu0 0
      %1064 = vmatpush.bf16.msra.mxu0 %v1055
      %1065 = vmatpush.bf16.msra.mxu0 %v1054
      %1066 = vmatpush.bf16.msra.mxu0 %v1053
      %1067 = vmatpush.bf16.msra.mxu0 %v1052
      %1068 = vmatmul.bf16.gmra.mxu0 %v1013
      %v1069 = vpop.f32.mrf.mxu0
      %v1070 = vadd.f32 0.0, %v1069
      %v1071 = vpop.f32.mrf.mxu0
      %1072 = vdwg.mxu0
      %v1073 = vmul.f32 %v977, %v977
      %v1074 = vsel %vm689, %v1073, 0.0
      %v1075 = vrot.slane %v1074, 4
      %v1076 = vadd.f32 %v1074, %v1075
      %v1077 = vrot.slane %v1076, 2
      %v1078 = vadd.f32 %v1076, %v1077
      %v1079 = vrot.slane %v1078, 1
      %v1080 = vadd.f32 %v1078, %v1079
      %v1081 = vmax.f32 %v1080, 1e-24
      %v1082 = vrsqrt.pop %v1081
      %v1083 = vmul.f32 %v1082, %v1081
      %v1084 = vmul.f32 %v1083, %v1082
      %v1085 = vmul.f32 0.5, %v1084
      %v1086 = vsub.f32 1.5, %v1085
      %v1087 = vmul.f32 %v1082, %v1086
      %vm1088 = vweird.f32 %v1081
      %vm1089 = vweird.f32 %v1082
      %vm1090 = vmor %vm1088, %vm1089
      %v1091 = vsel %vm1090, %v1082, %v1087
      %v1092 = vmul.f32 %v977, %v1091
      %v1093 = vmul.f32 %v1025, %v1025
      %v1094 = vsel %vm689, %v1093, 0.0
      %v1095 = vrot.slane %v1094, 4
      %v1096 = vadd.f32 %v1094, %v1095
      %v1097 = vrot.slane %v1096, 2
      %v1098 = vadd.f32 %v1096, %v1097
      %v1099 = vrot.slane %v1098, 1
      %v1100 = vadd.f32 %v1098, %v1099
      %v1101 = vmax.f32 %v1100, 1e-24
      %v1102 = vrsqrt.pop %v1101
      %v1103 = vmul.f32 %v1102, %v1101
      %v1104 = vmul.f32 %v1103, %v1102
      %v1105 = vmul.f32 0.5, %v1104
      %v1106 = vsub.f32 1.5, %v1105
      %v1107 = vmul.f32 %v1102, %v1106
      %vm1108 = vweird.f32 %v1101
      %vm1109 = vweird.f32 %v1102
      %vm1110 = vmor %vm1108, %vm1109
      %v1111 = vsel %vm1110, %v1102, %v1107
      %v1112 = vmul.f32 %v1025, %v1111
      %v1113 = vpack.c.bf16 %v1112, %v1112
      %v1114 = vpack.c.bf16 %v1092, %v1092
      %1115 = vxpose.xlu0.c.b16.start [1/8] %v1113, 128
      %1116 = vxpose.xlu0.c.b16.cont [2/8] 0, 128
      %1117 = vxpose.xlu0.c.b16.cont [3/8] 0, 128
      %1118 = vxpose.xlu0.c.b16.cont [4/8] 0, 128
      %1119 = vxpose.xlu0.c.b16.cont [5/8] 0, 128
      %1120 = vxpose.xlu0.c.b16.cont [6/8] 0, 128
      %1121 = vxpose.xlu0.c.b16.cont [7/8] 0, 128
      %1122 = vxpose.xlu0.c.b16.end [8/8] 0, 128
      %v1123 = vpop.trf.xlu0
      %v1124 = vpop.trf.xlu0
      %v1125 = vpop.trf.xlu0
      %v1126 = vpop.trf.xlu0
      %v1127 = vpop.trf.xlu0
      %v1128 = vpop.trf.xlu0
      %v1129 = vpop.trf.xlu0
      %v1130 = vpop.trf.xlu0
      %v1132 = vsel %vm751, %v1123, 0
      %v1135 = vsel %vm751, %v1124, 0
      %v1138 = vsel %vm758, %v1114, 0
      %1140 = vmatpush.bf16.msra.mxu0 0
      %1141 = vmatpush.bf16.msra.mxu0 0
      %1142 = vmatpush.bf16.msra.mxu0 0
      %1143 = vmatpush.bf16.msra.mxu0 0
      %1144 = vmatpush.bf16.msra.mxu0 0
      %1145 = vmatpush.bf16.msra.mxu0 0
      %1146 = vmatpush.bf16.msra.mxu0 0
      %1147 = vmatpush.bf16.msra.mxu0 %v1138
      %1148 = vmatmul.bf16.gmra.mxu0 %v1132
      %v1149 = vpop.f32.mrf.mxu0
      %v1150 = vadd.f32 %v731, %v1149
      %v1151 = vpop.f32.mrf.mxu0
      %v1152 = vadd.f32 %v732, %v1151
      %1153 = vmatmul.bf16.gmra.mxu0 %v1135
      %v1154 = vpop.f32.mrf.mxu0
      %v1155 = vadd.f32 %v733, %v1154
      %v1156 = vpop.f32.mrf.mxu0
      %v1157 = vadd.f32 %v734, %v1156
      %1158 = vdwg.mxu0
      %v1159 = vsel %vm781, %v1150, -inf
      %1160 = vmax.xlane.f32.xlu0 %v1159
      %v1161 = vpop.xlane.xlu0 %1160
      %v1162 = vsel %vm781, %v1152, -inf
      %1163 = vmax.xlane.f32.xlu0 %v1162
      %v1164 = vpop.xlane.xlu0 %1163
      %v1165 = vsel %vm781, %v1155, -inf
      %1166 = vmax.xlane.f32.xlu0 %v1165
      %v1167 = vpop.xlane.xlu0 %1166
      %v1168 = vsel %vm781, %v1157, -inf
      %1169 = vmax.xlane.f32.xlu0 %v1168
      %v1170 = vpop.xlane.xlu0 %1169
      %v1171 = vsub.f32 %v1150, %v1161
      %v1172 = vsub.f32 %v1152, %v1164
      %v1173 = vsub.f32 %v1155, %v1167
      %v1174 = vsub.f32 %v1157, %v1170
      %v1175 = vmul.f32 %v1171, 1.442695
      %v1176 = vpow.pop %v1175
      %v1177 = vmul.f32 %v1172, 1.442695
      %v1178 = vpow.pop %v1177
      %v1179 = vmul.f32 %v1173, 1.442695
      %v1180 = vpow.pop %v1179
      %v1181 = vmul.f32 %v1174, 1.442695
      %v1182 = vpow.pop %v1181
      %v1183 = vsel %vm781, %v1176, 0.0
      %1184 = vadd.xlane.f32.xlu0 %v1183
      %v1185 = vpop.xlane.xlu0 %1184
      %v1186 = vsel %vm781, %v1178, 0.0
      %1187 = vadd.xlane.f32.xlu0 %v1186
      %v1188 = vpop.xlane.xlu0 %1187
      %v1189 = vsel %vm781, %v1180, 0.0
      %1190 = vadd.xlane.f32.xlu0 %v1189
      %v1191 = vpop.xlane.xlu0 %1190
      %v1192 = vsel %vm781, %v1182, 0.0
      %1193 = vadd.xlane.f32.xlu0 %v1192
      %v1194 = vpop.xlane.xlu0 %1193
      %v1195 = vrcp.pop %v1185
      %v1196 = vrcp.pop %v1188
      %v1197 = vrcp.pop %v1191
      %v1198 = vrcp.pop %v1194
      %v1199 = vmul.f32 %v1176, %v1195
      %v1200 = vmul.f32 %v1178, %v1196
      %v1201 = vmul.f32 %v1180, %v1197
      %v1202 = vmul.f32 %v1182, %v1198
      %v1203 = vpack.c.bf16 %v1070, %v1070
      %v1204 = vpack.c.bf16 %v1200, %v1199
      %v1205 = vpack.c.bf16 %v1202, %v1201
      %v1207 = vsel %vm781, %v1203, 0
      %v1210 = vsel %vm781, %v1204, 0
      %v1213 = vsel %vm781, %v1205, 0
      %1215 = vmatpush.bf16.xpose.msra.mxu0 0
      %1216 = vmatpush.bf16.xpose.msra.mxu0 0
      %1217 = vmatpush.bf16.xpose.msra.mxu0 0
      %1218 = vmatpush.bf16.xpose.msra.mxu0 0
      %1219 = vmatpush.bf16.xpose.msra.mxu0 0
      %1220 = vmatpush.bf16.xpose.msra.mxu0 0
      %1221 = vmatpush.bf16.xpose.msra.mxu0 %v1213
      %1222 = vmatpush.bf16.xpose.msra.mxu0 %v1210
      %1223 = vmatmul.bf16.gmra.mxu0 %v1207
      %v1224 = vpop.f32.mrf.mxu0
      %v1225 = vadd.f32 0.0, %v1224
      %v1226 = vpop.f32.mrf.mxu0
      %1227 = vdwg.mxu0
      %v1228 = vpack.c.bf16 %v1225, %v1225
      %v1229 = vld [vmem:[%s13] sm:$0xf]
      %v1230 = vld [vmem:[%s13 + $0x4] sm:$0xf]
      %v1231 = vld [vmem:[%s13 + $0x8] sm:$0xf]
      %v1232 = vld [vmem:[%s13 + $0xc] sm:$0xf]
      %v1233 = vld [vmem:[%s14] sm:$0x1]
      %v1235 = vperm.slane %v1233, 0
      %v1241 = vunpack.c.l.b16 %v1229
      %v1242 = vunpack.c.l.b16 %v1230
      %v1243 = vunpack.c.l.b16 %v1231
      %v1244 = vunpack.c.l.b16 %v1232
      %v1245 = vpack.c.b16 %v1242, %v1241
      %v1246 = vpack.c.b16 %v1244, %v1243
      %v1250 = vsel %vm781, %v1228, 0
      %1252 = vmatpush.bf16.msra.mxu0 0
      %1253 = vmatpush.bf16.msra.mxu0 0
      %1254 = vmatpush.bf16.msra.mxu0 0
      %1255 = vmatpush.bf16.msra.mxu0 0
      %1256 = vmatpush.bf16.msra.mxu0 0
      %1257 = vmatpush.bf16.msra.mxu0 0
      %1258 = vmatpush.bf16.msra.mxu0 %v1246
      %1259 = vmatpush.bf16.msra.mxu0 %v1245
      %1260 = vmatmul.bf16.gmra.mxu0 %v1250
      %v1261 = vpop.f32.mrf.mxu0
      %v1262 = vadd.f32 %v1235, %v1261
      %v1263 = vpop.f32.mrf.mxu0
      %1264 = vdwg.mxu0
      %v1265 = vmul.f32 %v1262, 0.70710677
      %v1266 = vand.u32 2147483647, %v1265
      %v1267 = vmul.f32 %v1266, 0.3275911
      %v1268 = vadd.f32 %v1267, 1.0
      %v1269 = vrcp.pop %v1268
      %v1270 = vmul.f32 %v1268, %v1269
      %v1271 = vsub.f32 1.0, %v1270
      %v1272 = vmul.f32 %v1269, %v1271
      %v1273 = vadd.f32 %v1269, %v1272
      %vm1274 = vweird.f32 %v1268
      %vm1275 = vweird.f32 %v1269
      %vm1276 = vmor %vm1274, %vm1275
      %v1277 = vsel %vm1276, %v1269, %v1273
      %v1278 = vand.u32 2147483647, %v1268
      %vm1279 = vcmp.eq.f32.partialorder %v1278, 8.507059e+37
      %v1280 = vand.u32 %v1268, 2147483648
      %v1281 = vor.u32 1.1754944e-38, %v1280
      %v1282 = vsel %vm1279, %v1281, %v1277
      %v1283 = vmul.f32 1.0, %v1282
      %v1284 = vmul.f32 %v1283, 1.0614054
      %v1285 = vadd.f32 %v1284, -1.4531521
      %v1286 = vmul.f32 %v1283, %v1285
      %v1287 = vadd.f32 %v1286, 1.4214138
      %v1288 = vmul.f32 %v1283, %v1287
      %v1289 = vadd.f32 %v1288, -0.28449672
      %v1290 = vmul.f32 %v1283, %v1289
      %v1291 = vadd.f32 %v1290, 0.2548296
      %v1292 = vmul.f32 %v1283, %v1291
      %v1293 = vsub.f32 0.0, %v1266
      %v1294 = vmul.f32 %v1293, %v1266
      %v1295 = vmul.f32 %v1294, 1.442695
      %v1296 = vpow.pop %v1295
      %v1297 = vmul.f32 %v1292, %v1296
      %v1298 = vsub.f32 1.0, %v1297
      %vm1299 = vcmp.lt.f32.partialorder %v1265, 0.0
      %v1300 = vsub.f32 0.0, %v1298
      %v1301 = vsel %vm1299, %v1300, %v1298
      %v1302 = vmul.f32 %v1262, 0.5
      %v1303 = vadd.f32 %v1301, 1.0
      %v1304 = vmul.f32 %v1302, %v1303
      %1306 = vrot.lane.b32.xlu0 %v1304, 64
      %v1307 = vpop.permute.xlu0 %1306
      %v1309 = vsel %vm578, %v927, %v1307
      %1310 = vst [vmem:[%s540] sm:$0xf] %v1309
      %p1311 = scmp.lt.s32.totalorder %s26, 1
      %s1312 = scalar_select %p1311, %s26, 1
      %s1313 = smul.addr %s1312, 4
      %s1314 = scalar_lea.vmem %s15, %s1313
      // Predicated region
      $region81: #{spatial_learn_forward.4} parent=79 // pred_check
        %p1315 = pneg %p379
      $region82: #{spatial_learn_forward.4} parent=79 // pred_check_branch
        %1317 = sbr.rel (%p1315) target = $region84
      $region83: #{spatial_learn_forward.4} parent=79 // pred_region
        _
      $region84: #{spatial_learn_forward.4} parent=79 // pred_fallthru
        _
    $region80: #{spatial_learn_forward.4} parent=5 // pred_fallthru
      _
    %p1318 = scmp.le.s32.totalorder 2, %s21
    // Predicated region
    $region85: #{spatial_learn_forward.4} parent=5 // pred_check
      %p1319 = pneg %p1318
    $region86: #{spatial_learn_forward.4} parent=5 // pred_check_branch
      %1321 = sbr.rel (%p1319) target = $region88
    $region87: #{spatial_learn_forward.4} parent=5 // pred_region
      %s1322 = ssub.s32 %s21, 2
      // Predicated region
      $region89: #{spatial_learn_forward.4} parent=87 // pred_check
        %p1323 = pneg %p385
      $region90: #{spatial_learn_forward.4} parent=87 // pred_check_branch
        %1325 = sbr.rel (%p1323) target = $region92
      $region91: #{spatial_learn_forward.4} parent=87 // pred_region
        %p1326 = scmp.lt.s32.totalorder %s27, 1
        %s1327 = scalar_select %p1326, %s27, 1
        %s1328 = smul.addr %s1327, 4
        %s1329 = scalar_lea.vmem %s15, %s1328
      $region92: #{spatial_learn_forward.4} parent=87 // pred_fallthru
        _
    $region88: #{spatial_learn_forward.4} parent=5 // pred_fallthru
      _
  $region6: #{spatial_learn_forward.4} parent=0 // loop_footer
    %s25 = sadd.s32 1, %s21
  $region7: #{spatial_learn_forward.4} parent=0 // loop_footer_branch
    %20 = sbr.rel target = $region3
  $region8: #{spatial_learn_forward.4} parent=0 // loop_exit
    _

// kernel: spatial_learn_forward.3
$region0: #{spatial_learn_forward.3}
  #allocation0 [shape = 'u32[]', space=smem, size = 0x4, offset = 0x4, fixed_abs, tag = 'smem constant byte address 0x4 - core index']
  #allocation1 [shape = 'u32[72,128]{1,0:T(1,128)}', space=vmem, size = 0x9000, scoped, tag = 'internal scratch']
  %s0 = inlined_call_operand.vmem [shape: f32[2,4,8,8], index: 0, kind: input, shape index: {}]
  %s1 = inlined_call_operand.vmem [shape: f32[2,4,8,8], index: 1, kind: input, shape index: {}]
  %s2 = inlined_call_operand.vmem [shape: f32[2,4,64], index: 2, kind: input, shape index: {}]
  %s3 = inlined_call_operand.vmem [shape: f32[4,8,8], index: 3, kind: input, shape index: {}]
  %s4 = inlined_call_operand.vmem [shape: f32[4,8,8], index: 4, kind: input, shape index: {}]
  %s5 = inlined_call_operand.hbm [shape: f32[4,8,8], index: 5, kind: input, shape index: {}]
  %s6 = inlined_call_operand.vmem [shape: f32[4,8,8], index: 6, kind: input, shape index: {}]
  %s7 = inlined_call_operand.vmem [shape: bf16[9,4,4], index: 7, kind: input, shape index: {}]
  %s8 = inlined_call_operand.vmem [shape: f32[4,1], index: 8, kind: input, shape index: {}]
  %s9 = inlined_call_operand.vmem [shape: bf16[9,4,4], index: 9, kind: input, shape index: {}]
  %s10 = inlined_call_operand.vmem [shape: f32[4,1], index: 10, kind: input, shape index: {}]
  %s11 = inlined_call_operand.vmem [shape: f32[9,1,64], index: 11, kind: input, shape index: {}]
  %s12 = inlined_call_operand.vmem [shape: f32[2,4,8,8], index: 12, kind: output, shape index: {0}]
  %s13 = inlined_call_operand.vmem [shape: f32[2,4,8,8], index: 13, kind: output, shape index: {1}]
  %s14 = inlined_call_operand.vmem [shape: f32[2,4,8,8], index: 14, kind: output, shape index: {2}]
  %s15 = inlined_call_operand.vmem [shape: f32[2,4,8,8], index: 15, kind: output, shape index: {3}]
  %s16 = inlined_call_operand.vmem [shape: f32[2,4,64], index: 16, kind: output, shape index: {4}]
  %17 = xla_tuple %s12, %s13, %s14, %s15, %s16
  %s18 = sld [smem:[#allocation0]]
  $region117: #{spatial_learn_forward.3} parent=0
    _
  %s20 = ssub.s32 1, %s18
  %s21 = scalar_select 0, %s20, %s18
  $region1: #{spatial_learn_forward.3} parent=0
    #allocation2 [shape = 'u8[16384]{0}', space=vmem, size = 0x4000, scoped, tag = 'input window, operand 5, single buffered']
    #allocation3 [shape = 's32[2]{0}', space=sflag, size = 0x8, scoped, tag = 'scoped memory for spatial_learn_forward.3']
    %22 = vsyncpa [#allocation3], 0
    loop: start=0, step=1, limit=4
    $region2: #{spatial_learn_forward.3} parent=1 // loop_pre_header
      _
    $region3: #{spatial_learn_forward.3} parent=1 // loop_header
      %s24 = sphi 0, %s28
      %p25 = scmp.ge.s32.totalorder %s24, 4
      %s34 = sphi 0, %s36
      %s37 = sphi 0, %s34
      %s38 = sphi 0, %s37
      %s54 = sphi 0, %s38
      %s60 = sphi 0, %s62
      %s63 = sphi 0, %s60
      %s64 = sphi 0, %s63
      %s80 = sphi 0, %s64
      %s86 = sphi 0, %s88
      %s89 = sphi 0, %s86
      %s90 = sphi 0, %s89
      %s106 = sphi 0, %s90
      %s110 = sphi 0, %s110
      %s112 = sphi 0, %s110
      %s113 = sphi 0, %s112
      %s127 = sphi 0, %s113
      %s131 = sphi 0, %s131
      %s133 = sphi 0, %s131
      %s134 = sphi 0, %s133
      %s148 = sphi 0, %s134
      %s152 = sphi 0, %s152
      %s154 = sphi 0, %s152
      %s155 = sphi 0, %s154
      %s169 = sphi 0, %s155
      %s173 = sphi 0, %s173
      %s175 = sphi 0, %s173
      %s176 = sphi 0, %s175
      %s190 = sphi 0, %s176
      %s194 = sphi 0, %s194
      %s196 = sphi 0, %s194
      %s197 = sphi 0, %s196
      %s211 = sphi 0, %s197
      %s215 = sphi 0, %s215
      %s217 = sphi 0, %s215
      %s218 = sphi 0, %s217
      %s232 = sphi 0, %s218
      %s236 = sphi 0, %s236
      %s238 = sphi 0, %s236
      %s239 = sphi 0, %s238
      %s253 = sphi 0, %s239
      %s257 = sphi 0, %s257
      %s259 = sphi 0, %s257
      %s260 = sphi 0, %s259
      %s274 = sphi 0, %s260
      %s278 = sphi 0, %s278
      %s280 = sphi 0, %s278
      %s281 = sphi 0, %s280
      %s295 = sphi 0, %s281
      %s301 = sphi 0, %s303
      %s304 = sphi 0, %s301
      %s305 = sphi 0, %s304
      %s321 = sphi 0, %s305
      %s327 = sphi 0, %s329
      %s330 = sphi 0, %s327
      %s331 = sphi 0, %s330
      %s347 = sphi 0, %s331
      %s353 = sphi 0, %s355
      %s356 = sphi 0, %s353
      %s357 = sphi 0, %s356
      %s373 = sphi 0, %s357
      %s379 = sphi 0, %s381
      %s382 = sphi 0, %s379
      %s383 = sphi 0, %s382
      %s399 = sphi 0, %s383
      %s405 = sphi 0, %s407
      %s408 = sphi 0, %s405
      %s409 = sphi 0, %s408
      %s425 = sphi 0, %s409
    $region4: #{spatial_learn_forward.3} parent=1 // loop_header_branch
      %27 = sbr.rel (%p25) target = $region8
    $region5: #{spatial_learn_forward.3} parent=1 // loop_body
      %s29 = ssub.s32 %s24, 1
      %s30 = ssub.s32 %s24, 2
      %s31 = sadd.s32 %s24, 1
      %s32 = ssub.s32 %s24, %s31
      %p33 = scmp.eq.s32.totalorder %s32, 0
      %s35 = sadd.s32 %s34, 1
      %s36 = scalar_select %p33, %s34, %s35
      %p39 = pneg %p33
      %p40 = scmp.eq.s32.totalorder %s24, 1
      %p41 = por %p39, %p40
      %p42 = scmp.ne.s32.totalorder %s34, %s37
      %p43 = scmp.eq.s32.totalorder %s24, 0
      %p44 = por %p42, %p43
      %p45 = scmp.ne.s32.totalorder %s34, %s37
      %p46 = scmp.eq.s32.totalorder %s29, 1
      %p47 = por %p45, %p46
      %p48 = scmp.ne.s32.totalorder %s37, %s38
      %p49 = scmp.eq.s32.totalorder %s29, 0
      %p50 = por %p48, %p49
      %p51 = scmp.ne.s32.totalorder %s37, %s38
      %p52 = scmp.eq.s32.totalorder %s30, 1
      %p53 = por %p51, %p52
      %p55 = scmp.ne.s32.totalorder %s38, %s54
      %p56 = scmp.eq.s32.totalorder %s30, 0
      %p57 = por %p55, %p56
      %s58 = ssub.s32 %s24, %s31
      %p59 = scmp.eq.s32.totalorder %s58, 0
      %s61 = sadd.s32 %s60, 1
      %s62 = scalar_select %p59, %s60, %s61
      %p65 = pneg %p59
      %p66 = scmp.eq.s32.totalorder %s24, 1
      %p67 = por %p65, %p66
      %p68 = scmp.ne.s32.totalorder %s60, %s63
      %p69 = scmp.eq.s32.totalorder %s24, 0
      %p70 = por %p68, %p69
      %p71 = scmp.ne.s32.totalorder %s60, %s63
      %p72 = scmp.eq.s32.totalorder %s29, 1
      %p73 = por %p71, %p72
      %p74 = scmp.ne.s32.totalorder %s63, %s64
      %p75 = scmp.eq.s32.totalorder %s29, 0
      %p76 = por %p74, %p75
      %p77 = scmp.ne.s32.totalorder %s63, %s64
      %p78 = scmp.eq.s32.totalorder %s30, 1
      %p79 = por %p77, %p78
      %p81 = scmp.ne.s32.totalorder %s64, %s80
      %p82 = scmp.eq.s32.totalorder %s30, 0
      %p83 = por %p81, %p82
      %s84 = ssub.s32 %s24, %s31
      %p85 = scmp.eq.s32.totalorder %s84, 0
      %s87 = sadd.s32 %s86, 1
      %s88 = scalar_select %p85, %s86, %s87
      %p91 = pneg %p85
      %p92 = scmp.eq.s32.totalorder %s24, 1
      %p93 = por %p91, %p92
      %p94 = scmp.ne.s32.totalorder %s86, %s89
      %p95 = scmp.eq.s32.totalorder %s24, 0
      %p96 = por %p94, %p95
      %p97 = scmp.ne.s32.totalorder %s86, %s89
      %p98 = scmp.eq.s32.totalorder %s29, 1
      %p99 = por %p97, %p98
      %p100 = scmp.ne.s32.totalorder %s89, %s90
      %p101 = scmp.eq.s32.totalorder %s29, 0
      %p102 = por %p100, %p101
      %p103 = scmp.ne.s32.totalorder %s89, %s90
      %p104 = scmp.eq.s32.totalorder %s30, 1
      %p105 = por %p103, %p104
      %p107 = scmp.ne.s32.totalorder %s90, %s106
      %p108 = scmp.eq.s32.totalorder %s30, 0
      %p109 = por %p107, %p108
      %s111 = sadd.s32 %s110, 1
      %p114 = scmp.eq.s32.totalorder %s24, 1
      %p115 = scmp.ne.s32.totalorder %s110, %s112
      %p116 = scmp.eq.s32.totalorder %s24, 0
      %p117 = por %p115, %p116
      %p118 = scmp.ne.s32.totalorder %s110, %s112
      %p119 = scmp.eq.s32.totalorder %s29, 1
      %p120 = por %p118, %p119
      %p121 = scmp.ne.s32.totalorder %s112, %s113
      %p122 = scmp.eq.s32.totalorder %s29, 0
      %p123 = por %p121, %p122
      %p124 = scmp.ne.s32.totalorder %s112, %s113
      %p125 = scmp.eq.s32.totalorder %s30, 1
      %p126 = por %p124, %p125
      %p128 = scmp.ne.s32.totalorder %s113, %s127
      %p129 = scmp.eq.s32.totalorder %s30, 0
      %p130 = por %p128, %p129
      %s132 = sadd.s32 %s131, 1
      %p135 = scmp.eq.s32.totalorder %s24, 1
      %p136 = scmp.ne.s32.totalorder %s131, %s133
      %p137 = scmp.eq.s32.totalorder %s24, 0
      %p138 = por %p136, %p137
      %p139 = scmp.ne.s32.totalorder %s131, %s133
      %p140 = scmp.eq.s32.totalorder %s29, 1
      %p141 = por %p139, %p140
      %p142 = scmp.ne.s32.totalorder %s133, %s134
      %p143 = scmp.eq.s32.totalorder %s29, 0
      %p144 = por %p142, %p143
      %p145 = scmp.ne.s32.totalorder %s133, %s134
      %p146 = scmp.eq.s32.totalorder %s30, 1
      %p147 = por %p145, %p146
      %p149 = scmp.ne.s32.totalorder %s134, %s148
      %p150 = scmp.eq.s32.totalorder %s30, 0
      %p151 = por %p149, %p150
      %s153 = sadd.s32 %s152, 1
      %p156 = scmp.eq.s32.totalorder %s24, 1
      %p157 = scmp.ne.s32.totalorder %s152, %s154
      %p158 = scmp.eq.s32.totalorder %s24, 0
      %p159 = por %p157, %p158
      %p160 = scmp.ne.s32.totalorder %s152, %s154
      %p161 = scmp.eq.s32.totalorder %s29, 1
      %p162 = por %p160, %p161
      %p163 = scmp.ne.s32.totalorder %s154, %s155
      %p164 = scmp.eq.s32.totalorder %s29, 0
      %p165 = por %p163, %p164
      %p166 = scmp.ne.s32.totalorder %s154, %s155
      %p167 = scmp.eq.s32.totalorder %s30, 1
      %p168 = por %p166, %p167
      %p170 = scmp.ne.s32.totalorder %s155, %s169
      %p171 = scmp.eq.s32.totalorder %s30, 0
      %p172 = por %p170, %p171
      %s174 = sadd.s32 %s173, 1
      %p177 = scmp.eq.s32.totalorder %s24, 1
      %p178 = scmp.ne.s32.totalorder %s173, %s175
      %p179 = scmp.eq.s32.totalorder %s24, 0
      %p180 = por %p178, %p179
      %p181 = scmp.ne.s32.totalorder %s173, %s175
      %p182 = scmp.eq.s32.totalorder %s29, 1
      %p183 = por %p181, %p182
      %p184 = scmp.ne.s32.totalorder %s175, %s176
      %p185 = scmp.eq.s32.totalorder %s29, 0
      %p186 = por %p184, %p185
      %p187 = scmp.ne.s32.totalorder %s175, %s176
      %p188 = scmp.eq.s32.totalorder %s30, 1
      %p189 = por %p187, %p188
      %p191 = scmp.ne.s32.totalorder %s176, %s190
      %p192 = scmp.eq.s32.totalorder %s30, 0
      %p193 = por %p191, %p192
      %s195 = sadd.s32 %s194, 1
      %p198 = scmp.eq.s32.totalorder %s24, 1
      %p199 = scmp.ne.s32.totalorder %s194, %s196
      %p200 = scmp.eq.s32.totalorder %s24, 0
      %p201 = por %p199, %p200
      %p202 = scmp.ne.s32.totalorder %s194, %s196
      %p203 = scmp.eq.s32.totalorder %s29, 1
      %p204 = por %p202, %p203
      %p205 = scmp.ne.s32.totalorder %s196, %s197
      %p206 = scmp.eq.s32.totalorder %s29, 0
      %p207 = por %p205, %p206
      %p208 = scmp.ne.s32.totalorder %s196, %s197
      %p209 = scmp.eq.s32.totalorder %s30, 1
      %p210 = por %p208, %p209
      %p212 = scmp.ne.s32.totalorder %s197, %s211
      %p213 = scmp.eq.s32.totalorder %s30, 0
      %p214 = por %p212, %p213
      %s216 = sadd.s32 %s215, 1
      %p219 = scmp.eq.s32.totalorder %s24, 1
      %p220 = scmp.ne.s32.totalorder %s215, %s217
      %p221 = scmp.eq.s32.totalorder %s24, 0
      %p222 = por %p220, %p221
      %p223 = scmp.ne.s32.totalorder %s215, %s217
      %p224 = scmp.eq.s32.totalorder %s29, 1
      %p225 = por %p223, %p224
      %p226 = scmp.ne.s32.totalorder %s217, %s218
      %p227 = scmp.eq.s32.totalorder %s29, 0
      %p228 = por %p226, %p227
      %p229 = scmp.ne.s32.totalorder %s217, %s218
      %p230 = scmp.eq.s32.totalorder %s30, 1
      %p231 = por %p229, %p230
      %p233 = scmp.ne.s32.totalorder %s218, %s232
      %p234 = scmp.eq.s32.totalorder %s30, 0
      %p235 = por %p233, %p234
      %s237 = sadd.s32 %s236, 1
      %p240 = scmp.eq.s32.totalorder %s24, 1
      %p241 = scmp.ne.s32.totalorder %s236, %s238
      %p242 = scmp.eq.s32.totalorder %s24, 0
      %p243 = por %p241, %p242
      %p244 = scmp.ne.s32.totalorder %s236, %s238
      %p245 = scmp.eq.s32.totalorder %s29, 1
      %p246 = por %p244, %p245
      %p247 = scmp.ne.s32.totalorder %s238, %s239
      %p248 = scmp.eq.s32.totalorder %s29, 0
      %p249 = por %p247, %p248
      %p250 = scmp.ne.s32.totalorder %s238, %s239
      %p251 = scmp.eq.s32.totalorder %s30, 1
      %p252 = por %p250, %p251
      %p254 = scmp.ne.s32.totalorder %s239, %s253
      %p255 = scmp.eq.s32.totalorder %s30, 0
      %p256 = por %p254, %p255
      %s258 = sadd.s32 %s257, 1
      %p261 = scmp.eq.s32.totalorder %s24, 1
      %p262 = scmp.ne.s32.totalorder %s257, %s259
      %p263 = scmp.eq.s32.totalorder %s24, 0
      %p264 = por %p262, %p263
      %p265 = scmp.ne.s32.totalorder %s257, %s259
      %p266 = scmp.eq.s32.totalorder %s29, 1
      %p267 = por %p265, %p266
      %p268 = scmp.ne.s32.totalorder %s259, %s260
      %p269 = scmp.eq.s32.totalorder %s29, 0
      %p270 = por %p268, %p269
      %p271 = scmp.ne.s32.totalorder %s259, %s260
      %p272 = scmp.eq.s32.totalorder %s30, 1
      %p273 = por %p271, %p272
      %p275 = scmp.ne.s32.totalorder %s260, %s274
      %p276 = scmp.eq.s32.totalorder %s30, 0
      %p277 = por %p275, %p276
      %s279 = sadd.s32 %s278, 1
      %p282 = scmp.eq.s32.totalorder %s24, 1
      %p283 = scmp.ne.s32.totalorder %s278, %s280
      %p284 = scmp.eq.s32.totalorder %s24, 0
      %p285 = por %p283, %p284
      %p286 = scmp.ne.s32.totalorder %s278, %s280
      %p287 = scmp.eq.s32.totalorder %s29, 1
      %p288 = por %p286, %p287
      %p289 = scmp.ne.s32.totalorder %s280, %s281
      %p290 = scmp.eq.s32.totalorder %s29, 0
      %p291 = por %p289, %p290
      %p292 = scmp.ne.s32.totalorder %s280, %s281
      %p293 = scmp.eq.s32.totalorder %s30, 1
      %p294 = por %p292, %p293
      %p296 = scmp.ne.s32.totalorder %s281, %s295
      %p297 = scmp.eq.s32.totalorder %s30, 0
      %p298 = por %p296, %p297
      %s299 = ssub.s32 %s24, %s31
      %p300 = scmp.eq.s32.totalorder %s299, 0
      %s302 = sadd.s32 %s301, 1
      %s303 = scalar_select %p300, %s301, %s302
      %p306 = pneg %p300
      %p307 = scmp.eq.s32.totalorder %s24, 1
      %p308 = por %p306, %p307
      %p309 = scmp.ne.s32.totalorder %s301, %s304
      %p310 = scmp.eq.s32.totalorder %s24, 0
      %p311 = por %p309, %p310
      %p312 = scmp.ne.s32.totalorder %s301, %s304
      %p313 = scmp.eq.s32.totalorder %s29, 1
      %p314 = por %p312, %p313
      %p315 = scmp.ne.s32.totalorder %s304, %s305
      %p316 = scmp.eq.s32.totalorder %s29, 0
      %p317 = por %p315, %p316
      %p318 = scmp.ne.s32.totalorder %s304, %s305
      %p319 = scmp.eq.s32.totalorder %s30, 1
      %p320 = por %p318, %p319
      %p322 = scmp.ne.s32.totalorder %s305, %s321
      %p323 = scmp.eq.s32.totalorder %s30, 0
      %p324 = por %p322, %p323
      %s325 = ssub.s32 %s24, %s31
      %p326 = scmp.eq.s32.totalorder %s325, 0
      %s328 = sadd.s32 %s327, 1
      %s329 = scalar_select %p326, %s327, %s328
      %p332 = pneg %p326
      %p333 = scmp.eq.s32.totalorder %s24, 1
      %p334 = por %p332, %p333
      %p335 = scmp.ne.s32.totalorder %s327, %s330
      %p336 = scmp.eq.s32.totalorder %s24, 0
      %p337 = por %p335, %p336
      %p338 = scmp.ne.s32.totalorder %s327, %s330
      %p339 = scmp.eq.s32.totalorder %s29, 1
      %p340 = por %p338, %p339
      %p341 = scmp.ne.s32.totalorder %s330, %s331
      %p342 = scmp.eq.s32.totalorder %s29, 0
      %p343 = por %p341, %p342
      %p344 = scmp.ne.s32.totalorder %s330, %s331
      %p345 = scmp.eq.s32.totalorder %s30, 1
      %p346 = por %p344, %p345
      %p348 = scmp.ne.s32.totalorder %s331, %s347
      %p349 = scmp.eq.s32.totalorder %s30, 0
      %p350 = por %p348, %p349
      %s351 = ssub.s32 %s24, %s31
      %p352 = scmp.eq.s32.totalorder %s351, 0
      %s354 = sadd.s32 %s353, 1
      %s355 = scalar_select %p352, %s353, %s354
      %p358 = pneg %p352
      %p359 = scmp.eq.s32.totalorder %s24, 1
      %p360 = por %p358, %p359
      %p361 = scmp.ne.s32.totalorder %s353, %s356
      %p362 = scmp.eq.s32.totalorder %s24, 0
      %p363 = por %p361, %p362
      %p364 = scmp.ne.s32.totalorder %s353, %s356
      %p365 = scmp.eq.s32.totalorder %s29, 1
      %p366 = por %p364, %p365
      %p367 = scmp.ne.s32.totalorder %s356, %s357
      %p368 = scmp.eq.s32.totalorder %s29, 0
      %p369 = por %p367, %p368
      %p370 = scmp.ne.s32.totalorder %s356, %s357
      %p371 = scmp.eq.s32.totalorder %s30, 1
      %p372 = por %p370, %p371
      %p374 = scmp.ne.s32.totalorder %s357, %s373
      %p375 = scmp.eq.s32.totalorder %s30, 0
      %p376 = por %p374, %p375
      %s377 = ssub.s32 %s24, %s31
      %p378 = scmp.eq.s32.totalorder %s377, 0
      %s380 = sadd.s32 %s379, 1
      %s381 = scalar_select %p378, %s379, %s380
      %p384 = pneg %p378
      %p385 = scmp.eq.s32.totalorder %s24, 1
      %p386 = por %p384, %p385
      %p387 = scmp.ne.s32.totalorder %s379, %s382
      %p388 = scmp.eq.s32.totalorder %s24, 0
      %p389 = por %p387, %p388
      %p390 = scmp.ne.s32.totalorder %s379, %s382
      %p391 = scmp.eq.s32.totalorder %s29, 1
      %p392 = por %p390, %p391
      %p393 = scmp.ne.s32.totalorder %s382, %s383
      %p394 = scmp.eq.s32.totalorder %s29, 0
      %p395 = por %p393, %p394
      %p396 = scmp.ne.s32.totalorder %s382, %s383
      %p397 = scmp.eq.s32.totalorder %s30, 1
      %p398 = por %p396, %p397
      %p400 = scmp.ne.s32.totalorder %s383, %s399
      %p401 = scmp.eq.s32.totalorder %s30, 0
      %p402 = por %p400, %p401
      %s403 = ssub.s32 %s24, %s31
      %p404 = scmp.eq.s32.totalorder %s403, 0
      %s406 = sadd.s32 %s405, 1
      %s407 = scalar_select %p404, %s405, %s406
      %p410 = pneg %p404
      %p411 = scmp.eq.s32.totalorder %s24, 1
      %p412 = por %p410, %p411
      %p413 = scmp.ne.s32.totalorder %s405, %s408
      %p414 = scmp.eq.s32.totalorder %s24, 0
      %p415 = por %p413, %p414
      %p416 = scmp.ne.s32.totalorder %s405, %s408
      %p417 = scmp.eq.s32.totalorder %s29, 1
      %p418 = por %p416, %p417
      %p419 = scmp.ne.s32.totalorder %s408, %s409
      %p420 = scmp.eq.s32.totalorder %s29, 0
      %p421 = por %p419, %p420
      %p422 = scmp.ne.s32.totalorder %s408, %s409
      %p423 = scmp.eq.s32.totalorder %s30, 1
      %p424 = por %p422, %p423
      %p426 = scmp.ne.s32.totalorder %s409, %s425
      %p427 = scmp.eq.s32.totalorder %s30, 0
      %p428 = por %p426, %p427
      %p429 = scmp.le.s32.totalorder 1, %s24
      %p430 = scmp.lt.s32.totalorder %s24, 3
      %p431 = pnand %p429, %p430
      %p432 = pneg %p431
      // Predicated region
      $region9: #{spatial_learn_forward.3} parent=5 // pred_check
        _
      $region10: #{spatial_learn_forward.3} parent=5 // pred_check_branch
        %434 = sbr.rel (%p431) target = $region12
      $region11: #{spatial_learn_forward.3} parent=5 // pred_region
        %s435 = ssub.s32 %s24, 1
        // Predicated region
        $region13: #{spatial_learn_forward.3} parent=11 // pred_check
          %p436 = pneg %p123
        $region14: #{spatial_learn_forward.3} parent=11 // pred_check_branch
          %438 = sbr.rel (%p436) target = $region16
        $region15: #{spatial_learn_forward.3} parent=11 // pred_region
          _
        $region16: #{spatial_learn_forward.3} parent=11 // pred_fallthru
          _
        // Predicated region
        $region17: #{spatial_learn_forward.3} parent=11 // pred_check
          %p439 = pneg %p144
        $region18: #{spatial_learn_forward.3} parent=11 // pred_check_branch
          %441 = sbr.rel (%p439) target = $region20
        $region19: #{spatial_learn_forward.3} parent=11 // pred_region
          _
        $region20: #{spatial_learn_forward.3} parent=11 // pred_fallthru
          _
        // Predicated region
        $region21: #{spatial_learn_forward.3} parent=11 // pred_check
          %p442 = pneg %p165
        $region22: #{spatial_learn_forward.3} parent=11 // pred_check_branch
          %444 = sbr.rel (%p442) target = $region24
        $region23: #{spatial_learn_forward.3} parent=11 // pred_region
          %446 = vsyncadd [#allocation3], 0
          %s447 = sshll.u32 %s5, 4
          %s448 = int_to_ptr.hbm [resolvable:$true] %s447
          %s449 = sshll.u32 [#allocation2], 4
          %s450 = int_to_ptr.vmem [resolvable:$true] %s449
          %455 = dma.hbm_to_vmem [thread:$0]  %s448, 512, %s450, [#allocation3], 128, 128, 8
        $region24: #{spatial_learn_forward.3} parent=11 // pred_fallthru
          _
        // Predicated region
        $region25: #{spatial_learn_forward.3} parent=11 // pred_check
          %p456 = pneg %p186
        $region26: #{spatial_learn_forward.3} parent=11 // pred_check_branch
          %458 = sbr.rel (%p456) target = $region28
        $region27: #{spatial_learn_forward.3} parent=11 // pred_region
          _
        $region28: #{spatial_learn_forward.3} parent=11 // pred_fallthru
          _
        // Predicated region
        $region29: #{spatial_learn_forward.3} parent=11 // pred_check
          %p459 = pneg %p207
        $region30: #{spatial_learn_forward.3} parent=11 // pred_check_branch
          %461 = sbr.rel (%p459) target = $region32
        $region31: #{spatial_learn_forward.3} parent=11 // pred_region
          _
        $region32: #{spatial_learn_forward.3} parent=11 // pred_fallthru
          _
        // Predicated region
        $region33: #{spatial_learn_forward.3} parent=11 // pred_check
          %p462 = pneg %p228
        $region34: #{spatial_learn_forward.3} parent=11 // pred_check_branch
          %464 = sbr.rel (%p462) target = $region36
        $region35: #{spatial_learn_forward.3} parent=11 // pred_region
          _
        $region36: #{spatial_learn_forward.3} parent=11 // pred_fallthru
          _
        // Predicated region
        $region37: #{spatial_learn_forward.3} parent=11 // pred_check
          %p465 = pneg %p249
        $region38: #{spatial_learn_forward.3} parent=11 // pred_check_branch
          %467 = sbr.rel (%p465) target = $region40
        $region39: #{spatial_learn_forward.3} parent=11 // pred_region
          _
        $region40: #{spatial_learn_forward.3} parent=11 // pred_fallthru
          _
        // Predicated region
        $region41: #{spatial_learn_forward.3} parent=11 // pred_check
          %p468 = pneg %p270
        $region42: #{spatial_learn_forward.3} parent=11 // pred_check_branch
          %470 = sbr.rel (%p468) target = $region44
        $region43: #{spatial_learn_forward.3} parent=11 // pred_region
          _
        $region44: #{spatial_learn_forward.3} parent=11 // pred_fallthru
          _
        // Predicated region
        $region45: #{spatial_learn_forward.3} parent=11 // pred_check
          %p471 = pneg %p291
        $region46: #{spatial_learn_forward.3} parent=11 // pred_check_branch
          %473 = sbr.rel (%p471) target = $region48
        $region47: #{spatial_learn_forward.3} parent=11 // pred_region
          _
        $region48: #{spatial_learn_forward.3} parent=11 // pred_fallthru
          _
      $region12: #{spatial_learn_forward.3} parent=5 // pred_fallthru
        _
      %p474 = scmp.lt.s32.totalorder %s24, 2
      // Predicated region
      $region49: #{spatial_learn_forward.3} parent=5 // pred_check
        %p475 = pneg %p474
      $region50: #{spatial_learn_forward.3} parent=5 // pred_check_branch
        %477 = sbr.rel (%p475) target = $region52
      $region51: #{spatial_learn_forward.3} parent=5 // pred_region
        // Predicated region
        $region53: #{spatial_learn_forward.3} parent=51 // pred_check
          %p478 = pneg %p44
        $region54: #{spatial_learn_forward.3} parent=51 // pred_check_branch
          %480 = sbr.rel (%p478) target = $region56
        $region55: #{spatial_learn_forward.3} parent=51 // pred_region
          %p481 = scmp.lt.s32.totalorder %s24, 1
          %s482 = scalar_select %p481, %s24, 1
          %s483 = smul.addr %s482, 4
          %s484 = smul.addr %s483, 8
          %s485 = scalar_lea.vmem %s0, %s484
        $region56: #{spatial_learn_forward.3} parent=51 // pred_fallthru
          _
        // Predicated region
        $region57: #{spatial_learn_forward.3} parent=51 // pred_check
          %p486 = pneg %p70
        $region58: #{spatial_learn_forward.3} parent=51 // pred_check_branch
          %488 = sbr.rel (%p486) target = $region60
        $region59: #{spatial_learn_forward.3} parent=51 // pred_region
          %p489 = scmp.lt.s32.totalorder %s24, 1
          %s490 = scalar_select %p489, %s24, 1
          %s491 = smul.addr %s490, 4
          %s492 = smul.addr %s491, 8
          %s493 = scalar_lea.vmem %s1, %s492
        $region60: #{spatial_learn_forward.3} parent=51 // pred_fallthru
          _
        // Predicated region
        $region61: #{spatial_learn_forward.3} parent=51 // pred_check
          %p494 = pneg %p96
        $region62: #{spatial_learn_forward.3} parent=51 // pred_check_branch
          %496 = sbr.rel (%p494) target = $region64
        $region63: #{spatial_learn_forward.3} parent=51 // pred_region
          %p497 = scmp.lt.s32.totalorder %s24, 1
          %s498 = scalar_select %p497, %s24, 1
          %s499 = smul.addr %s498, 4
          %s500 = scalar_lea.vmem %s2, %s499
        $region64: #{spatial_learn_forward.3} parent=51 // pred_fallthru
          _
      $region52: #{spatial_learn_forward.3} parent=5 // pred_fallthru
        _
      %p501 = scmp.le.s32.totalorder 1, %s24
      %p502 = scmp.lt.s32.totalorder %s24, 3
      %p503 = pnand %p501, %p502
      %p504 = pneg %p503
      // Predicated region
      $region65: #{spatial_learn_forward.3} parent=5 // pred_check
        _
      $region66: #{spatial_learn_forward.3} parent=5 // pred_check_branch
        %506 = sbr.rel (%p503) target = $region68
      $region67: #{spatial_learn_forward.3} parent=5 // pred_region
        %s507 = ssub.s32 %s24, 1
        // Predicated region
        $region69: #{spatial_learn_forward.3} parent=67 // pred_check
          %p508 = pneg %p165
        $region70: #{spatial_learn_forward.3} parent=67 // pred_check_branch
          %510 = sbr.rel (%p508) target = $region72
        $region71: #{spatial_learn_forward.3} parent=67 // pred_region
          %512 = dma.done [#allocation3], 512
        $region72: #{spatial_learn_forward.3} parent=67 // pred_fallthru
          _
        %p513 = scmp.lt.s32.totalorder %s29, 1
        %s514 = scalar_select %p513, %s29, 1
        %s515 = smul.addr %s514, 4
        %s516 = smul.addr %s515, 8
        %s517 = scalar_lea.vmem %s0, %s516
        %p518 = pneg %p50
        %p519 = pneg %p47
        %p520 = scmp.lt.s32.totalorder %s29, 1
        %s521 = scalar_select %p520, %s29, 1
        %s522 = smul.addr %s521, 4
        %s523 = smul.addr %s522, 8
        %s524 = scalar_lea.vmem %s1, %s523
        %p525 = pneg %p76
        %p526 = pneg %p73
        %p527 = scmp.lt.s32.totalorder %s29, 1
        %s528 = scalar_select %p527, %s29, 1
        %s529 = smul.addr %s528, 4
        %s530 = scalar_lea.vmem %s2, %s529
        %p531 = pneg %p102
        %p532 = pneg %p99
        %p533 = pneg %p123
        %p534 = pneg %p120
        %p535 = pneg %p144
        %p536 = pneg %p141
        %p537 = pneg %p165
        %p538 = pneg %p162
        %p539 = pneg %p186
        %p540 = pneg %p183
        %p541 = pneg %p207
        %p542 = pneg %p204
        %p543 = pneg %p228
        %p544 = pneg %p225
        %p545 = pneg %p249
        %p546 = pneg %p246
        %p547 = pneg %p270
        %p548 = pneg %p267
        %p549 = pneg %p291
        %p550 = pneg %p288
        %p551 = pneg %p317
        %p552 = pneg %p314
        %p553 = scmp.lt.s32.totalorder %s29, 1
        %s554 = scalar_select %p553, %s29, 1
        %s555 = smul.addr %s554, 4
        %s556 = smul.addr %s555, 8
        %s557 = scalar_lea.vmem %s12, %s556
        %p558 = pneg %p343
        %p559 = pneg %p340
        %p560 = scmp.lt.s32.totalorder %s29, 1
        %s561 = scalar_select %p560, %s29, 1
        %s562 = smul.addr %s561, 4
        %s563 = smul.addr %s562, 8
        %s564 = scalar_lea.vmem %s13, %s563
        %p565 = pneg %p369
        %p566 = pneg %p366
        %p567 = scmp.lt.s32.totalorder %s29, 1
        %s568 = scalar_select %p567, %s29, 1
        %s569 = smul.addr %s568, 4
        %s570 = smul.addr %s569, 8
        %s571 = scalar_lea.vmem %s14, %s570
        %p572 = pneg %p395
        %p573 = pneg %p392
        %p574 = scmp.lt.s32.totalorder %s29, 1
        %s575 = scalar_select %p574, %s29, 1
        %s576 = smul.addr %s575, 4
        %s577 = smul.addr %s576, 8
        %s578 = scalar_lea.vmem %s15, %s577
        %p579 = pneg %p421
        %p580 = pneg %p418
        %p581 = scmp.lt.s32.totalorder %s29, 1
        %s582 = scalar_select %p581, %s29, 1
        %s583 = smul.addr %s582, 4
        %s584 = scalar_lea.vmem %s16, %s583
        %p585 = scmp.lt.s32.totalorder %s29, 1
        %s586 = scalar_select %p585, %s29, 1
        %s587 = smul.addr %s586, 4
        %s588 = smul.addr %s587, 8
        %s589 = scalar_lea.vmem %s0, %s588
        %p590 = scmp.lt.s32.totalorder %s29, 1
        %s591 = scalar_select %p590, %s29, 1
        %s592 = smul.addr %s591, 4
        %s593 = smul.addr %s592, 8
        %s594 = scalar_lea.vmem %s1, %s593
        %p595 = scmp.lt.s32.totalorder %s29, 1
        %s596 = scalar_select %p595, %s29, 1
        %s597 = smul.addr %s596, 4
        %s598 = scalar_lea.vmem %s2, %s597
        %p599 = scmp.lt.s32.totalorder %s29, 1
        %s600 = scalar_select %p599, %s29, 1
        %s601 = smul.addr %s600, 4
        %s602 = smul.addr %s601, 8
        %s603 = scalar_lea.vmem %s12, %s602
        %p604 = scmp.lt.s32.totalorder %s29, 1
        %s605 = scalar_select %p604, %s29, 1
        %s606 = smul.addr %s605, 4
        %s607 = smul.addr %s606, 8
        %s608 = scalar_lea.vmem %s13, %s607
        %p609 = scmp.lt.s32.totalorder %s29, 1
        %s610 = scalar_select %p609, %s29, 1
        %s611 = smul.addr %s610, 4
        %s612 = smul.addr %s611, 8
        %s613 = scalar_lea.vmem %s14, %s612
        %p614 = scmp.lt.s32.totalorder %s29, 1
        %s615 = scalar_select %p614, %s29, 1
        %s616 = smul.addr %s615, 4
        %s617 = smul.addr %s616, 8
        %s618 = scalar_lea.vmem %s15, %s617
        %p619 = scmp.lt.s32.totalorder %s29, 1
        %s620 = scalar_select %p619, %s29, 1
        %s621 = smul.addr %s620, 4
        %s622 = scalar_lea.vmem %s16, %s621
        %v624 = vld [vmem:[%s589] sm:$0xff]
        %v625 = vld [vmem:[%s589 + $0x8] sm:$0xff]
        %v626 = vld [vmem:[%s589 + $0x10] sm:$0xff]
        %v627 = vld [vmem:[%s589 + $0x18] sm:$0xff]
        %v628 = vld [vmem:[%s594] sm:$0xff]
        %v629 = vld [vmem:[%s594 + $0x8] sm:$0xff]
        %v630 = vld [vmem:[%s594 + $0x10] sm:$0xff]
        %v631 = vld [vmem:[%s594 + $0x18] sm:$0xff]
        %v632 = vld [vmem:[%s3] sm:$0xff]
        %v633 = vld [vmem:[%s3 + $0x8] sm:$0xff]
        %v634 = vld [vmem:[%s3 + $0x10] sm:$0xff]
        %v635 = vld [vmem:[%s3 + $0x18] sm:$0xff]
        %vm636 = vcmask 64512
        %v638 = vsel %vm636, %v632, 0
        %640 = vmatpush.msra.mxu0 0.0
        %641 = vmatpush.msra.mxu0 0.0
        %642 = vmatpush.msra.mxu0 0.0
        %643 = vmatpush.msra.mxu0 0.0
        %644 = vmatpush.msra.mxu0 0.0
        %645 = vmatpush.msra.mxu0 0.0
        %646 = vmatpush.msra.mxu0 0.0
        %647 = vmatpush.msra.mxu0 0.0
        %648 = vmatpush.msra.mxu0 0.0
        %649 = vmatpush.msra.mxu0 0.0
        %650 = vmatpush.msra.mxu0 0.0
        %651 = vmatpush.msra.mxu0 0.0
        %652 = vmatpush.msra.mxu0 0.0
        %653 = vmatpush.msra.mxu0 0.0
        %654 = vmatpush.msra.mxu0 0.0
        %655 = vmatpush.msra.mxu0 %v624
        %656 = vmatmul.f32.gmra.mxu0 %v638
        %v657 = vpop.f32.mrf.mxu0
        %v658 = vadd.f32 0.0, %v657
        %659 = vdwg.mxu0
        %v661 = vsel %vm636, %v633, 0
        %663 = vmatpush.msra.mxu0 0.0
        %664 = vmatpush.msra.mxu0 0.0
        %665 = vmatpush.msra.mxu0 0.0
        %666 = vmatpush.msra.mxu0 0.0
        %667 = vmatpush.msra.mxu0 0.0
        %668 = vmatpush.msra.mxu0 0.0
        %669 = vmatpush.msra.mxu0 0.0
        %670 = vmatpush.msra.mxu0 0.0
        %671 = vmatpush.msra.mxu0 0.0
        %672 = vmatpush.msra.mxu0 0.0
        %673 = vmatpush.msra.mxu0 0.0
        %674 = vmatpush.msra.mxu0 0.0
        %675 = vmatpush.msra.mxu0 0.0
        %676 = vmatpush.msra.mxu0 0.0
        %677 = vmatpush.msra.mxu0 0.0
        %678 = vmatpush.msra.mxu0 %v625
        %679 = vmatmul.f32.gmra.mxu0 %v661
        %v680 = vpop.f32.mrf.mxu0
        %v681 = vadd.f32 0.0, %v680
        %682 = vdwg.mxu0
        %v684 = vsel %vm636, %v634, 0
        %686 = vmatpush.msra.mxu0 0.0
        %687 = vmatpush.msra.mxu0 0.0
        %688 = vmatpush.msra.mxu0 0.0
        %689 = vmatpush.msra.mxu0 0.0
        %690 = vmatpush.msra.mxu0 0.0
        %691 = vmatpush.msra.mxu0 0.0
        %692 = vmatpush.msra.mxu0 0.0
        %693 = vmatpush.msra.mxu0 0.0
        %694 = vmatpush.msra.mxu0 0.0
        %695 = vmatpush.msra.mxu0 0.0
        %696 = vmatpush.msra.mxu0 0.0
        %697 = vmatpush.msra.mxu0 0.0
        %698 = vmatpush.msra.mxu0 0.0
        %699 = vmatpush.msra.mxu0 0.0
        %700 = vmatpush.msra.mxu0 0.0
        %701 = vmatpush.msra.mxu0 %v626
        %702 = vmatmul.f32.gmra.mxu0 %v684
        %v703 = vpop.f32.mrf.mxu0
        %v704 = vadd.f32 0.0, %v703
        %705 = vdwg.mxu0
        %v707 = vsel %vm636, %v635, 0
        %709 = vmatpush.msra.mxu0 0.0
        %710 = vmatpush.msra.mxu0 0.0
        %711 = vmatpush.msra.mxu0 0.0
        %712 = vmatpush.msra.mxu0 0.0
        %713 = vmatpush.msra.mxu0 0.0
        %714 = vmatpush.msra.mxu0 0.0
        %715 = vmatpush.msra.mxu0 0.0
        %716 = vmatpush.msra.mxu0 0.0
        %717 = vmatpush.msra.mxu0 0.0
        %718 = vmatpush.msra.mxu0 0.0
        %719 = vmatpush.msra.mxu0 0.0
        %720 = vmatpush.msra.mxu0 0.0
        %721 = vmatpush.msra.mxu0 0.0
        %722 = vmatpush.msra.mxu0 0.0
        %723 = vmatpush.msra.mxu0 0.0
        %724 = vmatpush.msra.mxu0 %v627
        %725 = vmatmul.f32.gmra.mxu0 %v707
        %v726 = vpop.f32.mrf.mxu0
        %v727 = vadd.f32 0.0, %v726
        %728 = vdwg.mxu0
        %729 = vst.msk [vmem:[%s603] sm:$0xff] %vm636, %v658
        %730 = vst.msk [vmem:[%s603 + $0x8] sm:$0xff] %vm636, %v681
        %731 = vst.msk [vmem:[%s603 + $0x10] sm:$0xff] %vm636, %v704
        %732 = vst.msk [vmem:[%s603 + $0x18] sm:$0xff] %vm636, %v727
        %v733 = vld [vmem:[%s4] sm:$0xff]
        %v734 = vld [vmem:[%s4 + $0x8] sm:$0xff]
        %v735 = vld [vmem:[%s4 + $0x10] sm:$0xff]
        %v736 = vld [vmem:[%s4 + $0x18] sm:$0xff]
        %v738 = vsel %vm636, %v624, 0
        %740 = vmatpush.msra.mxu0 0.0
        %741 = vmatpush.msra.mxu0 0.0
        %742 = vmatpush.msra.mxu0 0.0
        %743 = vmatpush.msra.mxu0 0.0
        %744 = vmatpush.msra.mxu0 0.0
        %745 = vmatpush.msra.mxu0 0.0
        %746 = vmatpush.msra.mxu0 0.0
        %747 = vmatpush.msra.mxu0 0.0
        %748 = vmatpush.msra.mxu0 0.0
        %749 = vmatpush.msra.mxu0 0.0
        %750 = vmatpush.msra.mxu0 0.0
        %751 = vmatpush.msra.mxu0 0.0
        %752 = vmatpush.msra.mxu0 0.0
        %753 = vmatpush.msra.mxu0 0.0
        %754 = vmatpush.msra.mxu0 0.0
        %755 = vmatpush.msra.mxu0 %v733
        %756 = vmatmul.f32.gmra.mxu0 %v738
        %v757 = vpop.f32.mrf.mxu0
        %v758 = vadd.f32 0.0, %v757
        %759 = vdwg.mxu0
        %v761 = vsel %vm636, %v625, 0
        %763 = vmatpush.msra.mxu0 0.0
        %764 = vmatpush.msra.mxu0 0.0
        %765 = vmatpush.msra.mxu0 0.0
        %766 = vmatpush.msra.mxu0 0.0
        %767 = vmatpush.msra.mxu0 0.0
        %768 = vmatpush.msra.mxu0 0.0
        %769 = vmatpush.msra.mxu0 0.0
        %770 = vmatpush.msra.mxu0 0.0
        %771 = vmatpush.msra.mxu0 0.0
        %772 = vmatpush.msra.mxu0 0.0
        %773 = vmatpush.msra.mxu0 0.0
        %774 = vmatpush.msra.mxu0 0.0
        %775 = vmatpush.msra.mxu0 0.0
        %776 = vmatpush.msra.mxu0 0.0
        %777 = vmatpush.msra.mxu0 0.0
        %778 = vmatpush.msra.mxu0 %v734
        %779 = vmatmul.f32.gmra.mxu0 %v761
        %v780 = vpop.f32.mrf.mxu0
        %v781 = vadd.f32 0.0, %v780
        %782 = vdwg.mxu0
        %v784 = vsel %vm636, %v626, 0
        %786 = vmatpush.msra.mxu0 0.0
        %787 = vmatpush.msra.mxu0 0.0
        %788 = vmatpush.msra.mxu0 0.0
        %789 = vmatpush.msra.mxu0 0.0
        %790 = vmatpush.msra.mxu0 0.0
        %791 = vmatpush.msra.mxu0 0.0
        %792 = vmatpush.msra.mxu0 0.0
        %793 = vmatpush.msra.mxu0 0.0
        %794 = vmatpush.msra.mxu0 0.0
        %795 = vmatpush.msra.mxu0 0.0
        %796 = vmatpush.msra.mxu0 0.0
        %797 = vmatpush.msra.mxu0 0.0
        %798 = vmatpush.msra.mxu0 0.0
        %799 = vmatpush.msra.mxu0 0.0
        %800 = vmatpush.msra.mxu0 0.0
        %801 = vmatpush.msra.mxu0 %v735
        %802 = vmatmul.f32.gmra.mxu0 %v784
        %v803 = vpop.f32.mrf.mxu0
        %v804 = vadd.f32 0.0, %v803
        %805 = vdwg.mxu0
        %v807 = vsel %vm636, %v627, 0
        %809 = vmatpush.msra.mxu0 0.0
        %810 = vmatpush.msra.mxu0 0.0
        %811 = vmatpush.msra.mxu0 0.0
        %812 = vmatpush.msra.mxu0 0.0
        %813 = vmatpush.msra.mxu0 0.0
        %814 = vmatpush.msra.mxu0 0.0
        %815 = vmatpush.msra.mxu0 0.0
        %816 = vmatpush.msra.mxu0 0.0
        %817 = vmatpush.msra.mxu0 0.0
        %818 = vmatpush.msra.mxu0 0.0
        %819 = vmatpush.msra.mxu0 0.0
        %820 = vmatpush.msra.mxu0 0.0
        %821 = vmatpush.msra.mxu0 0.0
        %822 = vmatpush.msra.mxu0 0.0
        %823 = vmatpush.msra.mxu0 0.0
        %824 = vmatpush.msra.mxu0 %v736
        %825 = vmatmul.f32.gmra.mxu0 %v807
        %v826 = vpop.f32.mrf.mxu0
        %v827 = vadd.f32 0.0, %v826
        %828 = vdwg.mxu0
        %829 = vst.msk [vmem:[%s608] sm:$0xff] %vm636, %v758
        %830 = vst.msk [vmem:[%s608 + $0x8] sm:$0xff] %vm636, %v781
        %831 = vst.msk [vmem:[%s608 + $0x10] sm:$0xff] %vm636, %v804
        %832 = vst.msk [vmem:[%s608 + $0x18] sm:$0xff] %vm636, %v827
        %v833 = vld [vmem:[#allocation2] sm:$0xff]
        %v834 = vld [vmem:[#allocation2 + $0x8] sm:$0xff]
        %v835 = vld [vmem:[#allocation2 + $0x10] sm:$0xff]
        %v836 = vld [vmem:[#allocation2 + $0x18] sm:$0xff]
        %v838 = vsel %vm636, %v833, 0
        %840 = vmatpush.msra.mxu0 0.0
        %841 = vmatpush.msra.mxu0 0.0
        %842 = vmatpush.msra.mxu0 0.0
        %843 = vmatpush.msra.mxu0 0.0
        %844 = vmatpush.msra.mxu0 0.0
        %845 = vmatpush.msra.mxu0 0.0
        %846 = vmatpush.msra.mxu0 0.0
        %847 = vmatpush.msra.mxu0 0.0
        %848 = vmatpush.msra.mxu0 0.0
        %849 = vmatpush.msra.mxu0 0.0
        %850 = vmatpush.msra.mxu0 0.0
        %851 = vmatpush.msra.mxu0 0.0
        %852 = vmatpush.msra.mxu0 0.0
        %853 = vmatpush.msra.mxu0 0.0
        %854 = vmatpush.msra.mxu0 0.0
        %855 = vmatpush.msra.mxu0 %v628
        %856 = vmatmul.f32.gmra.mxu0 %v838
        %v857 = vpop.f32.mrf.mxu0
        %v858 = vadd.f32 0.0, %v857
        %859 = vdwg.mxu0
        %v861 = vsel %vm636, %v834, 0
        %863 = vmatpush.msra.mxu0 0.0
        %864 = vmatpush.msra.mxu0 0.0
        %865 = vmatpush.msra.mxu0 0.0
        %866 = vmatpush.msra.mxu0 0.0
        %867 = vmatpush.msra.mxu0 0.0
        %868 = vmatpush.msra.mxu0 0.0
        %869 = vmatpush.msra.mxu0 0.0
        %870 = vmatpush.msra.mxu0 0.0
        %871 = vmatpush.msra.mxu0 0.0
        %872 = vmatpush.msra.mxu0 0.0
        %873 = vmatpush.msra.mxu0 0.0
        %874 = vmatpush.msra.mxu0 0.0
        %875 = vmatpush.msra.mxu0 0.0
        %876 = vmatpush.msra.mxu0 0.0
        %877 = vmatpush.msra.mxu0 0.0
        %878 = vmatpush.msra.mxu0 %v629
        %879 = vmatmul.f32.gmra.mxu0 %v861
        %v880 = vpop.f32.mrf.mxu0
        %v881 = vadd.f32 0.0, %v880
        %882 = vdwg.mxu0
        %v884 = vsel %vm636, %v835, 0
        %886 = vmatpush.msra.mxu0 0.0
        %887 = vmatpush.msra.mxu0 0.0
        %888 = vmatpush.msra.mxu0 0.0
        %889 = vmatpush.msra.mxu0 0.0
        %890 = vmatpush.msra.mxu0 0.0
        %891 = vmatpush.msra.mxu0 0.0
        %892 = vmatpush.msra.mxu0 0.0
        %893 = vmatpush.msra.mxu0 0.0
        %894 = vmatpush.msra.mxu0 0.0
        %895 = vmatpush.msra.mxu0 0.0
        %896 = vmatpush.msra.mxu0 0.0
        %897 = vmatpush.msra.mxu0 0.0
        %898 = vmatpush.msra.mxu0 0.0
        %899 = vmatpush.msra.mxu0 0.0
        %900 = vmatpush.msra.mxu0 0.0
        %901 = vmatpush.msra.mxu0 %v630
        %902 = vmatmul.f32.gmra.mxu0 %v884
        %v903 = vpop.f32.mrf.mxu0
        %v904 = vadd.f32 0.0, %v903
        %905 = vdwg.mxu0
        %v907 = vsel %vm636, %v836, 0
        %909 = vmatpush.msra.mxu0 0.0
        %910 = vmatpush.msra.mxu0 0.0
        %911 = vmatpush.msra.mxu0 0.0
        %912 = vmatpush.msra.mxu0 0.0
        %913 = vmatpush.msra.mxu0 0.0
        %914 = vmatpush.msra.mxu0 0.0
        %915 = vmatpush.msra.mxu0 0.0
        %916 = vmatpush.msra.mxu0 0.0
        %917 = vmatpush.msra.mxu0 0.0
        %918 = vmatpush.msra.mxu0 0.0
        %919 = vmatpush.msra.mxu0 0.0
        %920 = vmatpush.msra.mxu0 0.0
        %921 = vmatpush.msra.mxu0 0.0
        %922 = vmatpush.msra.mxu0 0.0
        %923 = vmatpush.msra.mxu0 0.0
        %924 = vmatpush.msra.mxu0 %v631
        %925 = vmatmul.f32.gmra.mxu0 %v907
        %v926 = vpop.f32.mrf.mxu0
        %v927 = vadd.f32 0.0, %v926
        %928 = vdwg.mxu0
        %929 = vst.msk [vmem:[%s613] sm:$0xff] %vm636, %v858
        %930 = vst.msk [vmem:[%s613 + $0x8] sm:$0xff] %vm636, %v881
        %931 = vst.msk [vmem:[%s613 + $0x10] sm:$0xff] %vm636, %v904
        %932 = vst.msk [vmem:[%s613 + $0x18] sm:$0xff] %vm636, %v927
        %v933 = vld [vmem:[%s6] sm:$0xff]
        %v934 = vld [vmem:[%s6 + $0x8] sm:$0xff]
        %v935 = vld [vmem:[%s6 + $0x10] sm:$0xff]
        %v936 = vld [vmem:[%s6 + $0x18] sm:$0xff]
        %v938 = vsel %vm636, %v628, 0
        %940 = vmatpush.msra.mxu0 0.0
        %941 = vmatpush.msra.mxu0 0.0
        %942 = vmatpush.msra.mxu0 0.0
        %943 = vmatpush.msra.mxu0 0.0
        %944 = vmatpush.msra.mxu0 0.0
        %945 = vmatpush.msra.mxu0 0.0
        %946 = vmatpush.msra.mxu0 0.0
        %947 = vmatpush.msra.mxu0 0.0
        %948 = vmatpush.msra.mxu0 0.0
        %949 = vmatpush.msra.mxu0 0.0
        %950 = vmatpush.msra.mxu0 0.0
        %951 = vmatpush.msra.mxu0 0.0
        %952 = vmatpush.msra.mxu0 0.0
        %953 = vmatpush.msra.mxu0 0.0
        %954 = vmatpush.msra.mxu0 0.0
        %955 = vmatpush.msra.mxu0 %v933
        %956 = vmatmul.f32.gmra.mxu0 %v938
        %v957 = vpop.f32.mrf.mxu0
        %v958 = vadd.f32 0.0, %v957
        %959 = vdwg.mxu0
        %v961 = vsel %vm636, %v629, 0
        %963 = vmatpush.msra.mxu0 0.0
        %964 = vmatpush.msra.mxu0 0.0
        %965 = vmatpush.msra.mxu0 0.0
        %966 = vmatpush.msra.mxu0 0.0
        %967 = vmatpush.msra.mxu0 0.0
        %968 = vmatpush.msra.mxu0 0.0
        %969 = vmatpush.msra.mxu0 0.0
        %970 = vmatpush.msra.mxu0 0.0
        %971 = vmatpush.msra.mxu0 0.0
        %972 = vmatpush.msra.mxu0 0.0
        %973 = vmatpush.msra.mxu0 0.0
        %974 = vmatpush.msra.mxu0 0.0
        %975 = vmatpush.msra.mxu0 0.0
        %976 = vmatpush.msra.mxu0 0.0
        %977 = vmatpush.msra.mxu0 0.0
        %978 = vmatpush.msra.mxu0 %v934
        %979 = vmatmul.f32.gmra.mxu0 %v961
        %v980 = vpop.f32.mrf.mxu0
        %v981 = vadd.f32 0.0, %v980
        %982 = vdwg.mxu0
        %v984 = vsel %vm636, %v630, 0
        %986 = vmatpush.msra.mxu0 0.0
        %987 = vmatpush.msra.mxu0 0.0
        %988 = vmatpush.msra.mxu0 0.0
        %989 = vmatpush.msra.mxu0 0.0
        %990 = vmatpush.msra.mxu0 0.0
        %991 = vmatpush.msra.mxu0 0.0
        %992 = vmatpush.msra.mxu0 0.0
        %993 = vmatpush.msra.mxu0 0.0
        %994 = vmatpush.msra.mxu0 0.0
        %995 = vmatpush.msra.mxu0 0.0
        %996 = vmatpush.msra.mxu0 0.0
        %997 = vmatpush.msra.mxu0 0.0
        %998 = vmatpush.msra.mxu0 0.0
        %999 = vmatpush.msra.mxu0 0.0
        %1000 = vmatpush.msra.mxu0 0.0
        %1001 = vmatpush.msra.mxu0 %v935
        %1002 = vmatmul.f32.gmra.mxu0 %v984
        %v1003 = vpop.f32.mrf.mxu0
        %v1004 = vadd.f32 0.0, %v1003
        %1005 = vdwg.mxu0
        %v1007 = vsel %vm636, %v631, 0
        %1009 = vmatpush.msra.mxu0 0.0
        %1010 = vmatpush.msra.mxu0 0.0
        %1011 = vmatpush.msra.mxu0 0.0
        %1012 = vmatpush.msra.mxu0 0.0
        %1013 = vmatpush.msra.mxu0 0.0
        %1014 = vmatpush.msra.mxu0 0.0
        %1015 = vmatpush.msra.mxu0 0.0
        %1016 = vmatpush.msra.mxu0 0.0
        %1017 = vmatpush.msra.mxu0 0.0
        %1018 = vmatpush.msra.mxu0 0.0
        %1019 = vmatpush.msra.mxu0 0.0
        %1020 = vmatpush.msra.mxu0 0.0
        %1021 = vmatpush.msra.mxu0 0.0
        %1022 = vmatpush.msra.mxu0 0.0
        %1023 = vmatpush.msra.mxu0 0.0
        %1024 = vmatpush.msra.mxu0 %v936
        %1025 = vmatmul.f32.gmra.mxu0 %v1007
        %v1026 = vpop.f32.mrf.mxu0
        %v1027 = vadd.f32 0.0, %v1026
        %1028 = vdwg.mxu0
        %1029 = vst.msk [vmem:[%s618] sm:$0xff] %vm636, %v958
        %1030 = vst.msk [vmem:[%s618 + $0x8] sm:$0xff] %vm636, %v981
        %1031 = vst.msk [vmem:[%s618 + $0x10] sm:$0xff] %vm636, %v1004
        %1032 = vst.msk [vmem:[%s618 + $0x18] sm:$0xff] %vm636, %v1027
        %v1033 = vld [vmem:[%s598] sm:$0xf]
        %v1034 = vpack.c.bf16 %v1033, %v1033
        %v1035 = vld [vmem:[%s7] sm:$0x3]
        %vm1036 = vcmask 31744
        %v1038 = vsel %vm1036, %v1035, 0
        %vm1040 = vcmask 1041408
        %v1042 = vsel %vm1040, %v1034, 0
        %1044 = vmatpush.bf16.msra.mxu0 0
        %1045 = vmatpush.bf16.msra.mxu0 0
        %1046 = vmatpush.bf16.msra.mxu0 0
        %1047 = vmatpush.bf16.msra.mxu0 0
        %1048 = vmatpush.bf16.msra.mxu0 0
        %1049 = vmatpush.bf16.msra.mxu0 0
        %1050 = vmatpush.bf16.msra.mxu0 0
        %1051 = vmatpush.bf16.msra.mxu0 %v1042
        %1052 = vmatmul.bf16.gmra.mxu0 %v1038
        %v1053 = vpop.f32.mrf.mxu0
        %v1054 = vadd.f32 0.0, %v1053
        %v1055 = vpop.f32.mrf.mxu0
        %1056 = vdwg.mxu0
        %1058 = vrot.lane.b32.xlu0 %v1054, 9
        %v1059 = vpop.permute.xlu0 %1058
        %vm1061 = vcmask 72704
        %v1062 = vsel %vm1061, 0.0, %v1059
        %v1063 = vld [vmem:[%s11] sm:$0x1]
        %v1065 = vperm.slane %v1063, 0
        %v1067 = vmul.f32 %v1062, %v1065
        %s1068 = scalar_lea.vmem %s7, 2
        %v1069 = vld [vmem:[%s1068] sm:$0x3]
        %v1071 = vsel %vm1036, %v1069, 0
        %1073 = vmatpush.bf16.msra.mxu0 0
        %1074 = vmatpush.bf16.msra.mxu0 0
        %1075 = vmatpush.bf16.msra.mxu0 0
        %1076 = vmatpush.bf16.msra.mxu0 0
        %1077 = vmatpush.bf16.msra.mxu0 0
        %1078 = vmatpush.bf16.msra.mxu0 0
        %1079 = vmatpush.bf16.msra.mxu0 0
        %1080 = vmatpush.bf16.msra.mxu0 %v1042
        %1081 = vmatmul.bf16.gmra.mxu0 %v1071
        %v1082 = vpop.f32.mrf.mxu0
        %v1083 = vadd.f32 0.0, %v1082
        %v1084 = vpop.f32.mrf.mxu0
        %1085 = vdwg.mxu0
        %1087 = vrot.lane.b32.xlu0 %v1083, 8
        %v1088 = vpop.permute.xlu0 %1087
        %v1090 = vsel %vm636, 0.0, %v1088
        %s1091 = scalar_lea.vmem %s11, 1
        %v1092 = vld [vmem:[%s1091] sm:$0x1]
        %v1094 = vperm.slane %v1092, 0
        %v1096 = vmul.f32 %v1090, %v1094
        %v1097 = vadd.f32 %v1067, %v1096
        %s1098 = scalar_lea.vmem %s7, 4
        %v1099 = vld [vmem:[%s1098] sm:$0x3]
        %v1101 = vsel %vm1036, %v1099, 0
        %1103 = vmatpush.bf16.msra.mxu0 0
        %1104 = vmatpush.bf16.msra.mxu0 0
        %1105 = vmatpush.bf16.msra.mxu0 0
        %1106 = vmatpush.bf16.msra.mxu0 0
        %1107 = vmatpush.bf16.msra.mxu0 0
        %1108 = vmatpush.bf16.msra.mxu0 0
        %1109 = vmatpush.bf16.msra.mxu0 0
        %1110 = vmatpush.bf16.msra.mxu0 %v1042
        %1111 = vmatmul.bf16.gmra.mxu0 %v1101
        %v1112 = vpop.f32.mrf.mxu0
        %v1113 = vadd.f32 0.0, %v1112
        %v1114 = vpop.f32.mrf.mxu0
        %1115 = vdwg.mxu0
        %1117 = vrot.lane.b32.xlu0 %v1113, 7
        %v1118 = vpop.permute.xlu0 %1117
        %vm1120 = vcmask 56320
        %v1121 = vsel %vm1120, 0.0, %v1118
        %s1122 = scalar_lea.vmem %s11, 2
        %v1123 = vld [vmem:[%s1122] sm:$0x1]
        %v1125 = vperm.slane %v1123, 0
        %v1127 = vmul.f32 %v1121, %v1125
        %v1128 = vadd.f32 %v1097, %v1127
        %s1129 = scalar_lea.vmem %s7, 6
        %v1130 = vld [vmem:[%s1129] sm:$0x3]
        %v1132 = vsel %vm1036, %v1130, 0
        %1134 = vmatpush.bf16.msra.mxu0 0
        %1135 = vmatpush.bf16.msra.mxu0 0
        %1136 = vmatpush.bf16.msra.mxu0 0
        %1137 = vmatpush.bf16.msra.mxu0 0
        %1138 = vmatpush.bf16.msra.mxu0 0
        %1139 = vmatpush.bf16.msra.mxu0 0
        %1140 = vmatpush.bf16.msra.mxu0 0
        %1141 = vmatpush.bf16.msra.mxu0 %v1042
        %1142 = vmatmul.bf16.gmra.mxu0 %v1132
        %v1143 = vpop.f32.mrf.mxu0
        %v1144 = vadd.f32 0.0, %v1143
        %v1145 = vpop.f32.mrf.mxu0
        %1146 = vdwg.mxu0
        %1148 = vrot.lane.b32.xlu0 %v1144, 1
        %v1149 = vpop.permute.xlu0 %1148
        %vm1151 = vcmask 7168
        %v1152 = vsel %vm1151, 0.0, %v1149
        %s1153 = scalar_lea.vmem %s11, 3
        %v1154 = vld [vmem:[%s1153] sm:$0x1]
        %v1156 = vperm.slane %v1154, 0
        %v1158 = vmul.f32 %v1152, %v1156
        %v1159 = vadd.f32 %v1128, %v1158
        %s1160 = scalar_lea.vmem %s7, 8
        %v1161 = vld [vmem:[%s1160] sm:$0x3]
        %v1163 = vsel %vm1036, %v1161, 0
        %1165 = vmatpush.bf16.msra.mxu0 0
        %1166 = vmatpush.bf16.msra.mxu0 0
        %1167 = vmatpush.bf16.msra.mxu0 0
        %1168 = vmatpush.bf16.msra.mxu0 0
        %1169 = vmatpush.bf16.msra.mxu0 0
        %1170 = vmatpush.bf16.msra.mxu0 0
        %1171 = vmatpush.bf16.msra.mxu0 0
        %1172 = vmatpush.bf16.msra.mxu0 %v1042
        %1173 = vmatmul.bf16.gmra.mxu0 %v1163
        %v1174 = vpop.f32.mrf.mxu0
        %v1175 = vadd.f32 0.0, %v1174
        %v1176 = vpop.f32.mrf.mxu0
        %1177 = vdwg.mxu0
        %s1178 = scalar_lea.vmem %s11, 4
        %v1179 = vld [vmem:[%s1178] sm:$0x1]
        %v1181 = vperm.slane %v1179, 0
        %v1183 = vmul.f32 %v1175, %v1181
        %v1184 = vadd.f32 %v1159, %v1183
        %s1185 = scalar_lea.vmem %s7, 10
        %v1186 = vld [vmem:[%s1185] sm:$0x3]
        %v1188 = vsel %vm1036, %v1186, 0
        %1190 = vmatpush.bf16.msra.mxu0 0
        %1191 = vmatpush.bf16.msra.mxu0 0
        %1192 = vmatpush.bf16.msra.mxu0 0
        %1193 = vmatpush.bf16.msra.mxu0 0
        %1194 = vmatpush.bf16.msra.mxu0 0
        %1195 = vmatpush.bf16.msra.mxu0 0
        %1196 = vmatpush.bf16.msra.mxu0 0
        %1197 = vmatpush.bf16.msra.mxu0 %v1042
        %1198 = vmatmul.bf16.gmra.mxu0 %v1188
        %v1199 = vpop.f32.mrf.mxu0
        %v1200 = vadd.f32 0.0, %v1199
        %v1201 = vpop.f32.mrf.mxu0
        %1202 = vdwg.mxu0
        %1204 = vrot.lane.b32.xlu0 %v1200, 127
        %v1205 = vpop.permute.xlu0 %1204
        %vm1207 = vcmask 515072
        %v1208 = vsel %vm1207, %v1205, 0.0
        %s1209 = scalar_lea.vmem %s11, 5
        %v1210 = vld [vmem:[%s1209] sm:$0x1]
        %v1212 = vperm.slane %v1210, 0
        %v1214 = vmul.f32 %v1208, %v1212
        %v1215 = vadd.f32 %v1184, %v1214
        %s1216 = scalar_lea.vmem %s7, 12
        %v1217 = vld [vmem:[%s1216] sm:$0x3]
        %v1219 = vsel %vm1036, %v1217, 0
        %1221 = vmatpush.bf16.msra.mxu0 0
        %1222 = vmatpush.bf16.msra.mxu0 0
        %1223 = vmatpush.bf16.msra.mxu0 0
        %1224 = vmatpush.bf16.msra.mxu0 0
        %1225 = vmatpush.bf16.msra.mxu0 0
        %1226 = vmatpush.bf16.msra.mxu0 0
        %1227 = vmatpush.bf16.msra.mxu0 0
        %1228 = vmatpush.bf16.msra.mxu0 %v1042
        %1229 = vmatmul.bf16.gmra.mxu0 %v1219
        %v1230 = vpop.f32.mrf.mxu0
        %v1231 = vadd.f32 0.0, %v1230
        %v1232 = vpop.f32.mrf.mxu0
        %1233 = vdwg.mxu0
        %1235 = vrot.lane.b32.xlu0 %v1231, 121
        %v1236 = vpop.permute.xlu0 %1235
        %vm1238 = vcmask 465920
        %v1239 = vsel %vm1238, %v1236, 0.0
        %s1240 = scalar_lea.vmem %s11, 6
        %v1241 = vld [vmem:[%s1240] sm:$0x1]
        %v1243 = vperm.slane %v1241, 0
        %v1245 = vmul.f32 %v1239, %v1243
        %v1246 = vadd.f32 %v1215, %v1245
        %s1247 = scalar_lea.vmem %s7, 14
        %v1248 = vld [vmem:[%s1247] sm:$0x3]
        %v1250 = vsel %vm1036, %v1248, 0
        %1252 = vmatpush.bf16.msra.mxu0 0
        %1253 = vmatpush.bf16.msra.mxu0 0
        %1254 = vmatpush.bf16.msra.mxu0 0
        %1255 = vmatpush.bf16.msra.mxu0 0
        %1256 = vmatpush.bf16.msra.mxu0 0
        %1257 = vmatpush.bf16.msra.mxu0 0
        %1258 = vmatpush.bf16.msra.mxu0 0
        %1259 = vmatpush.bf16.msra.mxu0 %v1042
        %1260 = vmatmul.bf16.gmra.mxu0 %v1250
        %v1261 = vpop.f32.mrf.mxu0
        %v1262 = vadd.f32 0.0, %v1261
        %v1263 = vpop.f32.mrf.mxu0
        %1264 = vdwg.mxu0
        %1266 = vrot.lane.b32.xlu0 %v1262, 120
        %v1267 = vpop.permute.xlu0 %1266
        %vm1269 = vcmask 457728
        %v1270 = vsel %vm1269, %v1267, 0.0
        %s1271 = scalar_lea.vmem %s11, 7
        %v1272 = vld [vmem:[%s1271] sm:$0x1]
        %v1274 = vperm.slane %v1272, 0
        %v1276 = vmul.f32 %v1270, %v1274
        %v1277 = vadd.f32 %v1246, %v1276
        %s1278 = scalar_lea.vmem %s7, 16
        %v1279 = vld [vmem:[%s1278] sm:$0x3]
        %v1281 = vsel %vm1036, %v1279, 0
        %1283 = vmatpush.bf16.msra.mxu0 0
        %1284 = vmatpush.bf16.msra.mxu0 0
        %1285 = vmatpush.bf16.msra.mxu0 0
        %1286 = vmatpush.bf16.msra.mxu0 0
        %1287 = vmatpush.bf16.msra.mxu0 0
        %1288 = vmatpush.bf16.msra.mxu0 0
        %1289 = vmatpush.bf16.msra.mxu0 0
        %1290 = vmatpush.bf16.msra.mxu0 %v1042
        %1291 = vmatmul.bf16.gmra.mxu0 %v1281
        %v1292 = vpop.f32.mrf.mxu0
        %v1293 = vadd.f32 0.0, %v1292
        %v1294 = vpop.f32.mrf.mxu0
        %1295 = vdwg.mxu0
        %1297 = vrot.lane.b32.xlu0 %v1293, 119
        %v1298 = vpop.permute.xlu0 %1297
        %vm1300 = vcmask 449536
        %v1301 = vsel %vm1300, %v1298, 0.0
        %s1302 = scalar_lea.vmem %s11, 8
        %v1303 = vld [vmem:[%s1302] sm:$0x1]
        %v1305 = vperm.slane %v1303, 0
        %v1307 = vmul.f32 %v1301, %v1305
        %v1308 = vadd.f32 %v1277, %v1307
        %v1309 = vld [vmem:[%s8] sm:$0xf]
        %1311 = vset.pattern.permute.xlu0 0
        %1312 = vperm.xlu0 %1311, %v1309
        %v1313 = vpop.permute.xlu0 %1312
        %v1315 = vadd.f32 %v1308, %v1313
        %v1316 = vmul.f32 %v1315, 0.70710677
        %v1317 = vand.u32 2147483647, %v1316
        %v1318 = vmul.f32 %v1317, 0.3275911
        %v1319 = vadd.f32 %v1318, 1.0
        %v1320 = vrcp.pop %v1319
        %v1321 = vmul.f32 %v1319, %v1320
        %v1322 = vsub.f32 1.0, %v1321
        %v1323 = vmul.f32 %v1320, %v1322
        %v1324 = vadd.f32 %v1320, %v1323
        %vm1325 = vweird.f32 %v1319
        %vm1326 = vweird.f32 %v1320
        %vm1327 = vmor %vm1325, %vm1326
        %v1328 = vsel %vm1327, %v1320, %v1324
        %v1329 = vand.u32 2147483647, %v1319
        %vm1330 = vcmp.eq.f32.partialorder %v1329, 8.507059e+37
        %v1331 = vand.u32 %v1319, 2147483648
        %v1332 = vor.u32 1.1754944e-38, %v1331
        %v1333 = vsel %vm1330, %v1332, %v1328
        %v1334 = vmul.f32 1.0, %v1333
        %v1335 = vmul.f32 %v1334, 1.0614054
        %v1336 = vadd.f32 %v1335, -1.4531521
        %v1337 = vmul.f32 %v1334, %v1336
        %v1338 = vadd.f32 %v1337, 1.4214138
        %v1339 = vmul.f32 %v1334, %v1338
        %v1340 = vadd.f32 %v1339, -0.28449672
        %v1341 = vmul.f32 %v1334, %v1340
        %v1342 = vadd.f32 %v1341, 0.2548296
        %v1343 = vmul.f32 %v1334, %v1342
        %v1344 = vsub.f32 0.0, %v1317
        %v1345 = vmul.f32 %v1344, %v1317
        %v1346 = vmul.f32 %v1345, 1.442695
        %v1347 = vpow.pop %v1346
        %v1348 = vmul.f32 %v1343, %v1347
        %v1349 = vsub.f32 1.0, %v1348
        %vm1350 = vcmp.lt.f32.partialorder %v1316, 0.0
        %v1351 = vsub.f32 0.0, %v1349
        %v1352 = vsel %vm1350, %v1351, %v1349
        %v1353 = vmul.f32 %v1315, 0.5
        %v1354 = vadd.f32 %v1352, 1.0
        %v1355 = vmul.f32 %v1353, %v1354
        %v1356 = vpack.c.bf16 %v1355, %v1355
        %v1357 = vld [vmem:[%s9] sm:$0x3]
        %v1359 = vsel %vm1036, %v1357, 0
        %v1362 = vsel %vm1040, %v1356, 0
        %1364 = vmatpush.bf16.msra.mxu0 0
        %1365 = vmatpush.bf16.msra.mxu0 0
        %1366 = vmatpush.bf16.msra.mxu0 0
        %1367 = vmatpush.bf16.msra.mxu0 0
        %1368 = vmatpush.bf16.msra.mxu0 0
        %1369 = vmatpush.bf16.msra.mxu0 0
        %1370 = vmatpush.bf16.msra.mxu0 0
        %1371 = vmatpush.bf16.msra.mxu0 %v1362
        %1372 = vmatmul.bf16.gmra.mxu0 %v1359
        %v1373 = vpop.f32.mrf.mxu0
        %v1374 = vadd.f32 0.0, %v1373
        %v1375 = vpop.f32.mrf.mxu0
        %1376 = vdwg.mxu0
        %1378 = vrot.lane.b32.xlu0 %v1374, 9
        %v1379 = vpop.permute.xlu0 %1378
        %v1381 = vsel %vm1061, 0.0, %v1379
        %v1382 = vmul.f32 %v1381, %v1065
        %s1383 = scalar_lea.vmem %s9, 2
        %v1384 = vld [vmem:[%s1383] sm:$0x3]
        %v1386 = vsel %vm1036, %v1384, 0
        %1388 = vmatpush.bf16.msra.mxu0 0
        %1389 = vmatpush.bf16.msra.mxu0 0
        %1390 = vmatpush.bf16.msra.mxu0 0
        %1391 = vmatpush.bf16.msra.mxu0 0
        %1392 = vmatpush.bf16.msra.mxu0 0
        %1393 = vmatpush.bf16.msra.mxu0 0
        %1394 = vmatpush.bf16.msra.mxu0 0
        %1395 = vmatpush.bf16.msra.mxu0 %v1362
        %1396 = vmatmul.bf16.gmra.mxu0 %v1386
        %v1397 = vpop.f32.mrf.mxu0
        %v1398 = vadd.f32 0.0, %v1397
        %v1399 = vpop.f32.mrf.mxu0
        %1400 = vdwg.mxu0
        %1402 = vrot.lane.b32.xlu0 %v1398, 8
        %v1403 = vpop.permute.xlu0 %1402
        %v1405 = vsel %vm636, 0.0, %v1403
        %v1406 = vmul.f32 %v1405, %v1094
        %v1407 = vadd.f32 %v1382, %v1406
        %s1408 = scalar_lea.vmem %s9, 4
        %v1409 = vld [vmem:[%s1408] sm:$0x3]
        %v1411 = vsel %vm1036, %v1409, 0
        %1413 = vmatpush.bf16.msra.mxu0 0
        %1414 = vmatpush.bf16.msra.mxu0 0
        %1415 = vmatpush.bf16.msra.mxu0 0
        %1416 = vmatpush.bf16.msra.mxu0 0
        %1417 = vmatpush.bf16.msra.mxu0 0
        %1418 = vmatpush.bf16.msra.mxu0 0
        %1419 = vmatpush.bf16.msra.mxu0 0
        %1420 = vmatpush.bf16.msra.mxu0 %v1362
        %1421 = vmatmul.bf16.gmra.mxu0 %v1411
        %v1422 = vpop.f32.mrf.mxu0
        %v1423 = vadd.f32 0.0, %v1422
        %v1424 = vpop.f32.mrf.mxu0
        %1425 = vdwg.mxu0
        %1427 = vrot.lane.b32.xlu0 %v1423, 7
        %v1428 = vpop.permute.xlu0 %1427
        %v1430 = vsel %vm1120, 0.0, %v1428
        %v1431 = vmul.f32 %v1430, %v1125
        %v1432 = vadd.f32 %v1407, %v1431
        %s1433 = scalar_lea.vmem %s9, 6
        %v1434 = vld [vmem:[%s1433] sm:$0x3]
        %v1436 = vsel %vm1036, %v1434, 0
        %1438 = vmatpush.bf16.msra.mxu0 0
        %1439 = vmatpush.bf16.msra.mxu0 0
        %1440 = vmatpush.bf16.msra.mxu0 0
        %1441 = vmatpush.bf16.msra.mxu0 0
        %1442 = vmatpush.bf16.msra.mxu0 0
        %1443 = vmatpush.bf16.msra.mxu0 0
        %1444 = vmatpush.bf16.msra.mxu0 0
        %1445 = vmatpush.bf16.msra.mxu0 %v1362
        %1446 = vmatmul.bf16.gmra.mxu0 %v1436
        %v1447 = vpop.f32.mrf.mxu0
        %v1448 = vadd.f32 0.0, %v1447
        %v1449 = vpop.f32.mrf.mxu0
        %1450 = vdwg.mxu0
        %1452 = vrot.lane.b32.xlu0 %v1448, 1
        %v1453 = vpop.permute.xlu0 %1452
        %v1455 = vsel %vm1151, 0.0, %v1453
        %v1456 = vmul.f32 %v1455, %v1156
        %v1457 = vadd.f32 %v1432, %v1456
        %s1458 = scalar_lea.vmem %s9, 8
        %v1459 = vld [vmem:[%s1458] sm:$0x3]
        %v1461 = vsel %vm1036, %v1459, 0
        %1463 = vmatpush.bf16.msra.mxu0 0
        %1464 = vmatpush.bf16.msra.mxu0 0
        %1465 = vmatpush.bf16.msra.mxu0 0
        %1466 = vmatpush.bf16.msra.mxu0 0
        %1467 = vmatpush.bf16.msra.mxu0 0
        %1468 = vmatpush.bf16.msra.mxu0 0
        %1469 = vmatpush.bf16.msra.mxu0 0
        %1470 = vmatpush.bf16.msra.mxu0 %v1362
        %1471 = vmatmul.bf16.gmra.mxu0 %v1461
        %v1472 = vpop.f32.mrf.mxu0
        %v1473 = vadd.f32 0.0, %v1472
        %v1474 = vpop.f32.mrf.mxu0
        %1475 = vdwg.mxu0
        %v1476 = vmul.f32 %v1473, %v1181
        %v1477 = vadd.f32 %v1457, %v1476
        %s1478 = scalar_lea.vmem %s9, 10
        %v1479 = vld [vmem:[%s1478] sm:$0x3]
        %v1481 = vsel %vm1036, %v1479, 0
        %1483 = vmatpush.bf16.msra.mxu0 0
        %1484 = vmatpush.bf16.msra.mxu0 0
        %1485 = vmatpush.bf16.msra.mxu0 0
        %1486 = vmatpush.bf16.msra.mxu0 0
        %1487 = vmatpush.bf16.msra.mxu0 0
        %1488 = vmatpush.bf16.msra.mxu0 0
        %1489 = vmatpush.bf16.msra.mxu0 0
        %1490 = vmatpush.bf16.msra.mxu0 %v1362
        %1491 = vmatmul.bf16.gmra.mxu0 %v1481
        %v1492 = vpop.f32.mrf.mxu0
        %v1493 = vadd.f32 0.0, %v1492
        %v1494 = vpop.f32.mrf.mxu0
        %1495 = vdwg.mxu0
        %1497 = vrot.lane.b32.xlu0 %v1493, 127
        %v1498 = vpop.permute.xlu0 %1497
        %v1500 = vsel %vm1207, %v1498, 0.0
        %v1501 = vmul.f32 %v1500, %v1212
        %v1502 = vadd.f32 %v1477, %v1501
        %s1503 = scalar_lea.vmem %s9, 12
        %v1504 = vld [vmem:[%s1503] sm:$0x3]
        %v1506 = vsel %vm1036, %v1504, 0
        %1508 = vmatpush.bf16.msra.mxu0 0
        %1509 = vmatpush.bf16.msra.mxu0 0
        %1510 = vmatpush.bf16.msra.mxu0 0
        %1511 = vmatpush.bf16.msra.mxu0 0
        %1512 = vmatpush.bf16.msra.mxu0 0
        %1513 = vmatpush.bf16.msra.mxu0 0
        %1514 = vmatpush.bf16.msra.mxu0 0
        %1515 = vmatpush.bf16.msra.mxu0 %v1362
        %1516 = vmatmul.bf16.gmra.mxu0 %v1506
        %v1517 = vpop.f32.mrf.mxu0
        %v1518 = vadd.f32 0.0, %v1517
        %v1519 = vpop.f32.mrf.mxu0
        %1520 = vdwg.mxu0
        %1522 = vrot.lane.b32.xlu0 %v1518, 121
        %v1523 = vpop.permute.xlu0 %1522
        %v1525 = vsel %vm1238, %v1523, 0.0
        %v1526 = vmul.f32 %v1525, %v1243
        %v1527 = vadd.f32 %v1502, %v1526
        %s1528 = scalar_lea.vmem %s9, 14
        %v1529 = vld [vmem:[%s1528] sm:$0x3]
        %v1531 = vsel %vm1036, %v1529, 0
        %1533 = vmatpush.bf16.msra.mxu0 0
        %1534 = vmatpush.bf16.msra.mxu0 0
        %1535 = vmatpush.bf16.msra.mxu0 0
        %1536 = vmatpush.bf16.msra.mxu0 0
        %1537 = vmatpush.bf16.msra.mxu0 0
        %1538 = vmatpush.bf16.msra.mxu0 0
        %1539 = vmatpush.bf16.msra.mxu0 0
        %1540 = vmatpush.bf16.msra.mxu0 %v1362
        %1541 = vmatmul.bf16.gmra.mxu0 %v1531
        %v1542 = vpop.f32.mrf.mxu0
        %v1543 = vadd.f32 0.0, %v1542
        %v1544 = vpop.f32.mrf.mxu0
        %1545 = vdwg.mxu0
        %1547 = vrot.lane.b32.xlu0 %v1543, 120
        %v1548 = vpop.permute.xlu0 %1547
        %v1550 = vsel %vm1269, %v1548, 0.0
        %v1551 = vmul.f32 %v1550, %v1274
        %v1552 = vadd.f32 %v1527, %v1551
        %s1553 = scalar_lea.vmem %s9, 16
        %v1554 = vld [vmem:[%s1553] sm:$0x3]
        %v1556 = vsel %vm1036, %v1554, 0
        %1558 = vmatpush.bf16.msra.mxu0 0
        %1559 = vmatpush.bf16.msra.mxu0 0
        %1560 = vmatpush.bf16.msra.mxu0 0
        %1561 = vmatpush.bf16.msra.mxu0 0
        %1562 = vmatpush.bf16.msra.mxu0 0
        %1563 = vmatpush.bf16.msra.mxu0 0
        %1564 = vmatpush.bf16.msra.mxu0 0
        %1565 = vmatpush.bf16.msra.mxu0 %v1362
        %1566 = vmatmul.bf16.gmra.mxu0 %v1556
        %v1567 = vpop.f32.mrf.mxu0
        %v1568 = vadd.f32 0.0, %v1567
        %v1569 = vpop.f32.mrf.mxu0
        %1570 = vdwg.mxu0
        %1572 = vrot.lane.b32.xlu0 %v1568, 119
        %v1573 = vpop.permute.xlu0 %1572
        %v1575 = vsel %vm1300, %v1573, 0.0
        %v1576 = vmul.f32 %v1575, %v1305
        %v1577 = vadd.f32 %v1552, %v1576
        %v1578 = vld [vmem:[%s10] sm:$0xf]
        %1580 = vset.pattern.permute.xlu0 0
        %1581 = vperm.xlu0 %1580, %v1578
        %v1582 = vpop.permute.xlu0 %1581
        %v1584 = vadd.f32 %v1577, %v1582
        %vm1585 = vcmask 519168
        %1586 = vst.msk [vmem:[%s622] sm:$0xf] %vm1585, %v1584
        %p1587 = scmp.lt.s32.totalorder %s29, 1
        %s1588 = scalar_select %p1587, %s29, 1
        %s1589 = smul.addr %s1588, 4
        %s1590 = smul.addr %s1589, 8
        %s1591 = scalar_lea.vmem %s12, %s1590
        %p1592 = scmp.lt.s32.totalorder %s29, 1
        %s1593 = scalar_select %p1592, %s29, 1
        %s1594 = smul.addr %s1593, 4
        %s1595 = smul.addr %s1594, 8
        %s1596 = scalar_lea.vmem %s13, %s1595
        %p1597 = scmp.lt.s32.totalorder %s29, 1
        %s1598 = scalar_select %p1597, %s29, 1
        %s1599 = smul.addr %s1598, 4
        %s1600 = smul.addr %s1599, 8
        %s1601 = scalar_lea.vmem %s14, %s1600
        %p1602 = scmp.lt.s32.totalorder %s29, 1
        %s1603 = scalar_select %p1602, %s29, 1
        %s1604 = smul.addr %s1603, 4
        %s1605 = smul.addr %s1604, 8
        %s1606 = scalar_lea.vmem %s15, %s1605
        %p1607 = scmp.lt.s32.totalorder %s29, 1
        %s1608 = scalar_select %p1607, %s29, 1
        %s1609 = smul.addr %s1608, 4
        %s1610 = scalar_lea.vmem %s16, %s1609
        // Predicated region
        $region73: #{spatial_learn_forward.3} parent=67 // pred_check
          %p1611 = pneg %p314
        $region74: #{spatial_learn_forward.3} parent=67 // pred_check_branch
          %1613 = sbr.rel (%p1611) target = $region76
        $region75: #{spatial_learn_forward.3} parent=67 // pred_region
          _
        $region76: #{spatial_learn_forward.3} parent=67 // pred_fallthru
          _
        // Predicated region
        $region77: #{spatial_learn_forward.3} parent=67 // pred_check
          %p1614 = pneg %p340
        $region78: #{spatial_learn_forward.3} parent=67 // pred_check_branch
          %1616 = sbr.rel (%p1614) target = $region80
        $region79: #{spatial_learn_forward.3} parent=67 // pred_region
          _
        $region80: #{spatial_learn_forward.3} parent=67 // pred_fallthru
          _
        // Predicated region
        $region81: #{spatial_learn_forward.3} parent=67 // pred_check
          %p1617 = pneg %p366
        $region82: #{spatial_learn_forward.3} parent=67 // pred_check_branch
          %1619 = sbr.rel (%p1617) target = $region84
        $region83: #{spatial_learn_forward.3} parent=67 // pred_region
          _
        $region84: #{spatial_learn_forward.3} parent=67 // pred_fallthru
          _
        // Predicated region
        $region85: #{spatial_learn_forward.3} parent=67 // pred_check
          %p1620 = pneg %p392
        $region86: #{spatial_learn_forward.3} parent=67 // pred_check_branch
          %1622 = sbr.rel (%p1620) target = $region88
        $region87: #{spatial_learn_forward.3} parent=67 // pred_region
          _
        $region88: #{spatial_learn_forward.3} parent=67 // pred_fallthru
          _
        // Predicated region
        $region89: #{spatial_learn_forward.3} parent=67 // pred_check
          %p1623 = pneg %p418
        $region90: #{spatial_learn_forward.3} parent=67 // pred_check_branch
          %1625 = sbr.rel (%p1623) target = $region92
        $region91: #{spatial_learn_forward.3} parent=67 // pred_region
          _
        $region92: #{spatial_learn_forward.3} parent=67 // pred_fallthru
          _
      $region68: #{spatial_learn_forward.3} parent=5 // pred_fallthru
        _
      %p1626 = scmp.le.s32.totalorder 2, %s24
      // Predicated region
      $region93: #{spatial_learn_forward.3} parent=5 // pred_check
        %p1627 = pneg %p1626
      $region94: #{spatial_learn_forward.3} parent=5 // pred_check_branch
        %1629 = sbr.rel (%p1627) target = $region96
      $region95: #{spatial_learn_forward.3} parent=5 // pred_region
        %s1630 = ssub.s32 %s24, 2
        // Predicated region
        $region97: #{spatial_learn_forward.3} parent=95 // pred_check
          %p1631 = pneg %p320
        $region98: #{spatial_learn_forward.3} parent=95 // pred_check_branch
          %1633 = sbr.rel (%p1631) target = $region100
        $region99: #{spatial_learn_forward.3} parent=95 // pred_region
          %p1634 = scmp.lt.s32.totalorder %s30, 1
          %s1635 = scalar_select %p1634, %s30, 1
          %s1636 = smul.addr %s1635, 4
          %s1637 = smul.addr %s1636, 8
          %s1638 = scalar_lea.vmem %s12, %s1637
        $region100: #{spatial_learn_forward.3} parent=95 // pred_fallthru
          _
        // Predicated region
        $region101: #{spatial_learn_forward.3} parent=95 // pred_check
          %p1639 = pneg %p346
        $region102: #{spatial_learn_forward.3} parent=95 // pred_check_branch
          %1641 = sbr.rel (%p1639) target = $region104
        $region103: #{spatial_learn_forward.3} parent=95 // pred_region
          %p1642 = scmp.lt.s32.totalorder %s30, 1
          %s1643 = scalar_select %p1642, %s30, 1
          %s1644 = smul.addr %s1643, 4
          %s1645 = smul.addr %s1644, 8
          %s1646 = scalar_lea.vmem %s13, %s1645
        $region104: #{spatial_learn_forward.3} parent=95 // pred_fallthru
          _
        // Predicated region
        $region105: #{spatial_learn_forward.3} parent=95 // pred_check
          %p1647 = pneg %p372
        $region106: #{spatial_learn_forward.3} parent=95 // pred_check_branch
          %1649 = sbr.rel (%p1647) target = $region108
        $region107: #{spatial_learn_forward.3} parent=95 // pred_region
          %p1650 = scmp.lt.s32.totalorder %s30, 1
          %s1651 = scalar_select %p1650, %s30, 1
          %s1652 = smul.addr %s1651, 4
          %s1653 = smul.addr %s1652, 8
          %s1654 = scalar_lea.vmem %s14, %s1653
        $region108: #{spatial_learn_forward.3} parent=95 // pred_fallthru
          _
        // Predicated region
        $region109: #{spatial_learn_forward.3} parent=95 // pred_check
          %p1655 = pneg %p398
        $region110: #{spatial_learn_forward.3} parent=95 // pred_check_branch
          %1657 = sbr.rel (%p1655) target = $region112
        $region111: #{spatial_learn_forward.3} parent=95 // pred_region
          %p1658 = scmp.lt.s32.totalorder %s30, 1
          %s1659 = scalar_select %p1658, %s30, 1
          %s1660 = smul.addr %s1659, 4
          %s1661 = smul.addr %s1660, 8
          %s1662 = scalar_lea.vmem %s15, %s1661
        $region112: #{spatial_learn_forward.3} parent=95 // pred_fallthru
          _
        // Predicated region
        $region113: #{spatial_learn_forward.3} parent=95 // pred_check
          %p1663 = pneg %p424
        $region114: #{spatial_learn_forward.3} parent=95 // pred_check_branch
          %1665 = sbr.rel (%p1663) target = $region116
        $region115: #{spatial_learn_forward.3} parent=95 // pred_region
          %p1666 = scmp.lt.s32.totalorder %s30, 1
          %s1667 = scalar_select %p1666, %s30, 1
          %s1668 = smul.addr %s1667, 4
          %s1669 = scalar_lea.vmem %s16, %s1668
        $region116: #{spatial_learn_forward.3} parent=95 // pred_fallthru
          _
      $region96: #{spatial_learn_forward.3} parent=5 // pred_fallthru
        _
    $region6: #{spatial_learn_forward.3} parent=1 // loop_footer
      %s28 = sadd.s32 1, %s24
    $region7: #{spatial_learn_forward.3} parent=1 // loop_footer_branch
      %23 = sbr.rel target = $region3
    $region8: #{spatial_learn_forward.3} parent=1 // loop_exit
      _
    %1670 = vsyncpa [#allocation3], 1
    %s1671 = scalar_lea.sflag [#allocation3], 1
    %1672 = vsyncpa %s1671, 1

</llo_original>
